<compile_context>
chip_gen: v6e
topology: v6e:2x2x1
jax: 0.10.0
libtpu: 0.0.40
codegen_flags: <defaults>
</compile_context>

<pallas_src>
import jax
import jax.numpy as jnp
from jax.experimental import pallas as pl
from jax.experimental.pallas import tpu as pltpu


def _spectral_mul_kernel(a_ref, w_ref, o_ref):
    """One (mode-tile, Co-tile) block of the per-mode complex channel mix.

    a_ref: (2, Ci, B, TM)   bf16   [0]=real, [1]=imag (Ci major -> contiguous slabs)
    w_ref: (2, Ci, TCo, TM) bf16
    o_ref: (2, B, TCo, TM)  f32    accumulated in place (VMEM-resident block)

    Standard 4-multiply complex MAC; multiplies/adds in f32 (exact products of
    bf16 inputs), accumulation into the VMEM output block so the live register
    set per unrolled Ci step stays small.
    """
    Ci = a_ref.shape[1]
    o_ref[...] = jnp.zeros_like(o_ref)
    for i in range(Ci):  # static channel count -> unrolled; acc lives in VMEM
        ar = a_ref[0, i].astype(jnp.float32)[:, None, :]   # (B, 1, TM)
        ai = a_ref[1, i].astype(jnp.float32)[:, None, :]
        wr = w_ref[0, i].astype(jnp.float32)[None]          # (1, TCo, TM)
        wi = w_ref[1, i].astype(jnp.float32)[None]
        o_ref[0] += ar * wr - ai * wi
        o_ref[1] += ar * wi + ai * wr


def _default_vmem_limit_bytes():
    """~75% of physical VMEM, capped at 100 MiB (v5e/v6e ~96 MiB, v7x 48 MiB)."""
    try:
        info = pltpu.get_tpu_info()
        phys = int(getattr(info, "vmem_capacity_bytes", 0))
        if phys > 0:
            return min(100 * 1024 * 1024, phys * 3 // 4)
    except Exception:
        pass
    return 48 * 1024 * 1024  # safe everywhere


def _pick_tiles(B, Ci, Co, Mtot, tm_target, vmem_limit_bytes):
    """Choose (tm, tco) so double-buffered blocks fit ~70% of the VMEM budget."""
    tm_target = max(128, (int(tm_target) // 128) * 128)
    tm = min(tm_target, pl.cdiv(Mtot, 128) * 128)   # lane-dense, no over-padding
    if Co % 32 == 0:
        tco = 32
    elif Co % 16 == 0:
        tco = 16
    elif Co % 8 == 0:
        tco = 8
    else:
        tco = Co  # small / odd channel counts: full Co (still a legal block dim)

    def step_bytes(tm_, tco_):
        a_b = 2 * Ci * B * tm_ * 2        # bf16 activations (re+im stacked)
        w_b = 2 * Ci * tco_ * tm_ * 2     # bf16 weights (re+im stacked)
        o_b = 2 * B * tco_ * tm_ * 4      # f32 outputs (re+im stacked)
        return 2 * (a_b + w_b + o_b)      # double-buffered pipeline

    budget = int(vmem_limit_bytes * 0.7)
    while step_bytes(tm, tco) > budget and tm > 128:
        tm = max(128, (tm // 2) // 128 * 128)
    while step_bytes(tm, tco) > budget and tco in (32, 16):
        tco //= 2
    return tm, tco


def _compl_mul_pallas(A, W, *, tco, tm, vmem_limit_bytes=None):
    """A: (2, Ci, B, Mp) bf16, W: (2, Ci, Co, Mp) bf16 -> (2, B, Co, Mp) f32."""
    _, Ci, B, Mp = A.shape
    Co = W.shape[2]
    assert Mp % tm == 0 and Co % tco == 0
    if vmem_limit_bytes is None:
        vmem_limit_bytes = _default_vmem_limit_bytes()

    n_m, n_co = Mp // tm, Co // tco
    # co is the fastest grid axis: the activation block (depends only on m) is
    # re-used across the whole co sweep, so every operand crosses HBM once.
    a_spec = pl.BlockSpec((2, Ci, B, tm), lambda m, co: (0, 0, 0, m))
    w_spec = pl.BlockSpec((2, Ci, tco, tm), lambda m, co: (0, 0, co, m))
    o_spec = pl.BlockSpec((2, B, tco, tm), lambda m, co: (0, 0, co, m))

    return pl.pallas_call(
        _spectral_mul_kernel,
        out_shape=jax.ShapeDtypeStruct((2, B, Co, Mp), jnp.float32),
        grid=(n_m, n_co),
        in_specs=[a_spec, w_spec],
        out_specs=o_spec,
        compiler_params=pltpu.CompilerParams(
            dimension_semantics=("parallel", "parallel"),
            vmem_limit_bytes=int(vmem_limit_bytes),
        ),
    )(A, W)


def spectral_conv3d_fast(x, w1, w2, w3, w4, modes1, modes2, modes3,
                         *, transfer_dtype=jnp.bfloat16, tm_target=512):
    """Forward pass of SpectralConv3d_fast.

    x:  (B, Ci, X, Y, Z) float32
    w*: (Ci, Co, modes1, modes2, modes3, 2) float32  (last dim = [real, imag])
    returns (B, Co, X, Y, Z) float32

    Accuracy note: activations and weights are quantized to bf16 for the HBM
    transfer into the kernel; math and accumulation are f32.
    """
    B, Ci, X, Y, Z = x.shape
    Co = w1.shape[1]
    # The original PyTorch module allocates out_ft with in_channels channels,
    # so it only runs when in_channels == out_channels; keep that contract.
    assert Ci == Co, "reference module requires in_channels == out_channels"
    m1, m2, m3 = modes1, modes2, modes3
    Zr = Z // 2 + 1
    M = m1 * m2 * m3
    Mtot = 4 * M  # 4 corners folded into one lane-dense mode axis

    # TODO(synk): rfftn/irfftn have no Pallas equivalent; they run as XLA FFTs.
    x_ft = jnp.fft.rfftn(x.astype(jnp.float32), axes=(-3, -2, -1), norm="ortho")

    # 4 retained low-frequency corners.  The (m1,m2,m3) gather/scatter is not
    # (8,128)-tileable, so it stays in the XLA wrapper.
    corners = [
        x_ft[:, :, :m1, :m2, :m3],
        x_ft[:, :, -m1:, :m2, :m3],
        x_ft[:, :, :m1, -m2:, :m3],
        x_ft[:, :, -m1:, -m2:, :m3],
    ]
    # Activations: (Ci, B, 4*M) with Ci as the leading (major) axis.
    A = jnp.stack(corners, axis=0).reshape(4, B, Ci, M)
    A = jnp.transpose(A, (2, 1, 0, 3)).reshape(Ci, B, Mtot)

    # Weights: (Ci, Co, 4*M), corner-major along the folded mode axis.
    W = jnp.stack([w1, w2, w3, w4], axis=0).astype(jnp.float32)
    W = W.reshape(4, Ci, Co, M, 2)
    Wr = jnp.transpose(W[..., 0], (1, 2, 0, 3)).reshape(Ci, Co, Mtot)
    Wi = jnp.transpose(W[..., 1], (1, 2, 0, 3)).reshape(Ci, Co, Mtot)

    vmem_limit = _default_vmem_limit_bytes()
    tm, tco = _pick_tiles(B, Ci, Co, Mtot, tm_target, vmem_limit)
    Mp = pl.cdiv(Mtot, tm) * tm

    def pack(re, im):
        a = jnp.stack([re, im], axis=0).astype(transfer_dtype)   # cast BEFORE pad
        return jnp.pad(a, ((0, 0),) * (a.ndim - 1) + ((0, Mp - Mtot),))

    A_pk = pack(jnp.real(A), jnp.imag(A))     # (2, Ci, B, Mp) bf16
    W_pk = pack(Wr, Wi)                       # (2, Ci, Co, Mp) bf16

    out = _compl_mul_pallas(A_pk, W_pk, tco=tco, tm=tm,
                            vmem_limit_bytes=vmem_limit)   # (2, B, Co, Mp) f32
    out = out[..., :Mtot].reshape(2, B, Co, 4, m1, m2, m3)
    out_c = jax.lax.complex(out[0], out[1])                # (B, Co, 4, m1, m2, m3)

    out_ft = jnp.zeros((B, Co, X, Y, Zr), dtype=jnp.complex64)
    out_ft = out_ft.at[:, :, :m1, :m2, :m3].set(out_c[:, :, 0])
    out_ft = out_ft.at[:, :, -m1:, :m2, :m3].set(out_c[:, :, 1])
    out_ft = out_ft.at[:, :, :m1, -m2:, :m3].set(out_c[:, :, 2])
    out_ft = out_ft.at[:, :, -m1:, -m2:, :m3].set(out_c[:, :, 3])

    x_out = jnp.fft.irfftn(out_ft, s=(X, Y, Z), axes=(-3, -2, -1), norm="ortho")
    return x_out.astype(jnp.float32)


def _reference_forward(x, w1, w2, w3, w4, m1, m2, m3):
    """Pure-JAX f32 reference mirroring the PyTorch module."""
    B, Ci, X, Y, Z = x.shape
    Co = w1.shape[1]
    x_ft = jnp.fft.rfftn(x, axes=(-3, -2, -1), norm="ortho")

    def cmul(a, w):
        wc = jax.lax.complex(w[..., 0], w[..., 1])
        return jnp.einsum("bixyz,ioxyz->boxyz", a, wc,
                          precision=jax.lax.Precision.HIGHEST)

    out_ft = jnp.zeros((B, Co, X, Y, Z // 2 + 1), jnp.complex64)
    out_ft = out_ft.at[:, :, :m1, :m2, :m3].set(cmul(x_ft[:, :, :m1, :m2, :m3], w1))
    out_ft = out_ft.at[:, :, -m1:, :m2, :m3].set(cmul(x_ft[:, :, -m1:, :m2, :m3], w2))
    out_ft = out_ft.at[:, :, :m1, -m2:, :m3].set(cmul(x_ft[:, :, :m1, -m2:, :m3], w3))
    out_ft = out_ft.at[:, :, -m1:, -m2:, :m3].set(cmul(x_ft[:, :, -m1:, -m2:, :m3], w4))
    out = jnp.fft.irfftn(out_ft, s=(X, Y, Z), axes=(-3, -2, -1), norm="ortho")
    return out.astype(jnp.float32)


if __name__ == "__main__":
    B, Ci, Co = 2, 4, 4
    X, Y, Z = 16, 16, 16
    modes1 = modes2 = modes3 = 4
    scale = 1.0 / (Ci * Co)

    key = jax.random.PRNGKey(0)
    kx, k1, k2, k3, k4, ka, kw = jax.random.split(key, 7)

    x = jax.random.normal(kx, (B, Ci, X, Y, Z), dtype=jnp.float32)
    wshape = (Ci, Co, modes1, modes2, modes3, 2)
    w1 = scale * jax.random.uniform(k1, wshape, dtype=jnp.float32)
    w2 = scale * jax.random.uniform(k2, wshape, dtype=jnp.float32)
    w3 = scale * jax.random.uniform(k3, wshape, dtype=jnp.float32)
    w4 = scale * jax.random.uniform(k4, wshape, dtype=jnp.float32)

    fwd = jax.jit(lambda x, w1, w2, w3, w4: spectral_conv3d_fast(
        x, w1, w2, w3, w4, modes1, modes2, modes3))
    out = jax.block_until_ready(fwd(x, w1, w2, w3, w4))
    assert out.shape == (B, Co, X, Y, Z)
    assert bool(jnp.all(jnp.isfinite(out)))

    # End-to-end check vs the pure-JAX f32 reference forward.  The only
    # intended difference is the bf16 HBM transfer of the kernel operands.
    ref = jax.block_until_ready(
        _reference_forward(x, w1, w2, w3, w4, modes1, modes2, modes3))
    max_err = float(jnp.max(jnp.abs(out - ref)))
    assert jnp.allclose(out, ref, atol=2e-2, rtol=2e-2), max_err

    # Tight check of the Pallas hot path against an einsum reference using the
    # exact same bf16-quantized, f32-accumulated operands.
    TM = 128
    f32 = jnp.float32
    A = jax.random.normal(ka, (2, Ci, B, TM), f32).astype(jnp.bfloat16)
    Wt = jax.random.normal(kw, (2, Ci, Co, TM), f32).astype(jnp.bfloat16)
    p = _compl_mul_pallas(A, Wt, tco=Co, tm=TM)

    hi = jax.lax.Precision.HIGHEST
    ar, ai = A[0].astype(f32), A[1].astype(f32)
    wr, wi = Wt[0].astype(f32), Wt[1].astype(f32)
    rr = (jnp.einsum("ibm,iom->bom", ar, wr, precision=hi)
          - jnp.einsum("ibm,iom->bom", ai, wi, precision=hi))
    ri = (jnp.einsum("ibm,iom->bom", ar, wi, precision=hi)
          + jnp.einsum("ibm,iom->bom", ai, wr, precision=hi))
    assert jnp.allclose(p[0], rr, atol=1e-3, rtol=1e-3)
    assert jnp.allclose(p[1], ri, atol=1e-3, rtol=1e-3)

    print("KERNEL_OK")
</pallas_src>

<mosaic_0001>
module attributes {stable_mosaic.version = 11 : i64} {
  func.func @_spectral_mul_kernel(%arg0: i32, %arg1: i32, %arg2: memref<2x4x2x256xbf16, #tpu.memory_space<vmem>>, %arg3: memref<2x4x4x256xbf16, #tpu.memory_space<vmem>>, %arg4: memref<2x2x4x256xf32, #tpu.memory_space<vmem>>) attributes {dimension_semantics = [#tpu.dimension_semantics<parallel>, #tpu.dimension_semantics<parallel>], iteration_bounds = array<i64: 1, 1>, scalar_prefetch = 0 : i64, scratch_operands = 0 : i64, tpu.core_type = #tpu.core_type<tc>, window_params = [{transform_indices = @transform_0, window_bounds = array<i64: 2, 4, 2, 256>}, {transform_indices = @transform_1, window_bounds = array<i64: 2, 4, 4, 256>}, {transform_indices = @transform_2, window_bounds = array<i64: 2, 2, 4, 256>}]} {
    %cst = arith.constant 0.000000e+00 : f32
    %0 = vector.broadcast %cst : f32 to vector<2x2x4x256xf32>
    %c0 = arith.constant 0 : index
    %c0_0 = arith.constant 0 : index
    %c0_1 = arith.constant 0 : index
    %c0_2 = arith.constant 0 : index
    %1 = vector.load %arg4[%c0, %c0_0, %c0_1, %c0_2] : memref<2x2x4x256xf32, #tpu.memory_space<vmem>>, vector<2x2x4x256xf32>
    tpu.vector_store %arg4[%c0, %c0_0, %c0_1, %c0_2], %0 {strides = array<i32>} : memref<2x2x4x256xf32, #tpu.memory_space<vmem>>, vector<2x2x4x256xf32>,
    %c0_3 = arith.constant 0 : index
    %c0_4 = arith.constant 0 : index
    %c0_5 = arith.constant 0 : index
    %c0_6 = arith.constant 0 : index
    %2 = vector.load %arg2[%c0_3, %c0_4, %c0_5, %c0_6] : memref<2x4x2x256xbf16, #tpu.memory_space<vmem>>, vector<1x1x2x256xbf16>
    %3 = vector.shape_cast %2 : vector<1x1x2x256xbf16> to vector<2x256xbf16>
    %4 = arith.extf %3 : vector<2x256xbf16> to vector<2x256xf32>
    %5 = vector.shape_cast %4 : vector<2x256xf32> to vector<2x1x256xf32>
    %c1 = arith.constant 1 : index
    %c0_7 = arith.constant 0 : index
    %c0_8 = arith.constant 0 : index
    %c0_9 = arith.constant 0 : index
    %6 = vector.load %arg2[%c1, %c0_7, %c0_8, %c0_9] : memref<2x4x2x256xbf16, #tpu.memory_space<vmem>>, vector<1x1x2x256xbf16>
    %7 = vector.shape_cast %6 : vector<1x1x2x256xbf16> to vector<2x256xbf16>
    %8 = arith.extf %7 : vector<2x256xbf16> to vector<2x256xf32>
    %9 = vector.shape_cast %8 : vector<2x256xf32> to vector<2x1x256xf32>
    %c0_10 = arith.constant 0 : index
    %c0_11 = arith.constant 0 : index
    %c0_12 = arith.constant 0 : index
    %c0_13 = arith.constant 0 : index
    %10 = vector.load %arg3[%c0_10, %c0_11, %c0_12, %c0_13] : memref<2x4x4x256xbf16, #tpu.memory_space<vmem>>, vector<1x1x4x256xbf16>
    %11 = vector.shape_cast %10 : vector<1x1x4x256xbf16> to vector<4x256xbf16>
    %12 = arith.extf %11 : vector<4x256xbf16> to vector<4x256xf32>
    %13 = vector.shape_cast %12 : vector<4x256xf32> to vector<1x4x256xf32>
    %c1_14 = arith.constant 1 : index
    %c0_15 = arith.constant 0 : index
    %c0_16 = arith.constant 0 : index
    %c0_17 = arith.constant 0 : index
    %14 = vector.load %arg3[%c1_14, %c0_15, %c0_16, %c0_17] : memref<2x4x4x256xbf16, #tpu.memory_space<vmem>>, vector<1x1x4x256xbf16>
    %15 = vector.shape_cast %14 : vector<1x1x4x256xbf16> to vector<4x256xbf16>
    %16 = arith.extf %15 : vector<4x256xbf16> to vector<4x256xf32>
    %17 = vector.shape_cast %16 : vector<4x256xf32> to vector<1x4x256xf32>
    %c0_18 = arith.constant 0 : index
    %c0_19 = arith.constant 0 : index
    %c0_20 = arith.constant 0 : index
    %c0_21 = arith.constant 0 : index
    %18 = vector.load %arg4[%c0_18, %c0_19, %c0_20, %c0_21] : memref<2x2x4x256xf32, #tpu.memory_space<vmem>>, vector<1x2x4x256xf32>
    %19 = vector.shape_cast %18 : vector<1x2x4x256xf32> to vector<2x4x256xf32>
    %20 = vector.broadcast %5 : vector<2x1x256xf32> to vector<2x4x256xf32>
    %21 = vector.broadcast %13 : vector<1x4x256xf32> to vector<2x4x256xf32>
    %22 = arith.mulf %20, %21 : vector<2x4x256xf32>
    %23 = vector.broadcast %9 : vector<2x1x256xf32> to vector<2x4x256xf32>
    %24 = vector.broadcast %17 : vector<1x4x256xf32> to vector<2x4x256xf32>
    %25 = arith.mulf %23, %24 : vector<2x4x256xf32>
    %26 = arith.subf %22, %25 : vector<2x4x256xf32>
    %27 = arith.addf %19, %26 : vector<2x4x256xf32>
    %c0_22 = arith.constant 0 : index
    %c0_23 = arith.constant 0 : index
    %c0_24 = arith.constant 0 : index
    %c0_25 = arith.constant 0 : index
    %28 = vector.load %arg4[%c0_22, %c0_23, %c0_24, %c0_25] : memref<2x2x4x256xf32, #tpu.memory_space<vmem>>, vector<1x2x4x256xf32>
    %29 = vector.shape_cast %28 : vector<1x2x4x256xf32> to vector<2x4x256xf32>
    %30 = vector.shape_cast %27 : vector<2x4x256xf32> to vector<1x2x4x256xf32>
    tpu.vector_store %arg4[%c0_22, %c0_23, %c0_24, %c0_25], %30 {strides = array<i32>} : memref<2x2x4x256xf32, #tpu.memory_space<vmem>>, vector<1x2x4x256xf32>,
    %c1_26 = arith.constant 1 : index
    %c0_27 = arith.constant 0 : index
    %c0_28 = arith.constant 0 : index
    %c0_29 = arith.constant 0 : index
    %31 = vector.load %arg4[%c1_26, %c0_27, %c0_28, %c0_29] : memref<2x2x4x256xf32, #tpu.memory_space<vmem>>, vector<1x2x4x256xf32>
    %32 = vector.shape_cast %31 : vector<1x2x4x256xf32> to vector<2x4x256xf32>
    %33 = vector.broadcast %5 : vector<2x1x256xf32> to vector<2x4x256xf32>
    %34 = vector.broadcast %17 : vector<1x4x256xf32> to vector<2x4x256xf32>
    %35 = arith.mulf %33, %34 : vector<2x4x256xf32>
    %36 = vector.broadcast %9 : vector<2x1x256xf32> to vector<2x4x256xf32>
    %37 = vector.broadcast %13 : vector<1x4x256xf32> to vector<2x4x256xf32>
    %38 = arith.mulf %36, %37 : vector<2x4x256xf32>
    %39 = arith.addf %35, %38 : vector<2x4x256xf32>
    %40 = arith.addf %32, %39 : vector<2x4x256xf32>
    %c1_30 = arith.constant 1 : index
    %c0_31 = arith.constant 0 : index
    %c0_32 = arith.constant 0 : index
    %c0_33 = arith.constant 0 : index
    %41 = vector.load %arg4[%c1_30, %c0_31, %c0_32, %c0_33] : memref<2x2x4x256xf32, #tpu.memory_space<vmem>>, vector<1x2x4x256xf32>
    %42 = vector.shape_cast %41 : vector<1x2x4x256xf32> to vector<2x4x256xf32>
    %43 = vector.shape_cast %40 : vector<2x4x256xf32> to vector<1x2x4x256xf32>
    tpu.vector_store %arg4[%c1_30, %c0_31, %c0_32, %c0_33], %43 {strides = array<i32>} : memref<2x2x4x256xf32, #tpu.memory_space<vmem>>, vector<1x2x4x256xf32>,
    %c0_34 = arith.constant 0 : index
    %c1_35 = arith.constant 1 : index
    %c0_36 = arith.constant 0 : index
    %c0_37 = arith.constant 0 : index
    %44 = vector.load %arg2[%c0_34, %c1_35, %c0_36, %c0_37] : memref<2x4x2x256xbf16, #tpu.memory_space<vmem>>, vector<1x1x2x256xbf16>
    %45 = vector.shape_cast %44 : vector<1x1x2x256xbf16> to vector<2x256xbf16>
    %46 = arith.extf %45 : vector<2x256xbf16> to vector<2x256xf32>
    %47 = vector.shape_cast %46 : vector<2x256xf32> to vector<2x1x256xf32>
    %c1_38 = arith.constant 1 : index
    %c1_39 = arith.constant 1 : index
    %c0_40 = arith.constant 0 : index
    %c0_41 = arith.constant 0 : index
    %48 = vector.load %arg2[%c1_38, %c1_39, %c0_40, %c0_41] : memref<2x4x2x256xbf16, #tpu.memory_space<vmem>>, vector<1x1x2x256xbf16>
    %49 = vector.shape_cast %48 : vector<1x1x2x256xbf16> to vector<2x256xbf16>
    %50 = arith.extf %49 : vector<2x256xbf16> to vector<2x256xf32>
    %51 = vector.shape_cast %50 : vector<2x256xf32> to vector<2x1x256xf32>
    %c0_42 = arith.constant 0 : index
    %c1_43 = arith.constant 1 : index
    %c0_44 = arith.constant 0 : index
    %c0_45 = arith.constant 0 : index
    %52 = vector.load %arg3[%c0_42, %c1_43, %c0_44, %c0_45] : memref<2x4x4x256xbf16, #tpu.memory_space<vmem>>, vector<1x1x4x256xbf16>
    %53 = vector.shape_cast %52 : vector<1x1x4x256xbf16> to vector<4x256xbf16>
    %54 = arith.extf %53 : vector<4x256xbf16> to vector<4x256xf32>
    %55 = vector.shape_cast %54 : vector<4x256xf32> to vector<1x4x256xf32>
    %c1_46 = arith.constant 1 : index
    %c1_47 = arith.constant 1 : index
    %c0_48 = arith.constant 0 : index
    %c0_49 = arith.constant 0 : index
    %56 = vector.load %arg3[%c1_46, %c1_47, %c0_48, %c0_49] : memref<2x4x4x256xbf16, #tpu.memory_space<vmem>>, vector<1x1x4x256xbf16>
    %57 = vector.shape_cast %56 : vector<1x1x4x256xbf16> to vector<4x256xbf16>
    %58 = arith.extf %57 : vector<4x256xbf16> to vector<4x256xf32>
    %59 = vector.shape_cast %58 : vector<4x256xf32> to vector<1x4x256xf32>
    %c0_50 = arith.constant 0 : index
    %c0_51 = arith.constant 0 : index
    %c0_52 = arith.constant 0 : index
    %c0_53 = arith.constant 0 : index
    %60 = vector.load %arg4[%c0_50, %c0_51, %c0_52, %c0_53] : memref<2x2x4x256xf32, #tpu.memory_space<vmem>>, vector<1x2x4x256xf32>
    %61 = vector.shape_cast %60 : vector<1x2x4x256xf32> to vector<2x4x256xf32>
    %62 = vector.broadcast %47 : vector<2x1x256xf32> to vector<2x4x256xf32>
    %63 = vector.broadcast %55 : vector<1x4x256xf32> to vector<2x4x256xf32>
    %64 = arith.mulf %62, %63 : vector<2x4x256xf32>
    %65 = vector.broadcast %51 : vector<2x1x256xf32> to vector<2x4x256xf32>
    %66 = vector.broadcast %59 : vector<1x4x256xf32> to vector<2x4x256xf32>
    %67 = arith.mulf %65, %66 : vector<2x4x256xf32>
    %68 = arith.subf %64, %67 : vector<2x4x256xf32>
    %69 = arith.addf %61, %68 : vector<2x4x256xf32>
    %c0_54 = arith.constant 0 : index
    %c0_55 = arith.constant 0 : index
    %c0_56 = arith.constant 0 : index
    %c0_57 = arith.constant 0 : index
    %70 = vector.load %arg4[%c0_54, %c0_55, %c0_56, %c0_57] : memref<2x2x4x256xf32, #tpu.memory_space<vmem>>, vector<1x2x4x256xf32>
    %71 = vector.shape_cast %70 : vector<1x2x4x256xf32> to vector<2x4x256xf32>
    %72 = vector.shape_cast %69 : vector<2x4x256xf32> to vector<1x2x4x256xf32>
    tpu.vector_store %arg4[%c0_54, %c0_55, %c0_56, %c0_57], %72 {strides = array<i32>} : memref<2x2x4x256xf32, #tpu.memory_space<vmem>>, vector<1x2x4x256xf32>,
    %c1_58 = arith.constant 1 : index
    %c0_59 = arith.constant 0 : index
    %c0_60 = arith.constant 0 : index
    %c0_61 = arith.constant 0 : index
    %73 = vector.load %arg4[%c1_58, %c0_59, %c0_60, %c0_61] : memref<2x2x4x256xf32, #tpu.memory_space<vmem>>, vector<1x2x4x256xf32>
    %74 = vector.shape_cast %73 : vector<1x2x4x256xf32> to vector<2x4x256xf32>
    %75 = vector.broadcast %47 : vector<2x1x256xf32> to vector<2x4x256xf32>
    %76 = vector.broadcast %59 : vector<1x4x256xf32> to vector<2x4x256xf32>
    %77 = arith.mulf %75, %76 : vector<2x4x256xf32>
    %78 = vector.broadcast %51 : vector<2x1x256xf32> to vector<2x4x256xf32>
    %79 = vector.broadcast %55 : vector<1x4x256xf32> to vector<2x4x256xf32>
    %80 = arith.mulf %78, %79 : vector<2x4x256xf32>
    %81 = arith.addf %77, %80 : vector<2x4x256xf32>
    %82 = arith.addf %74, %81 : vector<2x4x256xf32>
    %c1_62 = arith.constant 1 : index
    %c0_63 = arith.constant 0 : index
    %c0_64 = arith.constant 0 : index
    %c0_65 = arith.constant 0 : index
    %83 = vector.load %arg4[%c1_62, %c0_63, %c0_64, %c0_65] : memref<2x2x4x256xf32, #tpu.memory_space<vmem>>, vector<1x2x4x256xf32>
    %84 = vector.shape_cast %83 : vector<1x2x4x256xf32> to vector<2x4x256xf32>
    %85 = vector.shape_cast %82 : vector<2x4x256xf32> to vector<1x2x4x256xf32>
    tpu.vector_store %arg4[%c1_62, %c0_63, %c0_64, %c0_65], %85 {strides = array<i32>} : memref<2x2x4x256xf32, #tpu.memory_space<vmem>>, vector<1x2x4x256xf32>,
    %c0_66 = arith.constant 0 : index
    %c2 = arith.constant 2 : index
    %c0_67 = arith.constant 0 : index
    %c0_68 = arith.constant 0 : index
    %86 = vector.load %arg2[%c0_66, %c2, %c0_67, %c0_68] : memref<2x4x2x256xbf16, #tpu.memory_space<vmem>>, vector<1x1x2x256xbf16>
    %87 = vector.shape_cast %86 : vector<1x1x2x256xbf16> to vector<2x256xbf16>
    %88 = arith.extf %87 : vector<2x256xbf16> to vector<2x256xf32>
    %89 = vector.shape_cast %88 : vector<2x256xf32> to vector<2x1x256xf32>
    %c1_69 = arith.constant 1 : index
    %c2_70 = arith.constant 2 : index
    %c0_71 = arith.constant 0 : index
    %c0_72 = arith.constant 0 : index
    %90 = vector.load %arg2[%c1_69, %c2_70, %c0_71, %c0_72] : memref<2x4x2x256xbf16, #tpu.memory_space<vmem>>, vector<1x1x2x256xbf16>
    %91 = vector.shape_cast %90 : vector<1x1x2x256xbf16> to vector<2x256xbf16>
    %92 = arith.extf %91 : vector<2x256xbf16> to vector<2x256xf32>
    %93 = vector.shape_cast %92 : vector<2x256xf32> to vector<2x1x256xf32>
    %c0_73 = arith.constant 0 : index
    %c2_74 = arith.constant 2 : index
    %c0_75 = arith.constant 0 : index
    %c0_76 = arith.constant 0 : index
    %94 = vector.load %arg3[%c0_73, %c2_74, %c0_75, %c0_76] : memref<2x4x4x256xbf16, #tpu.memory_space<vmem>>, vector<1x1x4x256xbf16>
    %95 = vector.shape_cast %94 : vector<1x1x4x256xbf16> to vector<4x256xbf16>
    %96 = arith.extf %95 : vector<4x256xbf16> to vector<4x256xf32>
    %97 = vector.shape_cast %96 : vector<4x256xf32> to vector<1x4x256xf32>
    %c1_77 = arith.constant 1 : index
    %c2_78 = arith.constant 2 : index
    %c0_79 = arith.constant 0 : index
    %c0_80 = arith.constant 0 : index
    %98 = vector.load %arg3[%c1_77, %c2_78, %c0_79, %c0_80] : memref<2x4x4x256xbf16, #tpu.memory_space<vmem>>, vector<1x1x4x256xbf16>
    %99 = vector.shape_cast %98 : vector<1x1x4x256xbf16> to vector<4x256xbf16>
    %100 = arith.extf %99 : vector<4x256xbf16> to vector<4x256xf32>
    %101 = vector.shape_cast %100 : vector<4x256xf32> to vector<1x4x256xf32>
    %c0_81 = arith.constant 0 : index
    %c0_82 = arith.constant 0 : index
    %c0_83 = arith.constant 0 : index
    %c0_84 = arith.constant 0 : index
    %102 = vector.load %arg4[%c0_81, %c0_82, %c0_83, %c0_84] : memref<2x2x4x256xf32, #tpu.memory_space<vmem>>, vector<1x2x4x256xf32>
    %103 = vector.shape_cast %102 : vector<1x2x4x256xf32> to vector<2x4x256xf32>
    %104 = vector.broadcast %89 : vector<2x1x256xf32> to vector<2x4x256xf32>
    %105 = vector.broadcast %97 : vector<1x4x256xf32> to vector<2x4x256xf32>
    %106 = arith.mulf %104, %105 : vector<2x4x256xf32>
    %107 = vector.broadcast %93 : vector<2x1x256xf32> to vector<2x4x256xf32>
    %108 = vector.broadcast %101 : vector<1x4x256xf32> to vector<2x4x256xf32>
    %109 = arith.mulf %107, %108 : vector<2x4x256xf32>
    %110 = arith.subf %106, %109 : vector<2x4x256xf32>
    %111 = arith.addf %103, %110 : vector<2x4x256xf32>
    %c0_85 = arith.constant 0 : index
    %c0_86 = arith.constant 0 : index
    %c0_87 = arith.constant 0 : index
    %c0_88 = arith.constant 0 : index
    %112 = vector.load %arg4[%c0_85, %c0_86, %c0_87, %c0_88] : memref<2x2x4x256xf32, #tpu.memory_space<vmem>>, vector<1x2x4x256xf32>
    %113 = vector.shape_cast %112 : vector<1x2x4x256xf32> to vector<2x4x256xf32>
    %114 = vector.shape_cast %111 : vector<2x4x256xf32> to vector<1x2x4x256xf32>
    tpu.vector_store %arg4[%c0_85, %c0_86, %c0_87, %c0_88], %114 {strides = array<i32>} : memref<2x2x4x256xf32, #tpu.memory_space<vmem>>, vector<1x2x4x256xf32>,
    %c1_89 = arith.constant 1 : index
    %c0_90 = arith.constant 0 : index
    %c0_91 = arith.constant 0 : index
    %c0_92 = arith.constant 0 : index
    %115 = vector.load %arg4[%c1_89, %c0_90, %c0_91, %c0_92] : memref<2x2x4x256xf32, #tpu.memory_space<vmem>>, vector<1x2x4x256xf32>
    %116 = vector.shape_cast %115 : vector<1x2x4x256xf32> to vector<2x4x256xf32>
    %117 = vector.broadcast %89 : vector<2x1x256xf32> to vector<2x4x256xf32>
    %118 = vector.broadcast %101 : vector<1x4x256xf32> to vector<2x4x256xf32>
    %119 = arith.mulf %117, %118 : vector<2x4x256xf32>
    %120 = vector.broadcast %93 : vector<2x1x256xf32> to vector<2x4x256xf32>
    %121 = vector.broadcast %97 : vector<1x4x256xf32> to vector<2x4x256xf32>
    %122 = arith.mulf %120, %121 : vector<2x4x256xf32>
    %123 = arith.addf %119, %122 : vector<2x4x256xf32>
    %124 = arith.addf %116, %123 : vector<2x4x256xf32>
    %c1_93 = arith.constant 1 : index
    %c0_94 = arith.constant 0 : index
    %c0_95 = arith.constant 0 : index
    %c0_96 = arith.constant 0 : index
    %125 = vector.load %arg4[%c1_93, %c0_94, %c0_95, %c0_96] : memref<2x2x4x256xf32, #tpu.memory_space<vmem>>, vector<1x2x4x256xf32>
    %126 = vector.shape_cast %125 : vector<1x2x4x256xf32> to vector<2x4x256xf32>
    %127 = vector.shape_cast %124 : vector<2x4x256xf32> to vector<1x2x4x256xf32>
    tpu.vector_store %arg4[%c1_93, %c0_94, %c0_95, %c0_96], %127 {strides = array<i32>} : memref<2x2x4x256xf32, #tpu.memory_space<vmem>>, vector<1x2x4x256xf32>,
    %c0_97 = arith.constant 0 : index
    %c3 = arith.constant 3 : index
    %c0_98 = arith.constant 0 : index
    %c0_99 = arith.constant 0 : index
    %128 = vector.load %arg2[%c0_97, %c3, %c0_98, %c0_99] : memref<2x4x2x256xbf16, #tpu.memory_space<vmem>>, vector<1x1x2x256xbf16>
    %129 = vector.shape_cast %128 : vector<1x1x2x256xbf16> to vector<2x256xbf16>
    %130 = arith.extf %129 : vector<2x256xbf16> to vector<2x256xf32>
    %131 = vector.shape_cast %130 : vector<2x256xf32> to vector<2x1x256xf32>
    %c1_100 = arith.constant 1 : index
    %c3_101 = arith.constant 3 : index
    %c0_102 = arith.constant 0 : index
    %c0_103 = arith.constant 0 : index
    %132 = vector.load %arg2[%c1_100, %c3_101, %c0_102, %c0_103] : memref<2x4x2x256xbf16, #tpu.memory_space<vmem>>, vector<1x1x2x256xbf16>
    %133 = vector.shape_cast %132 : vector<1x1x2x256xbf16> to vector<2x256xbf16>
    %134 = arith.extf %133 : vector<2x256xbf16> to vector<2x256xf32>
    %135 = vector.shape_cast %134 : vector<2x256xf32> to vector<2x1x256xf32>
    %c0_104 = arith.constant 0 : index
    %c3_105 = arith.constant 3 : index
    %c0_106 = arith.constant 0 : index
    %c0_107 = arith.constant 0 : index
    %136 = vector.load %arg3[%c0_104, %c3_105, %c0_106, %c0_107] : memref<2x4x4x256xbf16, #tpu.memory_space<vmem>>, vector<1x1x4x256xbf16>
    %137 = vector.shape_cast %136 : vector<1x1x4x256xbf16> to vector<4x256xbf16>
    %138 = arith.extf %137 : vector<4x256xbf16> to vector<4x256xf32>
    %139 = vector.shape_cast %138 : vector<4x256xf32> to vector<1x4x256xf32>
    %c1_108 = arith.constant 1 : index
    %c3_109 = arith.constant 3 : index
    %c0_110 = arith.constant 0 : index
    %c0_111 = arith.constant 0 : index
    %140 = vector.load %arg3[%c1_108, %c3_109, %c0_110, %c0_111] : memref<2x4x4x256xbf16, #tpu.memory_space<vmem>>, vector<1x1x4x256xbf16>
    %141 = vector.shape_cast %140 : vector<1x1x4x256xbf16> to vector<4x256xbf16>
    %142 = arith.extf %141 : vector<4x256xbf16> to vector<4x256xf32>
    %143 = vector.shape_cast %142 : vector<4x256xf32> to vector<1x4x256xf32>
    %c0_112 = arith.constant 0 : index
    %c0_113 = arith.constant 0 : index
    %c0_114 = arith.constant 0 : index
    %c0_115 = arith.constant 0 : index
    %144 = vector.load %arg4[%c0_112, %c0_113, %c0_114, %c0_115] : memref<2x2x4x256xf32, #tpu.memory_space<vmem>>, vector<1x2x4x256xf32>
    %145 = vector.shape_cast %144 : vector<1x2x4x256xf32> to vector<2x4x256xf32>
    %146 = vector.broadcast %131 : vector<2x1x256xf32> to vector<2x4x256xf32>
    %147 = vector.broadcast %139 : vector<1x4x256xf32> to vector<2x4x256xf32>
    %148 = arith.mulf %146, %147 : vector<2x4x256xf32>
    %149 = vector.broadcast %135 : vector<2x1x256xf32> to vector<2x4x256xf32>
    %150 = vector.broadcast %143 : vector<1x4x256xf32> to vector<2x4x256xf32>
    %151 = arith.mulf %149, %150 : vector<2x4x256xf32>
    %152 = arith.subf %148, %151 : vector<2x4x256xf32>
    %153 = arith.addf %145, %152 : vector<2x4x256xf32>
    %c0_116 = arith.constant 0 : index
    %c0_117 = arith.constant 0 : index
    %c0_118 = arith.constant 0 : index
    %c0_119 = arith.constant 0 : index
    %154 = vector.load %arg4[%c0_116, %c0_117, %c0_118, %c0_119] : memref<2x2x4x256xf32, #tpu.memory_space<vmem>>, vector<1x2x4x256xf32>
    %155 = vector.shape_cast %154 : vector<1x2x4x256xf32> to vector<2x4x256xf32>
    %156 = vector.shape_cast %153 : vector<2x4x256xf32> to vector<1x2x4x256xf32>
    tpu.vector_store %arg4[%c0_116, %c0_117, %c0_118, %c0_119], %156 {strides = array<i32>} : memref<2x2x4x256xf32, #tpu.memory_space<vmem>>, vector<1x2x4x256xf32>,
    %c1_120 = arith.constant 1 : index
    %c0_121 = arith.constant 0 : index
    %c0_122 = arith.constant 0 : index
    %c0_123 = arith.constant 0 : index
    %157 = vector.load %arg4[%c1_120, %c0_121, %c0_122, %c0_123] : memref<2x2x4x256xf32, #tpu.memory_space<vmem>>, vector<1x2x4x256xf32>
    %158 = vector.shape_cast %157 : vector<1x2x4x256xf32> to vector<2x4x256xf32>
    %159 = vector.broadcast %131 : vector<2x1x256xf32> to vector<2x4x256xf32>
    %160 = vector.broadcast %143 : vector<1x4x256xf32> to vector<2x4x256xf32>
    %161 = arith.mulf %159, %160 : vector<2x4x256xf32>
    %162 = vector.broadcast %135 : vector<2x1x256xf32> to vector<2x4x256xf32>
    %163 = vector.broadcast %139 : vector<1x4x256xf32> to vector<2x4x256xf32>
    %164 = arith.mulf %162, %163 : vector<2x4x256xf32>
    %165 = arith.addf %161, %164 : vector<2x4x256xf32>
    %166 = arith.addf %158, %165 : vector<2x4x256xf32>
    %c1_124 = arith.constant 1 : index
    %c0_125 = arith.constant 0 : index
    %c0_126 = arith.constant 0 : index
    %c0_127 = arith.constant 0 : index
    %167 = vector.load %arg4[%c1_124, %c0_125, %c0_126, %c0_127] : memref<2x2x4x256xf32, #tpu.memory_space<vmem>>, vector<1x2x4x256xf32>
    %168 = vector.shape_cast %167 : vector<1x2x4x256xf32> to vector<2x4x256xf32>
    %169 = vector.shape_cast %166 : vector<2x4x256xf32> to vector<1x2x4x256xf32>
    tpu.vector_store %arg4[%c1_124, %c0_125, %c0_126, %c0_127], %169 {strides = array<i32>} : memref<2x2x4x256xf32, #tpu.memory_space<vmem>>, vector<1x2x4x256xf32>,
    return
  }
  func.func @transform_0(%arg0: i32, %arg1: i32) -> (i32, i32, i32, i32) {
    %c0_i32 = arith.constant 0 : i32
    %c0_i32_0 = arith.constant 0 : i32
    %c0_i32_1 = arith.constant 0 : i32
    %c0_i32_2 = arith.constant 0 : i32
    return %c0_i32, %c0_i32_0, %c0_i32_1, %arg0 : i32, i32, i32, i32
  }
  func.func @transform_1(%arg0: i32, %arg1: i32) -> (i32, i32, i32, i32) {
    %c0_i32 = arith.constant 0 : i32
    %c0_i32_0 = arith.constant 0 : i32
    %c0_i32_1 = arith.constant 0 : i32
    return %c0_i32, %c0_i32_0, %arg1, %arg0 : i32, i32, i32, i32
  }
  func.func @transform_2(%arg0: i32, %arg1: i32) -> (i32, i32, i32, i32) {
    %c0_i32 = arith.constant 0 : i32
    %c0_i32_0 = arith.constant 0 : i32
    %c0_i32_1 = arith.constant 0 : i32
    return %c0_i32, %c0_i32_0, %arg1, %arg0 : i32, i32, i32, i32
  }
}

</mosaic_0001>

<llo_original>
// kernel: squeeze.10
$region0: #{squeeze.10}
  %s0 = inlined_call_operand.vmem [shape: f32[1,2,4,256], index: 0, kind: input, shape index: {}]
  %s1 = inlined_call_operand.vmem [shape: f32[2,4,4,4,4,4], index: 1, kind: output, shape index: {}]
  $region1: #{squeeze.10} parent=0
    #allocation0 [shape = 'u8[524288]{0}', space=vmem, size = 0x80000, scoped, tag = 'scoped mem for output reshape']
    #allocation1 [shape = 'u8[16384]{0}', space=vmem, size = 0x4000, scoped, tag = 'scoped mem for input reshape']
    %s3 = sshll.u32 1, 4
    %s4 = ssub.s32 %s3, 1
    %s5 = smul.addr 4, 3
    %s6 = scalar_lea.vmem %s0, %s5
    %v7 = vld [vmem:[%s6] sm:%s4]
    %s8 = scalar_lea.vmem [#allocation1], 24
    %9 = vst [vmem:[%s8] sm:%s4] %v7
    %s10 = smul.addr 4, 2
    %s11 = scalar_lea.vmem %s0, %s10
    %v12 = vld [vmem:[%s11] sm:%s4]
    %s13 = scalar_lea.vmem [#allocation1], 16
    %14 = vst [vmem:[%s13] sm:%s4] %v12
    %s15 = scalar_lea.vmem %s0, 4
    %v16 = vld [vmem:[%s15] sm:%s4]
    %s17 = scalar_lea.vmem [#allocation1], 8
    %18 = vst [vmem:[%s17] sm:%s4] %v16
    %v19 = vld [vmem:[%s0] sm:%s4]
    %20 = vst [vmem:[#allocation1] sm:%s4] %v19
    %v21 = vld [vmem:[#allocation1] sm:$0xf]
    %vm22 = vcmask 31744
    %23 = vst.msk [vmem:[#allocation0] sm:$0x1] %vm22, %v21
    %s24 = scalar_lea.vmem [#allocation0], 127
    %25 = vst.msk [vmem:[%s24] sm:$0x2] %vm22, %v21
    %s26 = scalar_lea.vmem [#allocation0], 254
    %27 = vst.msk [vmem:[%s26] sm:$0x4] %vm22, %v21
    %s28 = scalar_lea.vmem [#allocation0], 381
    %29 = vst.msk [vmem:[%s28] sm:$0x8] %vm22, %v21
    %s30 = scalar_lea.vmem [#allocation1], 8
    %v31 = vld [vmem:[%s30] sm:$0xf]
    %vm32 = vcmask 31744
    %s33 = scalar_lea.vmem [#allocation0], 64
    %34 = vst.msk [vmem:[%s33] sm:$0x1] %vm32, %v31
    %s35 = scalar_lea.vmem [#allocation0], 191
    %36 = vst.msk [vmem:[%s35] sm:$0x2] %vm32, %v31
    %s37 = scalar_lea.vmem [#allocation0], 318
    %38 = vst.msk [vmem:[%s37] sm:$0x4] %vm32, %v31
    %s39 = scalar_lea.vmem [#allocation0], 445
    %40 = vst.msk [vmem:[%s39] sm:$0x8] %vm32, %v31
    %s41 = scalar_lea.vmem [#allocation1], 16
    %v42 = vld [vmem:[%s41] sm:$0xf]
    %vm43 = vcmask 31744
    %s44 = scalar_lea.vmem [#allocation0], 512
    %45 = vst.msk [vmem:[%s44] sm:$0x1] %vm43, %v42
    %s46 = scalar_lea.vmem [#allocation0], 639
    %47 = vst.msk [vmem:[%s46] sm:$0x2] %vm43, %v42
    %s48 = scalar_lea.vmem [#allocation0], 766
    %49 = vst.msk [vmem:[%s48] sm:$0x4] %vm43, %v42
    %s50 = scalar_lea.vmem [#allocation0], 893
    %51 = vst.msk [vmem:[%s50] sm:$0x8] %vm43, %v42
    %s52 = scalar_lea.vmem [#allocation1], 24
    %v53 = vld [vmem:[%s52] sm:$0xf]
    %vm54 = vcmask 31744
    %s55 = scalar_lea.vmem [#allocation0], 576
    %56 = vst.msk [vmem:[%s55] sm:$0x1] %vm54, %v53
    %s57 = scalar_lea.vmem [#allocation0], 703
    %58 = vst.msk [vmem:[%s57] sm:$0x2] %vm54, %v53
    %s59 = scalar_lea.vmem [#allocation0], 830
    %60 = vst.msk [vmem:[%s59] sm:$0x4] %vm54, %v53
    %s61 = scalar_lea.vmem [#allocation0], 957
    %62 = vst.msk [vmem:[%s61] sm:$0x8] %vm54, %v53
    %v63 = vld.sshfl [vmem:[#allocation1] sm:$0xff pattern:$0xba983210]
    %64 = vrot.lane.b32.xlu0 %v63, 124
    %v65 = vpop.permute.xlu0 %64
    %vm66 = vcmask 31744
    %s67 = scalar_lea.vmem [#allocation0], 1
    %68 = vst.msk [vmem:[%s67] sm:$0x1] %vm66, %v65
    %s69 = scalar_lea.vmem [#allocation0], 128
    %70 = vst.msk [vmem:[%s69] sm:$0x2] %vm66, %v65
    %s71 = scalar_lea.vmem [#allocation0], 255
    %72 = vst.msk [vmem:[%s71] sm:$0x4] %vm66, %v65
    %s73 = scalar_lea.vmem [#allocation0], 382
    %74 = vst.msk [vmem:[%s73] sm:$0x8] %vm66, %v65
    %s75 = scalar_lea.vmem [#allocation0], 61
    %76 = vst.msk [vmem:[%s75] sm:$0x10] %vm66, %v65
    %s77 = scalar_lea.vmem [#allocation0], 188
    %78 = vst.msk [vmem:[%s77] sm:$0x20] %vm66, %v65
    %s79 = scalar_lea.vmem [#allocation0], 315
    %80 = vst.msk [vmem:[%s79] sm:$0x40] %vm66, %v65
    %s81 = scalar_lea.vmem [#allocation0], 442
    %82 = vst.msk [vmem:[%s81] sm:$0x80] %vm66, %v65
    %s83 = scalar_lea.vmem [#allocation1], 16
    %v84 = vld.sshfl [vmem:[%s83] sm:$0xff pattern:$0xba983210]
    %85 = vrot.lane.b32.xlu0 %v84, 124
    %v86 = vpop.permute.xlu0 %85
    %vm87 = vcmask 31744
    %s88 = scalar_lea.vmem [#allocation0], 513
    %89 = vst.msk [vmem:[%s88] sm:$0x1] %vm87, %v86
    %s90 = scalar_lea.vmem [#allocation0], 640
    %91 = vst.msk [vmem:[%s90] sm:$0x2] %vm87, %v86
    %s92 = scalar_lea.vmem [#allocation0], 767
    %93 = vst.msk [vmem:[%s92] sm:$0x4] %vm87, %v86
    %s94 = scalar_lea.vmem [#allocation0], 894
    %95 = vst.msk [vmem:[%s94] sm:$0x8] %vm87, %v86
    %s96 = scalar_lea.vmem [#allocation0], 573
    %97 = vst.msk [vmem:[%s96] sm:$0x10] %vm87, %v86
    %s98 = scalar_lea.vmem [#allocation0], 700
    %99 = vst.msk [vmem:[%s98] sm:$0x20] %vm87, %v86
    %s100 = scalar_lea.vmem [#allocation0], 827
    %101 = vst.msk [vmem:[%s100] sm:$0x40] %vm87, %v86
    %s102 = scalar_lea.vmem [#allocation0], 954
    %103 = vst.msk [vmem:[%s102] sm:$0x80] %vm87, %v86
    %v104 = vld.sshfl [vmem:[#allocation1] sm:$0xff pattern:$0xba983210]
    %105 = vrot.lane.b32.xlu0 %v104, 120
    %v106 = vpop.permute.xlu0 %105
    %vm107 = vcmask 31744
    %s108 = scalar_lea.vmem [#allocation0], 2
    %109 = vst.msk [vmem:[%s108] sm:$0x1] %vm107, %v106
    %s110 = scalar_lea.vmem [#allocation0], 129
    %111 = vst.msk [vmem:[%s110] sm:$0x2] %vm107, %v106
    %s112 = scalar_lea.vmem [#allocation0], 256
    %113 = vst.msk [vmem:[%s112] sm:$0x4] %vm107, %v106
    %s114 = scalar_lea.vmem [#allocation0], 383
    %115 = vst.msk [vmem:[%s114] sm:$0x8] %vm107, %v106
    %s116 = scalar_lea.vmem [#allocation0], 62
    %117 = vst.msk [vmem:[%s116] sm:$0x10] %vm107, %v106
    %s118 = scalar_lea.vmem [#allocation0], 189
    %119 = vst.msk [vmem:[%s118] sm:$0x20] %vm107, %v106
    %s120 = scalar_lea.vmem [#allocation0], 316
    %121 = vst.msk [vmem:[%s120] sm:$0x40] %vm107, %v106
    %s122 = scalar_lea.vmem [#allocation0], 443
    %123 = vst.msk [vmem:[%s122] sm:$0x80] %vm107, %v106
    %s124 = scalar_lea.vmem [#allocation1], 16
    %v125 = vld.sshfl [vmem:[%s124] sm:$0xff pattern:$0xba983210]
    %126 = vrot.lane.b32.xlu0 %v125, 120
    %v127 = vpop.permute.xlu0 %126
    %vm128 = vcmask 31744
    %s129 = scalar_lea.vmem [#allocation0], 514
    %130 = vst.msk [vmem:[%s129] sm:$0x1] %vm128, %v127
    %s131 = scalar_lea.vmem [#allocation0], 641
    %132 = vst.msk [vmem:[%s131] sm:$0x2] %vm128, %v127
    %s133 = scalar_lea.vmem [#allocation0], 768
    %134 = vst.msk [vmem:[%s133] sm:$0x4] %vm128, %v127
    %s135 = scalar_lea.vmem [#allocation0], 895
    %136 = vst.msk [vmem:[%s135] sm:$0x8] %vm128, %v127
    %s137 = scalar_lea.vmem [#allocation0], 574
    %138 = vst.msk [vmem:[%s137] sm:$0x10] %vm128, %v127
    %s139 = scalar_lea.vmem [#allocation0], 701
    %140 = vst.msk [vmem:[%s139] sm:$0x20] %vm128, %v127
    %s141 = scalar_lea.vmem [#allocation0], 828
    %142 = vst.msk [vmem:[%s141] sm:$0x40] %vm128, %v127
    %s143 = scalar_lea.vmem [#allocation0], 955
    %144 = vst.msk [vmem:[%s143] sm:$0x80] %vm128, %v127
    %v145 = vld.sshfl [vmem:[#allocation1] sm:$0xff pattern:$0xba983210]
    %146 = vrot.lane.b32.xlu0 %v145, 116
    %v147 = vpop.permute.xlu0 %146
    %vm148 = vcmask 31744
    %s149 = scalar_lea.vmem [#allocation0], 3
    %150 = vst.msk [vmem:[%s149] sm:$0x1] %vm148, %v147
    %s151 = scalar_lea.vmem [#allocation0], 130
    %152 = vst.msk [vmem:[%s151] sm:$0x2] %vm148, %v147
    %s153 = scalar_lea.vmem [#allocation0], 257
    %154 = vst.msk [vmem:[%s153] sm:$0x4] %vm148, %v147
    %s155 = scalar_lea.vmem [#allocation0], 384
    %156 = vst.msk [vmem:[%s155] sm:$0x8] %vm148, %v147
    %s157 = scalar_lea.vmem [#allocation0], 63
    %158 = vst.msk [vmem:[%s157] sm:$0x10] %vm148, %v147
    %s159 = scalar_lea.vmem [#allocation0], 190
    %160 = vst.msk [vmem:[%s159] sm:$0x20] %vm148, %v147
    %s161 = scalar_lea.vmem [#allocation0], 317
    %162 = vst.msk [vmem:[%s161] sm:$0x40] %vm148, %v147
    %s163 = scalar_lea.vmem [#allocation0], 444
    %164 = vst.msk [vmem:[%s163] sm:$0x80] %vm148, %v147
    %s165 = scalar_lea.vmem [#allocation1], 16
    %v166 = vld.sshfl [vmem:[%s165] sm:$0xff pattern:$0xba983210]
    %167 = vrot.lane.b32.xlu0 %v166, 116
    %v168 = vpop.permute.xlu0 %167
    %vm169 = vcmask 31744
    %s170 = scalar_lea.vmem [#allocation0], 515
    %171 = vst.msk [vmem:[%s170] sm:$0x1] %vm169, %v168
    %s172 = scalar_lea.vmem [#allocation0], 642
    %173 = vst.msk [vmem:[%s172] sm:$0x2] %vm169, %v168
    %s174 = scalar_lea.vmem [#allocation0], 769
    %175 = vst.msk [vmem:[%s174] sm:$0x4] %vm169, %v168
    %s176 = scalar_lea.vmem [#allocation0], 896
    %177 = vst.msk [vmem:[%s176] sm:$0x8] %vm169, %v168
    %s178 = scalar_lea.vmem [#allocation0], 575
    %179 = vst.msk [vmem:[%s178] sm:$0x10] %vm169, %v168
    %s180 = scalar_lea.vmem [#allocation0], 702
    %181 = vst.msk [vmem:[%s180] sm:$0x20] %vm169, %v168
    %s182 = scalar_lea.vmem [#allocation0], 829
    %183 = vst.msk [vmem:[%s182] sm:$0x40] %vm169, %v168
    %s184 = scalar_lea.vmem [#allocation0], 956
    %185 = vst.msk [vmem:[%s184] sm:$0x80] %vm169, %v168
    %v186 = vld.sshfl [vmem:[#allocation1] sm:$0xff pattern:$0xba983210]
    %187 = vrot.lane.b32.xlu0 %v186, 112
    %v188 = vpop.permute.xlu0 %187
    %vm189 = vcmask 31744
    %s190 = scalar_lea.vmem [#allocation0], 8
    %191 = vst.msk [vmem:[%s190] sm:$0x1] %vm189, %v188
    %s192 = scalar_lea.vmem [#allocation0], 135
    %193 = vst.msk [vmem:[%s192] sm:$0x2] %vm189, %v188
    %s194 = scalar_lea.vmem [#allocation0], 262
    %195 = vst.msk [vmem:[%s194] sm:$0x4] %vm189, %v188
    %s196 = scalar_lea.vmem [#allocation0], 389
    %197 = vst.msk [vmem:[%s196] sm:$0x8] %vm189, %v188
    %s198 = scalar_lea.vmem [#allocation0], 68
    %199 = vst.msk [vmem:[%s198] sm:$0x10] %vm189, %v188
    %s200 = scalar_lea.vmem [#allocation0], 195
    %201 = vst.msk [vmem:[%s200] sm:$0x20] %vm189, %v188
    %s202 = scalar_lea.vmem [#allocation0], 322
    %203 = vst.msk [vmem:[%s202] sm:$0x40] %vm189, %v188
    %s204 = scalar_lea.vmem [#allocation0], 449
    %205 = vst.msk [vmem:[%s204] sm:$0x80] %vm189, %v188
    %s206 = scalar_lea.vmem [#allocation1], 16
    %v207 = vld.sshfl [vmem:[%s206] sm:$0xff pattern:$0xba983210]
    %208 = vrot.lane.b32.xlu0 %v207, 112
    %v209 = vpop.permute.xlu0 %208
    %vm210 = vcmask 31744
    %s211 = scalar_lea.vmem [#allocation0], 520
    %212 = vst.msk [vmem:[%s211] sm:$0x1] %vm210, %v209
    %s213 = scalar_lea.vmem [#allocation0], 647
    %214 = vst.msk [vmem:[%s213] sm:$0x2] %vm210, %v209
    %s215 = scalar_lea.vmem [#allocation0], 774
    %216 = vst.msk [vmem:[%s215] sm:$0x4] %vm210, %v209
    %s217 = scalar_lea.vmem [#allocation0], 901
    %218 = vst.msk [vmem:[%s217] sm:$0x8] %vm210, %v209
    %s219 = scalar_lea.vmem [#allocation0], 580
    %220 = vst.msk [vmem:[%s219] sm:$0x10] %vm210, %v209
    %s221 = scalar_lea.vmem [#allocation0], 707
    %222 = vst.msk [vmem:[%s221] sm:$0x20] %vm210, %v209
    %s223 = scalar_lea.vmem [#allocation0], 834
    %224 = vst.msk [vmem:[%s223] sm:$0x40] %vm210, %v209
    %s225 = scalar_lea.vmem [#allocation0], 961
    %226 = vst.msk [vmem:[%s225] sm:$0x80] %vm210, %v209
    %v227 = vld.sshfl [vmem:[#allocation1] sm:$0xff pattern:$0xba983210]
    %228 = vrot.lane.b32.xlu0 %v227, 108
    %v229 = vpop.permute.xlu0 %228
    %vm230 = vcmask 31744
    %s231 = scalar_lea.vmem [#allocation0], 9
    %232 = vst.msk [vmem:[%s231] sm:$0x1] %vm230, %v229
    %s233 = scalar_lea.vmem [#allocation0], 136
    %234 = vst.msk [vmem:[%s233] sm:$0x2] %vm230, %v229
    %s235 = scalar_lea.vmem [#allocation0], 263
    %236 = vst.msk [vmem:[%s235] sm:$0x4] %vm230, %v229
    %s237 = scalar_lea.vmem [#allocation0], 390
    %238 = vst.msk [vmem:[%s237] sm:$0x8] %vm230, %v229
    %s239 = scalar_lea.vmem [#allocation0], 69
    %240 = vst.msk [vmem:[%s239] sm:$0x10] %vm230, %v229
    %s241 = scalar_lea.vmem [#allocation0], 196
    %242 = vst.msk [vmem:[%s241] sm:$0x20] %vm230, %v229
    %s243 = scalar_lea.vmem [#allocation0], 323
    %244 = vst.msk [vmem:[%s243] sm:$0x40] %vm230, %v229
    %s245 = scalar_lea.vmem [#allocation0], 450
    %246 = vst.msk [vmem:[%s245] sm:$0x80] %vm230, %v229
    %s247 = scalar_lea.vmem [#allocation1], 16
    %v248 = vld.sshfl [vmem:[%s247] sm:$0xff pattern:$0xba983210]
    %249 = vrot.lane.b32.xlu0 %v248, 108
    %v250 = vpop.permute.xlu0 %249
    %vm251 = vcmask 31744
    %s252 = scalar_lea.vmem [#allocation0], 521
    %253 = vst.msk [vmem:[%s252] sm:$0x1] %vm251, %v250
    %s254 = scalar_lea.vmem [#allocation0], 648
    %255 = vst.msk [vmem:[%s254] sm:$0x2] %vm251, %v250
    %s256 = scalar_lea.vmem [#allocation0], 775
    %257 = vst.msk [vmem:[%s256] sm:$0x4] %vm251, %v250
    %s258 = scalar_lea.vmem [#allocation0], 902
    %259 = vst.msk [vmem:[%s258] sm:$0x8] %vm251, %v250
    %s260 = scalar_lea.vmem [#allocation0], 581
    %261 = vst.msk [vmem:[%s260] sm:$0x10] %vm251, %v250
    %s262 = scalar_lea.vmem [#allocation0], 708
    %263 = vst.msk [vmem:[%s262] sm:$0x20] %vm251, %v250
    %s264 = scalar_lea.vmem [#allocation0], 835
    %265 = vst.msk [vmem:[%s264] sm:$0x40] %vm251, %v250
    %s266 = scalar_lea.vmem [#allocation0], 962
    %267 = vst.msk [vmem:[%s266] sm:$0x80] %vm251, %v250
    %v268 = vld.sshfl [vmem:[#allocation1] sm:$0xff pattern:$0xba983210]
    %269 = vrot.lane.b32.xlu0 %v268, 104
    %v270 = vpop.permute.xlu0 %269
    %vm271 = vcmask 31744
    %s272 = scalar_lea.vmem [#allocation0], 10
    %273 = vst.msk [vmem:[%s272] sm:$0x1] %vm271, %v270
    %s274 = scalar_lea.vmem [#allocation0], 137
    %275 = vst.msk [vmem:[%s274] sm:$0x2] %vm271, %v270
    %s276 = scalar_lea.vmem [#allocation0], 264
    %277 = vst.msk [vmem:[%s276] sm:$0x4] %vm271, %v270
    %s278 = scalar_lea.vmem [#allocation0], 391
    %279 = vst.msk [vmem:[%s278] sm:$0x8] %vm271, %v270
    %s280 = scalar_lea.vmem [#allocation0], 70
    %281 = vst.msk [vmem:[%s280] sm:$0x10] %vm271, %v270
    %s282 = scalar_lea.vmem [#allocation0], 197
    %283 = vst.msk [vmem:[%s282] sm:$0x20] %vm271, %v270
    %s284 = scalar_lea.vmem [#allocation0], 324
    %285 = vst.msk [vmem:[%s284] sm:$0x40] %vm271, %v270
    %s286 = scalar_lea.vmem [#allocation0], 451
    %287 = vst.msk [vmem:[%s286] sm:$0x80] %vm271, %v270
    %s288 = scalar_lea.vmem [#allocation1], 16
    %v289 = vld.sshfl [vmem:[%s288] sm:$0xff pattern:$0xba983210]
    %290 = vrot.lane.b32.xlu0 %v289, 104
    %v291 = vpop.permute.xlu0 %290
    %vm292 = vcmask 31744
    %s293 = scalar_lea.vmem [#allocation0], 522
    %294 = vst.msk [vmem:[%s293] sm:$0x1] %vm292, %v291
    %s295 = scalar_lea.vmem [#allocation0], 649
    %296 = vst.msk [vmem:[%s295] sm:$0x2] %vm292, %v291
    %s297 = scalar_lea.vmem [#allocation0], 776
    %298 = vst.msk [vmem:[%s297] sm:$0x4] %vm292, %v291
    %s299 = scalar_lea.vmem [#allocation0], 903
    %300 = vst.msk [vmem:[%s299] sm:$0x8] %vm292, %v291
    %s301 = scalar_lea.vmem [#allocation0], 582
    %302 = vst.msk [vmem:[%s301] sm:$0x10] %vm292, %v291
    %s303 = scalar_lea.vmem [#allocation0], 709
    %304 = vst.msk [vmem:[%s303] sm:$0x20] %vm292, %v291
    %s305 = scalar_lea.vmem [#allocation0], 836
    %306 = vst.msk [vmem:[%s305] sm:$0x40] %vm292, %v291
    %s307 = scalar_lea.vmem [#allocation0], 963
    %308 = vst.msk [vmem:[%s307] sm:$0x80] %vm292, %v291
    %v309 = vld.sshfl [vmem:[#allocation1] sm:$0xff pattern:$0xba983210]
    %310 = vrot.lane.b32.xlu0 %v309, 100
    %v311 = vpop.permute.xlu0 %310
    %vm312 = vcmask 31744
    %s313 = scalar_lea.vmem [#allocation0], 11
    %314 = vst.msk [vmem:[%s313] sm:$0x1] %vm312, %v311
    %s315 = scalar_lea.vmem [#allocation0], 138
    %316 = vst.msk [vmem:[%s315] sm:$0x2] %vm312, %v311
    %s317 = scalar_lea.vmem [#allocation0], 265
    %318 = vst.msk [vmem:[%s317] sm:$0x4] %vm312, %v311
    %s319 = scalar_lea.vmem [#allocation0], 392
    %320 = vst.msk [vmem:[%s319] sm:$0x8] %vm312, %v311
    %s321 = scalar_lea.vmem [#allocation0], 71
    %322 = vst.msk [vmem:[%s321] sm:$0x10] %vm312, %v311
    %s323 = scalar_lea.vmem [#allocation0], 198
    %324 = vst.msk [vmem:[%s323] sm:$0x20] %vm312, %v311
    %s325 = scalar_lea.vmem [#allocation0], 325
    %326 = vst.msk [vmem:[%s325] sm:$0x40] %vm312, %v311
    %s327 = scalar_lea.vmem [#allocation0], 452
    %328 = vst.msk [vmem:[%s327] sm:$0x80] %vm312, %v311
    %s329 = scalar_lea.vmem [#allocation1], 16
    %v330 = vld.sshfl [vmem:[%s329] sm:$0xff pattern:$0xba983210]
    %331 = vrot.lane.b32.xlu0 %v330, 100
    %v332 = vpop.permute.xlu0 %331
    %vm333 = vcmask 31744
    %s334 = scalar_lea.vmem [#allocation0], 523
    %335 = vst.msk [vmem:[%s334] sm:$0x1] %vm333, %v332
    %s336 = scalar_lea.vmem [#allocation0], 650
    %337 = vst.msk [vmem:[%s336] sm:$0x2] %vm333, %v332
    %s338 = scalar_lea.vmem [#allocation0], 777
    %339 = vst.msk [vmem:[%s338] sm:$0x4] %vm333, %v332
    %s340 = scalar_lea.vmem [#allocation0], 904
    %341 = vst.msk [vmem:[%s340] sm:$0x8] %vm333, %v332
    %s342 = scalar_lea.vmem [#allocation0], 583
    %343 = vst.msk [vmem:[%s342] sm:$0x10] %vm333, %v332
    %s344 = scalar_lea.vmem [#allocation0], 710
    %345 = vst.msk [vmem:[%s344] sm:$0x20] %vm333, %v332
    %s346 = scalar_lea.vmem [#allocation0], 837
    %347 = vst.msk [vmem:[%s346] sm:$0x40] %vm333, %v332
    %s348 = scalar_lea.vmem [#allocation0], 964
    %349 = vst.msk [vmem:[%s348] sm:$0x80] %vm333, %v332
    %v350 = vld.sshfl [vmem:[#allocation1] sm:$0xff pattern:$0xba983210]
    %351 = vrot.lane.b32.xlu0 %v350, 96
    %v352 = vpop.permute.xlu0 %351
    %vm353 = vcmask 31744
    %s354 = scalar_lea.vmem [#allocation0], 16
    %355 = vst.msk [vmem:[%s354] sm:$0x1] %vm353, %v352
    %s356 = scalar_lea.vmem [#allocation0], 143
    %357 = vst.msk [vmem:[%s356] sm:$0x2] %vm353, %v352
    %s358 = scalar_lea.vmem [#allocation0], 270
    %359 = vst.msk [vmem:[%s358] sm:$0x4] %vm353, %v352
    %s360 = scalar_lea.vmem [#allocation0], 397
    %361 = vst.msk [vmem:[%s360] sm:$0x8] %vm353, %v352
    %s362 = scalar_lea.vmem [#allocation0], 76
    %363 = vst.msk [vmem:[%s362] sm:$0x10] %vm353, %v352
    %s364 = scalar_lea.vmem [#allocation0], 203
    %365 = vst.msk [vmem:[%s364] sm:$0x20] %vm353, %v352
    %s366 = scalar_lea.vmem [#allocation0], 330
    %367 = vst.msk [vmem:[%s366] sm:$0x40] %vm353, %v352
    %s368 = scalar_lea.vmem [#allocation0], 457
    %369 = vst.msk [vmem:[%s368] sm:$0x80] %vm353, %v352
    %s370 = scalar_lea.vmem [#allocation1], 16
    %v371 = vld.sshfl [vmem:[%s370] sm:$0xff pattern:$0xba983210]
    %372 = vrot.lane.b32.xlu0 %v371, 96
    %v373 = vpop.permute.xlu0 %372
    %vm374 = vcmask 31744
    %s375 = scalar_lea.vmem [#allocation0], 528
    %376 = vst.msk [vmem:[%s375] sm:$0x1] %vm374, %v373
    %s377 = scalar_lea.vmem [#allocation0], 655
    %378 = vst.msk [vmem:[%s377] sm:$0x2] %vm374, %v373
    %s379 = scalar_lea.vmem [#allocation0], 782
    %380 = vst.msk [vmem:[%s379] sm:$0x4] %vm374, %v373
    %s381 = scalar_lea.vmem [#allocation0], 909
    %382 = vst.msk [vmem:[%s381] sm:$0x8] %vm374, %v373
    %s383 = scalar_lea.vmem [#allocation0], 588
    %384 = vst.msk [vmem:[%s383] sm:$0x10] %vm374, %v373
    %s385 = scalar_lea.vmem [#allocation0], 715
    %386 = vst.msk [vmem:[%s385] sm:$0x20] %vm374, %v373
    %s387 = scalar_lea.vmem [#allocation0], 842
    %388 = vst.msk [vmem:[%s387] sm:$0x40] %vm374, %v373
    %s389 = scalar_lea.vmem [#allocation0], 969
    %390 = vst.msk [vmem:[%s389] sm:$0x80] %vm374, %v373
    %v391 = vld.sshfl [vmem:[#allocation1] sm:$0xff pattern:$0xba983210]
    %392 = vrot.lane.b32.xlu0 %v391, 92
    %v393 = vpop.permute.xlu0 %392
    %vm394 = vcmask 31744
    %s395 = scalar_lea.vmem [#allocation0], 17
    %396 = vst.msk [vmem:[%s395] sm:$0x1] %vm394, %v393
    %s397 = scalar_lea.vmem [#allocation0], 144
    %398 = vst.msk [vmem:[%s397] sm:$0x2] %vm394, %v393
    %s399 = scalar_lea.vmem [#allocation0], 271
    %400 = vst.msk [vmem:[%s399] sm:$0x4] %vm394, %v393
    %s401 = scalar_lea.vmem [#allocation0], 398
    %402 = vst.msk [vmem:[%s401] sm:$0x8] %vm394, %v393
    %s403 = scalar_lea.vmem [#allocation0], 77
    %404 = vst.msk [vmem:[%s403] sm:$0x10] %vm394, %v393
    %s405 = scalar_lea.vmem [#allocation0], 204
    %406 = vst.msk [vmem:[%s405] sm:$0x20] %vm394, %v393
    %s407 = scalar_lea.vmem [#allocation0], 331
    %408 = vst.msk [vmem:[%s407] sm:$0x40] %vm394, %v393
    %s409 = scalar_lea.vmem [#allocation0], 458
    %410 = vst.msk [vmem:[%s409] sm:$0x80] %vm394, %v393
    %s411 = scalar_lea.vmem [#allocation1], 16
    %v412 = vld.sshfl [vmem:[%s411] sm:$0xff pattern:$0xba983210]
    %413 = vrot.lane.b32.xlu0 %v412, 92
    %v414 = vpop.permute.xlu0 %413
    %vm415 = vcmask 31744
    %s416 = scalar_lea.vmem [#allocation0], 529
    %417 = vst.msk [vmem:[%s416] sm:$0x1] %vm415, %v414
    %s418 = scalar_lea.vmem [#allocation0], 656
    %419 = vst.msk [vmem:[%s418] sm:$0x2] %vm415, %v414
    %s420 = scalar_lea.vmem [#allocation0], 783
    %421 = vst.msk [vmem:[%s420] sm:$0x4] %vm415, %v414
    %s422 = scalar_lea.vmem [#allocation0], 910
    %423 = vst.msk [vmem:[%s422] sm:$0x8] %vm415, %v414
    %s424 = scalar_lea.vmem [#allocation0], 589
    %425 = vst.msk [vmem:[%s424] sm:$0x10] %vm415, %v414
    %s426 = scalar_lea.vmem [#allocation0], 716
    %427 = vst.msk [vmem:[%s426] sm:$0x20] %vm415, %v414
    %s428 = scalar_lea.vmem [#allocation0], 843
    %429 = vst.msk [vmem:[%s428] sm:$0x40] %vm415, %v414
    %s430 = scalar_lea.vmem [#allocation0], 970
    %431 = vst.msk [vmem:[%s430] sm:$0x80] %vm415, %v414
    %v432 = vld.sshfl [vmem:[#allocation1] sm:$0xff pattern:$0xba983210]
    %433 = vrot.lane.b32.xlu0 %v432, 88
    %v434 = vpop.permute.xlu0 %433
    %vm435 = vcmask 31744
    %s436 = scalar_lea.vmem [#allocation0], 18
    %437 = vst.msk [vmem:[%s436] sm:$0x1] %vm435, %v434
    %s438 = scalar_lea.vmem [#allocation0], 145
    %439 = vst.msk [vmem:[%s438] sm:$0x2] %vm435, %v434
    %s440 = scalar_lea.vmem [#allocation0], 272
    %441 = vst.msk [vmem:[%s440] sm:$0x4] %vm435, %v434
    %s442 = scalar_lea.vmem [#allocation0], 399
    %443 = vst.msk [vmem:[%s442] sm:$0x8] %vm435, %v434
    %s444 = scalar_lea.vmem [#allocation0], 78
    %445 = vst.msk [vmem:[%s444] sm:$0x10] %vm435, %v434
    %s446 = scalar_lea.vmem [#allocation0], 205
    %447 = vst.msk [vmem:[%s446] sm:$0x20] %vm435, %v434
    %s448 = scalar_lea.vmem [#allocation0], 332
    %449 = vst.msk [vmem:[%s448] sm:$0x40] %vm435, %v434
    %s450 = scalar_lea.vmem [#allocation0], 459
    %451 = vst.msk [vmem:[%s450] sm:$0x80] %vm435, %v434
    %s452 = scalar_lea.vmem [#allocation1], 16
    %v453 = vld.sshfl [vmem:[%s452] sm:$0xff pattern:$0xba983210]
    %454 = vrot.lane.b32.xlu0 %v453, 88
    %v455 = vpop.permute.xlu0 %454
    %vm456 = vcmask 31744
    %s457 = scalar_lea.vmem [#allocation0], 530
    %458 = vst.msk [vmem:[%s457] sm:$0x1] %vm456, %v455
    %s459 = scalar_lea.vmem [#allocation0], 657
    %460 = vst.msk [vmem:[%s459] sm:$0x2] %vm456, %v455
    %s461 = scalar_lea.vmem [#allocation0], 784
    %462 = vst.msk [vmem:[%s461] sm:$0x4] %vm456, %v455
    %s463 = scalar_lea.vmem [#allocation0], 911
    %464 = vst.msk [vmem:[%s463] sm:$0x8] %vm456, %v455
    %s465 = scalar_lea.vmem [#allocation0], 590
    %466 = vst.msk [vmem:[%s465] sm:$0x10] %vm456, %v455
    %s467 = scalar_lea.vmem [#allocation0], 717
    %468 = vst.msk [vmem:[%s467] sm:$0x20] %vm456, %v455
    %s469 = scalar_lea.vmem [#allocation0], 844
    %470 = vst.msk [vmem:[%s469] sm:$0x40] %vm456, %v455
    %s471 = scalar_lea.vmem [#allocation0], 971
    %472 = vst.msk [vmem:[%s471] sm:$0x80] %vm456, %v455
    %v473 = vld.sshfl [vmem:[#allocation1] sm:$0xff pattern:$0xba983210]
    %474 = vrot.lane.b32.xlu0 %v473, 84
    %v475 = vpop.permute.xlu0 %474
    %vm476 = vcmask 31744
    %s477 = scalar_lea.vmem [#allocation0], 19
    %478 = vst.msk [vmem:[%s477] sm:$0x1] %vm476, %v475
    %s479 = scalar_lea.vmem [#allocation0], 146
    %480 = vst.msk [vmem:[%s479] sm:$0x2] %vm476, %v475
    %s481 = scalar_lea.vmem [#allocation0], 273
    %482 = vst.msk [vmem:[%s481] sm:$0x4] %vm476, %v475
    %s483 = scalar_lea.vmem [#allocation0], 400
    %484 = vst.msk [vmem:[%s483] sm:$0x8] %vm476, %v475
    %s485 = scalar_lea.vmem [#allocation0], 79
    %486 = vst.msk [vmem:[%s485] sm:$0x10] %vm476, %v475
    %s487 = scalar_lea.vmem [#allocation0], 206
    %488 = vst.msk [vmem:[%s487] sm:$0x20] %vm476, %v475
    %s489 = scalar_lea.vmem [#allocation0], 333
    %490 = vst.msk [vmem:[%s489] sm:$0x40] %vm476, %v475
    %s491 = scalar_lea.vmem [#allocation0], 460
    %492 = vst.msk [vmem:[%s491] sm:$0x80] %vm476, %v475
    %s493 = scalar_lea.vmem [#allocation1], 16
    %v494 = vld.sshfl [vmem:[%s493] sm:$0xff pattern:$0xba983210]
    %495 = vrot.lane.b32.xlu0 %v494, 84
    %v496 = vpop.permute.xlu0 %495
    %vm497 = vcmask 31744
    %s498 = scalar_lea.vmem [#allocation0], 531
    %499 = vst.msk [vmem:[%s498] sm:$0x1] %vm497, %v496
    %s500 = scalar_lea.vmem [#allocation0], 658
    %501 = vst.msk [vmem:[%s500] sm:$0x2] %vm497, %v496
    %s502 = scalar_lea.vmem [#allocation0], 785
    %503 = vst.msk [vmem:[%s502] sm:$0x4] %vm497, %v496
    %s504 = scalar_lea.vmem [#allocation0], 912
    %505 = vst.msk [vmem:[%s504] sm:$0x8] %vm497, %v496
    %s506 = scalar_lea.vmem [#allocation0], 591
    %507 = vst.msk [vmem:[%s506] sm:$0x10] %vm497, %v496
    %s508 = scalar_lea.vmem [#allocation0], 718
    %509 = vst.msk [vmem:[%s508] sm:$0x20] %vm497, %v496
    %s510 = scalar_lea.vmem [#allocation0], 845
    %511 = vst.msk [vmem:[%s510] sm:$0x40] %vm497, %v496
    %s512 = scalar_lea.vmem [#allocation0], 972
    %513 = vst.msk [vmem:[%s512] sm:$0x80] %vm497, %v496
    %v514 = vld.sshfl [vmem:[#allocation1] sm:$0xff pattern:$0xba983210]
    %515 = vrot.lane.b32.xlu0 %v514, 80
    %v516 = vpop.permute.xlu0 %515
    %vm517 = vcmask 31744
    %s518 = scalar_lea.vmem [#allocation0], 24
    %519 = vst.msk [vmem:[%s518] sm:$0x1] %vm517, %v516
    %s520 = scalar_lea.vmem [#allocation0], 151
    %521 = vst.msk [vmem:[%s520] sm:$0x2] %vm517, %v516
    %s522 = scalar_lea.vmem [#allocation0], 278
    %523 = vst.msk [vmem:[%s522] sm:$0x4] %vm517, %v516
    %s524 = scalar_lea.vmem [#allocation0], 405
    %525 = vst.msk [vmem:[%s524] sm:$0x8] %vm517, %v516
    %s526 = scalar_lea.vmem [#allocation0], 84
    %527 = vst.msk [vmem:[%s526] sm:$0x10] %vm517, %v516
    %s528 = scalar_lea.vmem [#allocation0], 211
    %529 = vst.msk [vmem:[%s528] sm:$0x20] %vm517, %v516
    %s530 = scalar_lea.vmem [#allocation0], 338
    %531 = vst.msk [vmem:[%s530] sm:$0x40] %vm517, %v516
    %s532 = scalar_lea.vmem [#allocation0], 465
    %533 = vst.msk [vmem:[%s532] sm:$0x80] %vm517, %v516
    %s534 = scalar_lea.vmem [#allocation1], 16
    %v535 = vld.sshfl [vmem:[%s534] sm:$0xff pattern:$0xba983210]
    %536 = vrot.lane.b32.xlu0 %v535, 80
    %v537 = vpop.permute.xlu0 %536
    %vm538 = vcmask 31744
    %s539 = scalar_lea.vmem [#allocation0], 536
    %540 = vst.msk [vmem:[%s539] sm:$0x1] %vm538, %v537
    %s541 = scalar_lea.vmem [#allocation0], 663
    %542 = vst.msk [vmem:[%s541] sm:$0x2] %vm538, %v537
    %s543 = scalar_lea.vmem [#allocation0], 790
    %544 = vst.msk [vmem:[%s543] sm:$0x4] %vm538, %v537
    %s545 = scalar_lea.vmem [#allocation0], 917
    %546 = vst.msk [vmem:[%s545] sm:$0x8] %vm538, %v537
    %s547 = scalar_lea.vmem [#allocation0], 596
    %548 = vst.msk [vmem:[%s547] sm:$0x10] %vm538, %v537
    %s549 = scalar_lea.vmem [#allocation0], 723
    %550 = vst.msk [vmem:[%s549] sm:$0x20] %vm538, %v537
    %s551 = scalar_lea.vmem [#allocation0], 850
    %552 = vst.msk [vmem:[%s551] sm:$0x40] %vm538, %v537
    %s553 = scalar_lea.vmem [#allocation0], 977
    %554 = vst.msk [vmem:[%s553] sm:$0x80] %vm538, %v537
    %v555 = vld.sshfl [vmem:[#allocation1] sm:$0xff pattern:$0xba983210]
    %556 = vrot.lane.b32.xlu0 %v555, 76
    %v557 = vpop.permute.xlu0 %556
    %vm558 = vcmask 31744
    %s559 = scalar_lea.vmem [#allocation0], 25
    %560 = vst.msk [vmem:[%s559] sm:$0x1] %vm558, %v557
    %s561 = scalar_lea.vmem [#allocation0], 152
    %562 = vst.msk [vmem:[%s561] sm:$0x2] %vm558, %v557
    %s563 = scalar_lea.vmem [#allocation0], 279
    %564 = vst.msk [vmem:[%s563] sm:$0x4] %vm558, %v557
    %s565 = scalar_lea.vmem [#allocation0], 406
    %566 = vst.msk [vmem:[%s565] sm:$0x8] %vm558, %v557
    %s567 = scalar_lea.vmem [#allocation0], 85
    %568 = vst.msk [vmem:[%s567] sm:$0x10] %vm558, %v557
    %s569 = scalar_lea.vmem [#allocation0], 212
    %570 = vst.msk [vmem:[%s569] sm:$0x20] %vm558, %v557
    %s571 = scalar_lea.vmem [#allocation0], 339
    %572 = vst.msk [vmem:[%s571] sm:$0x40] %vm558, %v557
    %s573 = scalar_lea.vmem [#allocation0], 466
    %574 = vst.msk [vmem:[%s573] sm:$0x80] %vm558, %v557
    %s575 = scalar_lea.vmem [#allocation1], 16
    %v576 = vld.sshfl [vmem:[%s575] sm:$0xff pattern:$0xba983210]
    %577 = vrot.lane.b32.xlu0 %v576, 76
    %v578 = vpop.permute.xlu0 %577
    %vm579 = vcmask 31744
    %s580 = scalar_lea.vmem [#allocation0], 537
    %581 = vst.msk [vmem:[%s580] sm:$0x1] %vm579, %v578
    %s582 = scalar_lea.vmem [#allocation0], 664
    %583 = vst.msk [vmem:[%s582] sm:$0x2] %vm579, %v578
    %s584 = scalar_lea.vmem [#allocation0], 791
    %585 = vst.msk [vmem:[%s584] sm:$0x4] %vm579, %v578
    %s586 = scalar_lea.vmem [#allocation0], 918
    %587 = vst.msk [vmem:[%s586] sm:$0x8] %vm579, %v578
    %s588 = scalar_lea.vmem [#allocation0], 597
    %589 = vst.msk [vmem:[%s588] sm:$0x10] %vm579, %v578
    %s590 = scalar_lea.vmem [#allocation0], 724
    %591 = vst.msk [vmem:[%s590] sm:$0x20] %vm579, %v578
    %s592 = scalar_lea.vmem [#allocation0], 851
    %593 = vst.msk [vmem:[%s592] sm:$0x40] %vm579, %v578
    %s594 = scalar_lea.vmem [#allocation0], 978
    %595 = vst.msk [vmem:[%s594] sm:$0x80] %vm579, %v578
    %v596 = vld.sshfl [vmem:[#allocation1] sm:$0xff pattern:$0xba983210]
    %597 = vrot.lane.b32.xlu0 %v596, 72
    %v598 = vpop.permute.xlu0 %597
    %vm599 = vcmask 31744
    %s600 = scalar_lea.vmem [#allocation0], 26
    %601 = vst.msk [vmem:[%s600] sm:$0x1] %vm599, %v598
    %s602 = scalar_lea.vmem [#allocation0], 153
    %603 = vst.msk [vmem:[%s602] sm:$0x2] %vm599, %v598
    %s604 = scalar_lea.vmem [#allocation0], 280
    %605 = vst.msk [vmem:[%s604] sm:$0x4] %vm599, %v598
    %s606 = scalar_lea.vmem [#allocation0], 407
    %607 = vst.msk [vmem:[%s606] sm:$0x8] %vm599, %v598
    %s608 = scalar_lea.vmem [#allocation0], 86
    %609 = vst.msk [vmem:[%s608] sm:$0x10] %vm599, %v598
    %s610 = scalar_lea.vmem [#allocation0], 213
    %611 = vst.msk [vmem:[%s610] sm:$0x20] %vm599, %v598
    %s612 = scalar_lea.vmem [#allocation0], 340
    %613 = vst.msk [vmem:[%s612] sm:$0x40] %vm599, %v598
    %s614 = scalar_lea.vmem [#allocation0], 467
    %615 = vst.msk [vmem:[%s614] sm:$0x80] %vm599, %v598
    %s616 = scalar_lea.vmem [#allocation1], 16
    %v617 = vld.sshfl [vmem:[%s616] sm:$0xff pattern:$0xba983210]
    %618 = vrot.lane.b32.xlu0 %v617, 72
    %v619 = vpop.permute.xlu0 %618
    %vm620 = vcmask 31744
    %s621 = scalar_lea.vmem [#allocation0], 538
    %622 = vst.msk [vmem:[%s621] sm:$0x1] %vm620, %v619
    %s623 = scalar_lea.vmem [#allocation0], 665
    %624 = vst.msk [vmem:[%s623] sm:$0x2] %vm620, %v619
    %s625 = scalar_lea.vmem [#allocation0], 792
    %626 = vst.msk [vmem:[%s625] sm:$0x4] %vm620, %v619
    %s627 = scalar_lea.vmem [#allocation0], 919
    %628 = vst.msk [vmem:[%s627] sm:$0x8] %vm620, %v619
    %s629 = scalar_lea.vmem [#allocation0], 598
    %630 = vst.msk [vmem:[%s629] sm:$0x10] %vm620, %v619
    %s631 = scalar_lea.vmem [#allocation0], 725
    %632 = vst.msk [vmem:[%s631] sm:$0x20] %vm620, %v619
    %s633 = scalar_lea.vmem [#allocation0], 852
    %634 = vst.msk [vmem:[%s633] sm:$0x40] %vm620, %v619
    %s635 = scalar_lea.vmem [#allocation0], 979
    %636 = vst.msk [vmem:[%s635] sm:$0x80] %vm620, %v619
    %v637 = vld.sshfl [vmem:[#allocation1] sm:$0xff pattern:$0xba983210]
    %638 = vrot.lane.b32.xlu0 %v637, 68
    %v639 = vpop.permute.xlu0 %638
    %vm640 = vcmask 31744
    %s641 = scalar_lea.vmem [#allocation0], 27
    %642 = vst.msk [vmem:[%s641] sm:$0x1] %vm640, %v639
    %s643 = scalar_lea.vmem [#allocation0], 154
    %644 = vst.msk [vmem:[%s643] sm:$0x2] %vm640, %v639
    %s645 = scalar_lea.vmem [#allocation0], 281
    %646 = vst.msk [vmem:[%s645] sm:$0x4] %vm640, %v639
    %s647 = scalar_lea.vmem [#allocation0], 408
    %648 = vst.msk [vmem:[%s647] sm:$0x8] %vm640, %v639
    %s649 = scalar_lea.vmem [#allocation0], 87
    %650 = vst.msk [vmem:[%s649] sm:$0x10] %vm640, %v639
    %s651 = scalar_lea.vmem [#allocation0], 214
    %652 = vst.msk [vmem:[%s651] sm:$0x20] %vm640, %v639
    %s653 = scalar_lea.vmem [#allocation0], 341
    %654 = vst.msk [vmem:[%s653] sm:$0x40] %vm640, %v639
    %s655 = scalar_lea.vmem [#allocation0], 468
    %656 = vst.msk [vmem:[%s655] sm:$0x80] %vm640, %v639
    %s657 = scalar_lea.vmem [#allocation1], 16
    %v658 = vld.sshfl [vmem:[%s657] sm:$0xff pattern:$0xba983210]
    %659 = vrot.lane.b32.xlu0 %v658, 68
    %v660 = vpop.permute.xlu0 %659
    %vm661 = vcmask 31744
    %s662 = scalar_lea.vmem [#allocation0], 539
    %663 = vst.msk [vmem:[%s662] sm:$0x1] %vm661, %v660
    %s664 = scalar_lea.vmem [#allocation0], 666
    %665 = vst.msk [vmem:[%s664] sm:$0x2] %vm661, %v660
    %s666 = scalar_lea.vmem [#allocation0], 793
    %667 = vst.msk [vmem:[%s666] sm:$0x4] %vm661, %v660
    %s668 = scalar_lea.vmem [#allocation0], 920
    %669 = vst.msk [vmem:[%s668] sm:$0x8] %vm661, %v660
    %s670 = scalar_lea.vmem [#allocation0], 599
    %671 = vst.msk [vmem:[%s670] sm:$0x10] %vm661, %v660
    %s672 = scalar_lea.vmem [#allocation0], 726
    %673 = vst.msk [vmem:[%s672] sm:$0x20] %vm661, %v660
    %s674 = scalar_lea.vmem [#allocation0], 853
    %675 = vst.msk [vmem:[%s674] sm:$0x40] %vm661, %v660
    %s676 = scalar_lea.vmem [#allocation0], 980
    %677 = vst.msk [vmem:[%s676] sm:$0x80] %vm661, %v660
    %v678 = vld.sshfl [vmem:[#allocation1] sm:$0xff pattern:$0xba983210]
    %679 = vrot.lane.b32.xlu0 %v678, 64
    %v680 = vpop.permute.xlu0 %679
    %vm681 = vcmask 31744
    %s682 = scalar_lea.vmem [#allocation0], 32
    %683 = vst.msk [vmem:[%s682] sm:$0x1] %vm681, %v680
    %s684 = scalar_lea.vmem [#allocation0], 159
    %685 = vst.msk [vmem:[%s684] sm:$0x2] %vm681, %v680
    %s686 = scalar_lea.vmem [#allocation0], 286
    %687 = vst.msk [vmem:[%s686] sm:$0x4] %vm681, %v680
    %s688 = scalar_lea.vmem [#allocation0], 413
    %689 = vst.msk [vmem:[%s688] sm:$0x8] %vm681, %v680
    %s690 = scalar_lea.vmem [#allocation0], 92
    %691 = vst.msk [vmem:[%s690] sm:$0x10] %vm681, %v680
    %s692 = scalar_lea.vmem [#allocation0], 219
    %693 = vst.msk [vmem:[%s692] sm:$0x20] %vm681, %v680
    %s694 = scalar_lea.vmem [#allocation0], 346
    %695 = vst.msk [vmem:[%s694] sm:$0x40] %vm681, %v680
    %s696 = scalar_lea.vmem [#allocation0], 473
    %697 = vst.msk [vmem:[%s696] sm:$0x80] %vm681, %v680
    %s698 = scalar_lea.vmem [#allocation1], 16
    %v699 = vld.sshfl [vmem:[%s698] sm:$0xff pattern:$0xba983210]
    %700 = vrot.lane.b32.xlu0 %v699, 64
    %v701 = vpop.permute.xlu0 %700
    %vm702 = vcmask 31744
    %s703 = scalar_lea.vmem [#allocation0], 544
    %704 = vst.msk [vmem:[%s703] sm:$0x1] %vm702, %v701
    %s705 = scalar_lea.vmem [#allocation0], 671
    %706 = vst.msk [vmem:[%s705] sm:$0x2] %vm702, %v701
    %s707 = scalar_lea.vmem [#allocation0], 798
    %708 = vst.msk [vmem:[%s707] sm:$0x4] %vm702, %v701
    %s709 = scalar_lea.vmem [#allocation0], 925
    %710 = vst.msk [vmem:[%s709] sm:$0x8] %vm702, %v701
    %s711 = scalar_lea.vmem [#allocation0], 604
    %712 = vst.msk [vmem:[%s711] sm:$0x10] %vm702, %v701
    %s713 = scalar_lea.vmem [#allocation0], 731
    %714 = vst.msk [vmem:[%s713] sm:$0x20] %vm702, %v701
    %s715 = scalar_lea.vmem [#allocation0], 858
    %716 = vst.msk [vmem:[%s715] sm:$0x40] %vm702, %v701
    %s717 = scalar_lea.vmem [#allocation0], 985
    %718 = vst.msk [vmem:[%s717] sm:$0x80] %vm702, %v701
    %v719 = vld.sshfl [vmem:[#allocation1] sm:$0xff pattern:$0xba983210]
    %720 = vrot.lane.b32.xlu0 %v719, 60
    %v721 = vpop.permute.xlu0 %720
    %vm722 = vcmask 31744
    %s723 = scalar_lea.vmem [#allocation0], 33
    %724 = vst.msk [vmem:[%s723] sm:$0x1] %vm722, %v721
    %s725 = scalar_lea.vmem [#allocation0], 160
    %726 = vst.msk [vmem:[%s725] sm:$0x2] %vm722, %v721
    %s727 = scalar_lea.vmem [#allocation0], 287
    %728 = vst.msk [vmem:[%s727] sm:$0x4] %vm722, %v721
    %s729 = scalar_lea.vmem [#allocation0], 414
    %730 = vst.msk [vmem:[%s729] sm:$0x8] %vm722, %v721
    %s731 = scalar_lea.vmem [#allocation0], 93
    %732 = vst.msk [vmem:[%s731] sm:$0x10] %vm722, %v721
    %s733 = scalar_lea.vmem [#allocation0], 220
    %734 = vst.msk [vmem:[%s733] sm:$0x20] %vm722, %v721
    %s735 = scalar_lea.vmem [#allocation0], 347
    %736 = vst.msk [vmem:[%s735] sm:$0x40] %vm722, %v721
    %s737 = scalar_lea.vmem [#allocation0], 474
    %738 = vst.msk [vmem:[%s737] sm:$0x80] %vm722, %v721
    %s739 = scalar_lea.vmem [#allocation1], 16
    %v740 = vld.sshfl [vmem:[%s739] sm:$0xff pattern:$0xba983210]
    %741 = vrot.lane.b32.xlu0 %v740, 60
    %v742 = vpop.permute.xlu0 %741
    %vm743 = vcmask 31744
    %s744 = scalar_lea.vmem [#allocation0], 545
    %745 = vst.msk [vmem:[%s744] sm:$0x1] %vm743, %v742
    %s746 = scalar_lea.vmem [#allocation0], 672
    %747 = vst.msk [vmem:[%s746] sm:$0x2] %vm743, %v742
    %s748 = scalar_lea.vmem [#allocation0], 799
    %749 = vst.msk [vmem:[%s748] sm:$0x4] %vm743, %v742
    %s750 = scalar_lea.vmem [#allocation0], 926
    %751 = vst.msk [vmem:[%s750] sm:$0x8] %vm743, %v742
    %s752 = scalar_lea.vmem [#allocation0], 605
    %753 = vst.msk [vmem:[%s752] sm:$0x10] %vm743, %v742
    %s754 = scalar_lea.vmem [#allocation0], 732
    %755 = vst.msk [vmem:[%s754] sm:$0x20] %vm743, %v742
    %s756 = scalar_lea.vmem [#allocation0], 859
    %757 = vst.msk [vmem:[%s756] sm:$0x40] %vm743, %v742
    %s758 = scalar_lea.vmem [#allocation0], 986
    %759 = vst.msk [vmem:[%s758] sm:$0x80] %vm743, %v742
    %v760 = vld.sshfl [vmem:[#allocation1] sm:$0xff pattern:$0xba983210]
    %761 = vrot.lane.b32.xlu0 %v760, 56
    %v762 = vpop.permute.xlu0 %761
    %vm763 = vcmask 31744
    %s764 = scalar_lea.vmem [#allocation0], 34
    %765 = vst.msk [vmem:[%s764] sm:$0x1] %vm763, %v762
    %s766 = scalar_lea.vmem [#allocation0], 161
    %767 = vst.msk [vmem:[%s766] sm:$0x2] %vm763, %v762
    %s768 = scalar_lea.vmem [#allocation0], 288
    %769 = vst.msk [vmem:[%s768] sm:$0x4] %vm763, %v762
    %s770 = scalar_lea.vmem [#allocation0], 415
    %771 = vst.msk [vmem:[%s770] sm:$0x8] %vm763, %v762
    %s772 = scalar_lea.vmem [#allocation0], 94
    %773 = vst.msk [vmem:[%s772] sm:$0x10] %vm763, %v762
    %s774 = scalar_lea.vmem [#allocation0], 221
    %775 = vst.msk [vmem:[%s774] sm:$0x20] %vm763, %v762
    %s776 = scalar_lea.vmem [#allocation0], 348
    %777 = vst.msk [vmem:[%s776] sm:$0x40] %vm763, %v762
    %s778 = scalar_lea.vmem [#allocation0], 475
    %779 = vst.msk [vmem:[%s778] sm:$0x80] %vm763, %v762
    %s780 = scalar_lea.vmem [#allocation1], 16
    %v781 = vld.sshfl [vmem:[%s780] sm:$0xff pattern:$0xba983210]
    %782 = vrot.lane.b32.xlu0 %v781, 56
    %v783 = vpop.permute.xlu0 %782
    %vm784 = vcmask 31744
    %s785 = scalar_lea.vmem [#allocation0], 546
    %786 = vst.msk [vmem:[%s785] sm:$0x1] %vm784, %v783
    %s787 = scalar_lea.vmem [#allocation0], 673
    %788 = vst.msk [vmem:[%s787] sm:$0x2] %vm784, %v783
    %s789 = scalar_lea.vmem [#allocation0], 800
    %790 = vst.msk [vmem:[%s789] sm:$0x4] %vm784, %v783
    %s791 = scalar_lea.vmem [#allocation0], 927
    %792 = vst.msk [vmem:[%s791] sm:$0x8] %vm784, %v783
    %s793 = scalar_lea.vmem [#allocation0], 606
    %794 = vst.msk [vmem:[%s793] sm:$0x10] %vm784, %v783
    %s795 = scalar_lea.vmem [#allocation0], 733
    %796 = vst.msk [vmem:[%s795] sm:$0x20] %vm784, %v783
    %s797 = scalar_lea.vmem [#allocation0], 860
    %798 = vst.msk [vmem:[%s797] sm:$0x40] %vm784, %v783
    %s799 = scalar_lea.vmem [#allocation0], 987
    %800 = vst.msk [vmem:[%s799] sm:$0x80] %vm784, %v783
    %v801 = vld.sshfl [vmem:[#allocation1] sm:$0xff pattern:$0xba983210]
    %802 = vrot.lane.b32.xlu0 %v801, 52
    %v803 = vpop.permute.xlu0 %802
    %vm804 = vcmask 31744
    %s805 = scalar_lea.vmem [#allocation0], 35
    %806 = vst.msk [vmem:[%s805] sm:$0x1] %vm804, %v803
    %s807 = scalar_lea.vmem [#allocation0], 162
    %808 = vst.msk [vmem:[%s807] sm:$0x2] %vm804, %v803
    %s809 = scalar_lea.vmem [#allocation0], 289
    %810 = vst.msk [vmem:[%s809] sm:$0x4] %vm804, %v803
    %s811 = scalar_lea.vmem [#allocation0], 416
    %812 = vst.msk [vmem:[%s811] sm:$0x8] %vm804, %v803
    %s813 = scalar_lea.vmem [#allocation0], 95
    %814 = vst.msk [vmem:[%s813] sm:$0x10] %vm804, %v803
    %s815 = scalar_lea.vmem [#allocation0], 222
    %816 = vst.msk [vmem:[%s815] sm:$0x20] %vm804, %v803
    %s817 = scalar_lea.vmem [#allocation0], 349
    %818 = vst.msk [vmem:[%s817] sm:$0x40] %vm804, %v803
    %s819 = scalar_lea.vmem [#allocation0], 476
    %820 = vst.msk [vmem:[%s819] sm:$0x80] %vm804, %v803
    %s821 = scalar_lea.vmem [#allocation1], 16
    %v822 = vld.sshfl [vmem:[%s821] sm:$0xff pattern:$0xba983210]
    %823 = vrot.lane.b32.xlu0 %v822, 52
    %v824 = vpop.permute.xlu0 %823
    %vm825 = vcmask 31744
    %s826 = scalar_lea.vmem [#allocation0], 547
    %827 = vst.msk [vmem:[%s826] sm:$0x1] %vm825, %v824
    %s828 = scalar_lea.vmem [#allocation0], 674
    %829 = vst.msk [vmem:[%s828] sm:$0x2] %vm825, %v824
    %s830 = scalar_lea.vmem [#allocation0], 801
    %831 = vst.msk [vmem:[%s830] sm:$0x4] %vm825, %v824
    %s832 = scalar_lea.vmem [#allocation0], 928
    %833 = vst.msk [vmem:[%s832] sm:$0x8] %vm825, %v824
    %s834 = scalar_lea.vmem [#allocation0], 607
    %835 = vst.msk [vmem:[%s834] sm:$0x10] %vm825, %v824
    %s836 = scalar_lea.vmem [#allocation0], 734
    %837 = vst.msk [vmem:[%s836] sm:$0x20] %vm825, %v824
    %s838 = scalar_lea.vmem [#allocation0], 861
    %839 = vst.msk [vmem:[%s838] sm:$0x40] %vm825, %v824
    %s840 = scalar_lea.vmem [#allocation0], 988
    %841 = vst.msk [vmem:[%s840] sm:$0x80] %vm825, %v824
    %v842 = vld.sshfl [vmem:[#allocation1] sm:$0xff pattern:$0xba983210]
    %843 = vrot.lane.b32.xlu0 %v842, 48
    %v844 = vpop.permute.xlu0 %843
    %vm845 = vcmask 31744
    %s846 = scalar_lea.vmem [#allocation0], 40
    %847 = vst.msk [vmem:[%s846] sm:$0x1] %vm845, %v844
    %s848 = scalar_lea.vmem [#allocation0], 167
    %849 = vst.msk [vmem:[%s848] sm:$0x2] %vm845, %v844
    %s850 = scalar_lea.vmem [#allocation0], 294
    %851 = vst.msk [vmem:[%s850] sm:$0x4] %vm845, %v844
    %s852 = scalar_lea.vmem [#allocation0], 421
    %853 = vst.msk [vmem:[%s852] sm:$0x8] %vm845, %v844
    %s854 = scalar_lea.vmem [#allocation0], 100
    %855 = vst.msk [vmem:[%s854] sm:$0x10] %vm845, %v844
    %s856 = scalar_lea.vmem [#allocation0], 227
    %857 = vst.msk [vmem:[%s856] sm:$0x20] %vm845, %v844
    %s858 = scalar_lea.vmem [#allocation0], 354
    %859 = vst.msk [vmem:[%s858] sm:$0x40] %vm845, %v844
    %s860 = scalar_lea.vmem [#allocation0], 481
    %861 = vst.msk [vmem:[%s860] sm:$0x80] %vm845, %v844
    %s862 = scalar_lea.vmem [#allocation1], 16
    %v863 = vld.sshfl [vmem:[%s862] sm:$0xff pattern:$0xba983210]
    %864 = vrot.lane.b32.xlu0 %v863, 48
    %v865 = vpop.permute.xlu0 %864
    %vm866 = vcmask 31744
    %s867 = scalar_lea.vmem [#allocation0], 552
    %868 = vst.msk [vmem:[%s867] sm:$0x1] %vm866, %v865
    %s869 = scalar_lea.vmem [#allocation0], 679
    %870 = vst.msk [vmem:[%s869] sm:$0x2] %vm866, %v865
    %s871 = scalar_lea.vmem [#allocation0], 806
    %872 = vst.msk [vmem:[%s871] sm:$0x4] %vm866, %v865
    %s873 = scalar_lea.vmem [#allocation0], 933
    %874 = vst.msk [vmem:[%s873] sm:$0x8] %vm866, %v865
    %s875 = scalar_lea.vmem [#allocation0], 612
    %876 = vst.msk [vmem:[%s875] sm:$0x10] %vm866, %v865
    %s877 = scalar_lea.vmem [#allocation0], 739
    %878 = vst.msk [vmem:[%s877] sm:$0x20] %vm866, %v865
    %s879 = scalar_lea.vmem [#allocation0], 866
    %880 = vst.msk [vmem:[%s879] sm:$0x40] %vm866, %v865
    %s881 = scalar_lea.vmem [#allocation0], 993
    %882 = vst.msk [vmem:[%s881] sm:$0x80] %vm866, %v865
    %v883 = vld.sshfl [vmem:[#allocation1] sm:$0xff pattern:$0xba983210]
    %884 = vrot.lane.b32.xlu0 %v883, 44
    %v885 = vpop.permute.xlu0 %884
    %vm886 = vcmask 31744
    %s887 = scalar_lea.vmem [#allocation0], 41
    %888 = vst.msk [vmem:[%s887] sm:$0x1] %vm886, %v885
    %s889 = scalar_lea.vmem [#allocation0], 168
    %890 = vst.msk [vmem:[%s889] sm:$0x2] %vm886, %v885
    %s891 = scalar_lea.vmem [#allocation0], 295
    %892 = vst.msk [vmem:[%s891] sm:$0x4] %vm886, %v885
    %s893 = scalar_lea.vmem [#allocation0], 422
    %894 = vst.msk [vmem:[%s893] sm:$0x8] %vm886, %v885
    %s895 = scalar_lea.vmem [#allocation0], 101
    %896 = vst.msk [vmem:[%s895] sm:$0x10] %vm886, %v885
    %s897 = scalar_lea.vmem [#allocation0], 228
    %898 = vst.msk [vmem:[%s897] sm:$0x20] %vm886, %v885
    %s899 = scalar_lea.vmem [#allocation0], 355
    %900 = vst.msk [vmem:[%s899] sm:$0x40] %vm886, %v885
    %s901 = scalar_lea.vmem [#allocation0], 482
    %902 = vst.msk [vmem:[%s901] sm:$0x80] %vm886, %v885
    %s903 = scalar_lea.vmem [#allocation1], 16
    %v904 = vld.sshfl [vmem:[%s903] sm:$0xff pattern:$0xba983210]
    %905 = vrot.lane.b32.xlu0 %v904, 44
    %v906 = vpop.permute.xlu0 %905
    %vm907 = vcmask 31744
    %s908 = scalar_lea.vmem [#allocation0], 553
    %909 = vst.msk [vmem:[%s908] sm:$0x1] %vm907, %v906
    %s910 = scalar_lea.vmem [#allocation0], 680
    %911 = vst.msk [vmem:[%s910] sm:$0x2] %vm907, %v906
    %s912 = scalar_lea.vmem [#allocation0], 807
    %913 = vst.msk [vmem:[%s912] sm:$0x4] %vm907, %v906
    %s914 = scalar_lea.vmem [#allocation0], 934
    %915 = vst.msk [vmem:[%s914] sm:$0x8] %vm907, %v906
    %s916 = scalar_lea.vmem [#allocation0], 613
    %917 = vst.msk [vmem:[%s916] sm:$0x10] %vm907, %v906
    %s918 = scalar_lea.vmem [#allocation0], 740
    %919 = vst.msk [vmem:[%s918] sm:$0x20] %vm907, %v906
    %s920 = scalar_lea.vmem [#allocation0], 867
    %921 = vst.msk [vmem:[%s920] sm:$0x40] %vm907, %v906
    %s922 = scalar_lea.vmem [#allocation0], 994
    %923 = vst.msk [vmem:[%s922] sm:$0x80] %vm907, %v906
    %v924 = vld.sshfl [vmem:[#allocation1] sm:$0xff pattern:$0xba983210]
    %925 = vrot.lane.b32.xlu0 %v924, 40
    %v926 = vpop.permute.xlu0 %925
    %vm927 = vcmask 31744
    %s928 = scalar_lea.vmem [#allocation0], 42
    %929 = vst.msk [vmem:[%s928] sm:$0x1] %vm927, %v926
    %s930 = scalar_lea.vmem [#allocation0], 169
    %931 = vst.msk [vmem:[%s930] sm:$0x2] %vm927, %v926
    %s932 = scalar_lea.vmem [#allocation0], 296
    %933 = vst.msk [vmem:[%s932] sm:$0x4] %vm927, %v926
    %s934 = scalar_lea.vmem [#allocation0], 423
    %935 = vst.msk [vmem:[%s934] sm:$0x8] %vm927, %v926
    %s936 = scalar_lea.vmem [#allocation0], 102
    %937 = vst.msk [vmem:[%s936] sm:$0x10] %vm927, %v926
    %s938 = scalar_lea.vmem [#allocation0], 229
    %939 = vst.msk [vmem:[%s938] sm:$0x20] %vm927, %v926
    %s940 = scalar_lea.vmem [#allocation0], 356
    %941 = vst.msk [vmem:[%s940] sm:$0x40] %vm927, %v926
    %s942 = scalar_lea.vmem [#allocation0], 483
    %943 = vst.msk [vmem:[%s942] sm:$0x80] %vm927, %v926
    %s944 = scalar_lea.vmem [#allocation1], 16
    %v945 = vld.sshfl [vmem:[%s944] sm:$0xff pattern:$0xba983210]
    %946 = vrot.lane.b32.xlu0 %v945, 40
    %v947 = vpop.permute.xlu0 %946
    %vm948 = vcmask 31744
    %s949 = scalar_lea.vmem [#allocation0], 554
    %950 = vst.msk [vmem:[%s949] sm:$0x1] %vm948, %v947
    %s951 = scalar_lea.vmem [#allocation0], 681
    %952 = vst.msk [vmem:[%s951] sm:$0x2] %vm948, %v947
    %s953 = scalar_lea.vmem [#allocation0], 808
    %954 = vst.msk [vmem:[%s953] sm:$0x4] %vm948, %v947
    %s955 = scalar_lea.vmem [#allocation0], 935
    %956 = vst.msk [vmem:[%s955] sm:$0x8] %vm948, %v947
    %s957 = scalar_lea.vmem [#allocation0], 614
    %958 = vst.msk [vmem:[%s957] sm:$0x10] %vm948, %v947
    %s959 = scalar_lea.vmem [#allocation0], 741
    %960 = vst.msk [vmem:[%s959] sm:$0x20] %vm948, %v947
    %s961 = scalar_lea.vmem [#allocation0], 868
    %962 = vst.msk [vmem:[%s961] sm:$0x40] %vm948, %v947
    %s963 = scalar_lea.vmem [#allocation0], 995
    %964 = vst.msk [vmem:[%s963] sm:$0x80] %vm948, %v947
    %v965 = vld.sshfl [vmem:[#allocation1] sm:$0xff pattern:$0xba983210]
    %966 = vrot.lane.b32.xlu0 %v965, 36
    %v967 = vpop.permute.xlu0 %966
    %vm968 = vcmask 31744
    %s969 = scalar_lea.vmem [#allocation0], 43
    %970 = vst.msk [vmem:[%s969] sm:$0x1] %vm968, %v967
    %s971 = scalar_lea.vmem [#allocation0], 170
    %972 = vst.msk [vmem:[%s971] sm:$0x2] %vm968, %v967
    %s973 = scalar_lea.vmem [#allocation0], 297
    %974 = vst.msk [vmem:[%s973] sm:$0x4] %vm968, %v967
    %s975 = scalar_lea.vmem [#allocation0], 424
    %976 = vst.msk [vmem:[%s975] sm:$0x8] %vm968, %v967
    %s977 = scalar_lea.vmem [#allocation0], 103
    %978 = vst.msk [vmem:[%s977] sm:$0x10] %vm968, %v967
    %s979 = scalar_lea.vmem [#allocation0], 230
    %980 = vst.msk [vmem:[%s979] sm:$0x20] %vm968, %v967
    %s981 = scalar_lea.vmem [#allocation0], 357
    %982 = vst.msk [vmem:[%s981] sm:$0x40] %vm968, %v967
    %s983 = scalar_lea.vmem [#allocation0], 484
    %984 = vst.msk [vmem:[%s983] sm:$0x80] %vm968, %v967
    %s985 = scalar_lea.vmem [#allocation1], 16
    %v986 = vld.sshfl [vmem:[%s985] sm:$0xff pattern:$0xba983210]
    %987 = vrot.lane.b32.xlu0 %v986, 36
    %v988 = vpop.permute.xlu0 %987
    %vm989 = vcmask 31744
    %s990 = scalar_lea.vmem [#allocation0], 555
    %991 = vst.msk [vmem:[%s990] sm:$0x1] %vm989, %v988
    %s992 = scalar_lea.vmem [#allocation0], 682
    %993 = vst.msk [vmem:[%s992] sm:$0x2] %vm989, %v988
    %s994 = scalar_lea.vmem [#allocation0], 809
    %995 = vst.msk [vmem:[%s994] sm:$0x4] %vm989, %v988
    %s996 = scalar_lea.vmem [#allocation0], 936
    %997 = vst.msk [vmem:[%s996] sm:$0x8] %vm989, %v988
    %s998 = scalar_lea.vmem [#allocation0], 615
    %999 = vst.msk [vmem:[%s998] sm:$0x10] %vm989, %v988
    %s1000 = scalar_lea.vmem [#allocation0], 742
    %1001 = vst.msk [vmem:[%s1000] sm:$0x20] %vm989, %v988
    %s1002 = scalar_lea.vmem [#allocation0], 869
    %1003 = vst.msk [vmem:[%s1002] sm:$0x40] %vm989, %v988
    %s1004 = scalar_lea.vmem [#allocation0], 996
    %1005 = vst.msk [vmem:[%s1004] sm:$0x80] %vm989, %v988
    %v1006 = vld.sshfl [vmem:[#allocation1] sm:$0xff pattern:$0xba983210]
    %1007 = vrot.lane.b32.xlu0 %v1006, 32
    %v1008 = vpop.permute.xlu0 %1007
    %vm1009 = vcmask 31744
    %s1010 = scalar_lea.vmem [#allocation0], 48
    %1011 = vst.msk [vmem:[%s1010] sm:$0x1] %vm1009, %v1008
    %s1012 = scalar_lea.vmem [#allocation0], 175
    %1013 = vst.msk [vmem:[%s1012] sm:$0x2] %vm1009, %v1008
    %s1014 = scalar_lea.vmem [#allocation0], 302
    %1015 = vst.msk [vmem:[%s1014] sm:$0x4] %vm1009, %v1008
    %s1016 = scalar_lea.vmem [#allocation0], 429
    %1017 = vst.msk [vmem:[%s1016] sm:$0x8] %vm1009, %v1008
    %s1018 = scalar_lea.vmem [#allocation0], 108
    %1019 = vst.msk [vmem:[%s1018] sm:$0x10] %vm1009, %v1008
    %s1020 = scalar_lea.vmem [#allocation0], 235
    %1021 = vst.msk [vmem:[%s1020] sm:$0x20] %vm1009, %v1008
    %s1022 = scalar_lea.vmem [#allocation0], 362
    %1023 = vst.msk [vmem:[%s1022] sm:$0x40] %vm1009, %v1008
    %s1024 = scalar_lea.vmem [#allocation0], 489
    %1025 = vst.msk [vmem:[%s1024] sm:$0x80] %vm1009, %v1008
    %s1026 = scalar_lea.vmem [#allocation1], 16
    %v1027 = vld.sshfl [vmem:[%s1026] sm:$0xff pattern:$0xba983210]
    %1028 = vrot.lane.b32.xlu0 %v1027, 32
    %v1029 = vpop.permute.xlu0 %1028
    %vm1030 = vcmask 31744
    %s1031 = scalar_lea.vmem [#allocation0], 560
    %1032 = vst.msk [vmem:[%s1031] sm:$0x1] %vm1030, %v1029
    %s1033 = scalar_lea.vmem [#allocation0], 687
    %1034 = vst.msk [vmem:[%s1033] sm:$0x2] %vm1030, %v1029
    %s1035 = scalar_lea.vmem [#allocation0], 814
    %1036 = vst.msk [vmem:[%s1035] sm:$0x4] %vm1030, %v1029
    %s1037 = scalar_lea.vmem [#allocation0], 941
    %1038 = vst.msk [vmem:[%s1037] sm:$0x8] %vm1030, %v1029
    %s1039 = scalar_lea.vmem [#allocation0], 620
    %1040 = vst.msk [vmem:[%s1039] sm:$0x10] %vm1030, %v1029
    %s1041 = scalar_lea.vmem [#allocation0], 747
    %1042 = vst.msk [vmem:[%s1041] sm:$0x20] %vm1030, %v1029
    %s1043 = scalar_lea.vmem [#allocation0], 874
    %1044 = vst.msk [vmem:[%s1043] sm:$0x40] %vm1030, %v1029
    %s1045 = scalar_lea.vmem [#allocation0], 1001
    %1046 = vst.msk [vmem:[%s1045] sm:$0x80] %vm1030, %v1029
    %v1047 = vld.sshfl [vmem:[#allocation1] sm:$0xff pattern:$0xba983210]
    %1048 = vrot.lane.b32.xlu0 %v1047, 28
    %v1049 = vpop.permute.xlu0 %1048
    %vm1050 = vcmask 31744
    %s1051 = scalar_lea.vmem [#allocation0], 49
    %1052 = vst.msk [vmem:[%s1051] sm:$0x1] %vm1050, %v1049
    %s1053 = scalar_lea.vmem [#allocation0], 176
    %1054 = vst.msk [vmem:[%s1053] sm:$0x2] %vm1050, %v1049
    %s1055 = scalar_lea.vmem [#allocation0], 303
    %1056 = vst.msk [vmem:[%s1055] sm:$0x4] %vm1050, %v1049
    %s1057 = scalar_lea.vmem [#allocation0], 430
    %1058 = vst.msk [vmem:[%s1057] sm:$0x8] %vm1050, %v1049
    %s1059 = scalar_lea.vmem [#allocation0], 109
    %1060 = vst.msk [vmem:[%s1059] sm:$0x10] %vm1050, %v1049
    %s1061 = scalar_lea.vmem [#allocation0], 236
    %1062 = vst.msk [vmem:[%s1061] sm:$0x20] %vm1050, %v1049
    %s1063 = scalar_lea.vmem [#allocation0], 363
    %1064 = vst.msk [vmem:[%s1063] sm:$0x40] %vm1050, %v1049
    %s1065 = scalar_lea.vmem [#allocation0], 490
    %1066 = vst.msk [vmem:[%s1065] sm:$0x80] %vm1050, %v1049
    %s1067 = scalar_lea.vmem [#allocation1], 16
    %v1068 = vld.sshfl [vmem:[%s1067] sm:$0xff pattern:$0xba983210]
    %1069 = vrot.lane.b32.xlu0 %v1068, 28
    %v1070 = vpop.permute.xlu0 %1069
    %vm1071 = vcmask 31744
    %s1072 = scalar_lea.vmem [#allocation0], 561
    %1073 = vst.msk [vmem:[%s1072] sm:$0x1] %vm1071, %v1070
    %s1074 = scalar_lea.vmem [#allocation0], 688
    %1075 = vst.msk [vmem:[%s1074] sm:$0x2] %vm1071, %v1070
    %s1076 = scalar_lea.vmem [#allocation0], 815
    %1077 = vst.msk [vmem:[%s1076] sm:$0x4] %vm1071, %v1070
    %s1078 = scalar_lea.vmem [#allocation0], 942
    %1079 = vst.msk [vmem:[%s1078] sm:$0x8] %vm1071, %v1070
    %s1080 = scalar_lea.vmem [#allocation0], 621
    %1081 = vst.msk [vmem:[%s1080] sm:$0x10] %vm1071, %v1070
    %s1082 = scalar_lea.vmem [#allocation0], 748
    %1083 = vst.msk [vmem:[%s1082] sm:$0x20] %vm1071, %v1070
    %s1084 = scalar_lea.vmem [#allocation0], 875
    %1085 = vst.msk [vmem:[%s1084] sm:$0x40] %vm1071, %v1070
    %s1086 = scalar_lea.vmem [#allocation0], 1002
    %1087 = vst.msk [vmem:[%s1086] sm:$0x80] %vm1071, %v1070
    %v1088 = vld.sshfl [vmem:[#allocation1] sm:$0xff pattern:$0xba983210]
    %1089 = vrot.lane.b32.xlu0 %v1088, 24
    %v1090 = vpop.permute.xlu0 %1089
    %vm1091 = vcmask 31744
    %s1092 = scalar_lea.vmem [#allocation0], 50
    %1093 = vst.msk [vmem:[%s1092] sm:$0x1] %vm1091, %v1090
    %s1094 = scalar_lea.vmem [#allocation0], 177
    %1095 = vst.msk [vmem:[%s1094] sm:$0x2] %vm1091, %v1090
    %s1096 = scalar_lea.vmem [#allocation0], 304
    %1097 = vst.msk [vmem:[%s1096] sm:$0x4] %vm1091, %v1090
    %s1098 = scalar_lea.vmem [#allocation0], 431
    %1099 = vst.msk [vmem:[%s1098] sm:$0x8] %vm1091, %v1090
    %s1100 = scalar_lea.vmem [#allocation0], 110
    %1101 = vst.msk [vmem:[%s1100] sm:$0x10] %vm1091, %v1090
    %s1102 = scalar_lea.vmem [#allocation0], 237
    %1103 = vst.msk [vmem:[%s1102] sm:$0x20] %vm1091, %v1090
    %s1104 = scalar_lea.vmem [#allocation0], 364
    %1105 = vst.msk [vmem:[%s1104] sm:$0x40] %vm1091, %v1090
    %s1106 = scalar_lea.vmem [#allocation0], 491
    %1107 = vst.msk [vmem:[%s1106] sm:$0x80] %vm1091, %v1090
    %s1108 = scalar_lea.vmem [#allocation1], 16
    %v1109 = vld.sshfl [vmem:[%s1108] sm:$0xff pattern:$0xba983210]
    %1110 = vrot.lane.b32.xlu0 %v1109, 24
    %v1111 = vpop.permute.xlu0 %1110
    %vm1112 = vcmask 31744
    %s1113 = scalar_lea.vmem [#allocation0], 562
    %1114 = vst.msk [vmem:[%s1113] sm:$0x1] %vm1112, %v1111
    %s1115 = scalar_lea.vmem [#allocation0], 689
    %1116 = vst.msk [vmem:[%s1115] sm:$0x2] %vm1112, %v1111
    %s1117 = scalar_lea.vmem [#allocation0], 816
    %1118 = vst.msk [vmem:[%s1117] sm:$0x4] %vm1112, %v1111
    %s1119 = scalar_lea.vmem [#allocation0], 943
    %1120 = vst.msk [vmem:[%s1119] sm:$0x8] %vm1112, %v1111
    %s1121 = scalar_lea.vmem [#allocation0], 622
    %1122 = vst.msk [vmem:[%s1121] sm:$0x10] %vm1112, %v1111
    %s1123 = scalar_lea.vmem [#allocation0], 749
    %1124 = vst.msk [vmem:[%s1123] sm:$0x20] %vm1112, %v1111
    %s1125 = scalar_lea.vmem [#allocation0], 876
    %1126 = vst.msk [vmem:[%s1125] sm:$0x40] %vm1112, %v1111
    %s1127 = scalar_lea.vmem [#allocation0], 1003
    %1128 = vst.msk [vmem:[%s1127] sm:$0x80] %vm1112, %v1111
    %v1129 = vld.sshfl [vmem:[#allocation1] sm:$0xff pattern:$0xba983210]
    %1130 = vrot.lane.b32.xlu0 %v1129, 20
    %v1131 = vpop.permute.xlu0 %1130
    %vm1132 = vcmask 31744
    %s1133 = scalar_lea.vmem [#allocation0], 51
    %1134 = vst.msk [vmem:[%s1133] sm:$0x1] %vm1132, %v1131
    %s1135 = scalar_lea.vmem [#allocation0], 178
    %1136 = vst.msk [vmem:[%s1135] sm:$0x2] %vm1132, %v1131
    %s1137 = scalar_lea.vmem [#allocation0], 305
    %1138 = vst.msk [vmem:[%s1137] sm:$0x4] %vm1132, %v1131
    %s1139 = scalar_lea.vmem [#allocation0], 432
    %1140 = vst.msk [vmem:[%s1139] sm:$0x8] %vm1132, %v1131
    %s1141 = scalar_lea.vmem [#allocation0], 111
    %1142 = vst.msk [vmem:[%s1141] sm:$0x10] %vm1132, %v1131
    %s1143 = scalar_lea.vmem [#allocation0], 238
    %1144 = vst.msk [vmem:[%s1143] sm:$0x20] %vm1132, %v1131
    %s1145 = scalar_lea.vmem [#allocation0], 365
    %1146 = vst.msk [vmem:[%s1145] sm:$0x40] %vm1132, %v1131
    %s1147 = scalar_lea.vmem [#allocation0], 492
    %1148 = vst.msk [vmem:[%s1147] sm:$0x80] %vm1132, %v1131
    %s1149 = scalar_lea.vmem [#allocation1], 16
    %v1150 = vld.sshfl [vmem:[%s1149] sm:$0xff pattern:$0xba983210]
    %1151 = vrot.lane.b32.xlu0 %v1150, 20
    %v1152 = vpop.permute.xlu0 %1151
    %vm1153 = vcmask 31744
    %s1154 = scalar_lea.vmem [#allocation0], 563
    %1155 = vst.msk [vmem:[%s1154] sm:$0x1] %vm1153, %v1152
    %s1156 = scalar_lea.vmem [#allocation0], 690
    %1157 = vst.msk [vmem:[%s1156] sm:$0x2] %vm1153, %v1152
    %s1158 = scalar_lea.vmem [#allocation0], 817
    %1159 = vst.msk [vmem:[%s1158] sm:$0x4] %vm1153, %v1152
    %s1160 = scalar_lea.vmem [#allocation0], 944
    %1161 = vst.msk [vmem:[%s1160] sm:$0x8] %vm1153, %v1152
    %s1162 = scalar_lea.vmem [#allocation0], 623
    %1163 = vst.msk [vmem:[%s1162] sm:$0x10] %vm1153, %v1152
    %s1164 = scalar_lea.vmem [#allocation0], 750
    %1165 = vst.msk [vmem:[%s1164] sm:$0x20] %vm1153, %v1152
    %s1166 = scalar_lea.vmem [#allocation0], 877
    %1167 = vst.msk [vmem:[%s1166] sm:$0x40] %vm1153, %v1152
    %s1168 = scalar_lea.vmem [#allocation0], 1004
    %1169 = vst.msk [vmem:[%s1168] sm:$0x80] %vm1153, %v1152
    %v1170 = vld.sshfl [vmem:[#allocation1] sm:$0xff pattern:$0xba983210]
    %1171 = vrot.lane.b32.xlu0 %v1170, 16
    %v1172 = vpop.permute.xlu0 %1171
    %vm1173 = vcmask 31744
    %s1174 = scalar_lea.vmem [#allocation0], 56
    %1175 = vst.msk [vmem:[%s1174] sm:$0x1] %vm1173, %v1172
    %s1176 = scalar_lea.vmem [#allocation0], 183
    %1177 = vst.msk [vmem:[%s1176] sm:$0x2] %vm1173, %v1172
    %s1178 = scalar_lea.vmem [#allocation0], 310
    %1179 = vst.msk [vmem:[%s1178] sm:$0x4] %vm1173, %v1172
    %s1180 = scalar_lea.vmem [#allocation0], 437
    %1181 = vst.msk [vmem:[%s1180] sm:$0x8] %vm1173, %v1172
    %s1182 = scalar_lea.vmem [#allocation0], 116
    %1183 = vst.msk [vmem:[%s1182] sm:$0x10] %vm1173, %v1172
    %s1184 = scalar_lea.vmem [#allocation0], 243
    %1185 = vst.msk [vmem:[%s1184] sm:$0x20] %vm1173, %v1172
    %s1186 = scalar_lea.vmem [#allocation0], 370
    %1187 = vst.msk [vmem:[%s1186] sm:$0x40] %vm1173, %v1172
    %s1188 = scalar_lea.vmem [#allocation0], 497
    %1189 = vst.msk [vmem:[%s1188] sm:$0x80] %vm1173, %v1172
    %s1190 = scalar_lea.vmem [#allocation1], 16
    %v1191 = vld.sshfl [vmem:[%s1190] sm:$0xff pattern:$0xba983210]
    %1192 = vrot.lane.b32.xlu0 %v1191, 16
    %v1193 = vpop.permute.xlu0 %1192
    %vm1194 = vcmask 31744
    %s1195 = scalar_lea.vmem [#allocation0], 568
    %1196 = vst.msk [vmem:[%s1195] sm:$0x1] %vm1194, %v1193
    %s1197 = scalar_lea.vmem [#allocation0], 695
    %1198 = vst.msk [vmem:[%s1197] sm:$0x2] %vm1194, %v1193
    %s1199 = scalar_lea.vmem [#allocation0], 822
    %1200 = vst.msk [vmem:[%s1199] sm:$0x4] %vm1194, %v1193
    %s1201 = scalar_lea.vmem [#allocation0], 949
    %1202 = vst.msk [vmem:[%s1201] sm:$0x8] %vm1194, %v1193
    %s1203 = scalar_lea.vmem [#allocation0], 628
    %1204 = vst.msk [vmem:[%s1203] sm:$0x10] %vm1194, %v1193
    %s1205 = scalar_lea.vmem [#allocation0], 755
    %1206 = vst.msk [vmem:[%s1205] sm:$0x20] %vm1194, %v1193
    %s1207 = scalar_lea.vmem [#allocation0], 882
    %1208 = vst.msk [vmem:[%s1207] sm:$0x40] %vm1194, %v1193
    %s1209 = scalar_lea.vmem [#allocation0], 1009
    %1210 = vst.msk [vmem:[%s1209] sm:$0x80] %vm1194, %v1193
    %v1211 = vld.sshfl [vmem:[#allocation1] sm:$0xff pattern:$0xba983210]
    %1212 = vrot.lane.b32.xlu0 %v1211, 12
    %v1213 = vpop.permute.xlu0 %1212
    %vm1214 = vcmask 31744
    %s1215 = scalar_lea.vmem [#allocation0], 57
    %1216 = vst.msk [vmem:[%s1215] sm:$0x1] %vm1214, %v1213
    %s1217 = scalar_lea.vmem [#allocation0], 184
    %1218 = vst.msk [vmem:[%s1217] sm:$0x2] %vm1214, %v1213
    %s1219 = scalar_lea.vmem [#allocation0], 311
    %1220 = vst.msk [vmem:[%s1219] sm:$0x4] %vm1214, %v1213
    %s1221 = scalar_lea.vmem [#allocation0], 438
    %1222 = vst.msk [vmem:[%s1221] sm:$0x8] %vm1214, %v1213
    %s1223 = scalar_lea.vmem [#allocation0], 117
    %1224 = vst.msk [vmem:[%s1223] sm:$0x10] %vm1214, %v1213
    %s1225 = scalar_lea.vmem [#allocation0], 244
    %1226 = vst.msk [vmem:[%s1225] sm:$0x20] %vm1214, %v1213
    %s1227 = scalar_lea.vmem [#allocation0], 371
    %1228 = vst.msk [vmem:[%s1227] sm:$0x40] %vm1214, %v1213
    %s1229 = scalar_lea.vmem [#allocation0], 498
    %1230 = vst.msk [vmem:[%s1229] sm:$0x80] %vm1214, %v1213
    %s1231 = scalar_lea.vmem [#allocation1], 16
    %v1232 = vld.sshfl [vmem:[%s1231] sm:$0xff pattern:$0xba983210]
    %1233 = vrot.lane.b32.xlu0 %v1232, 12
    %v1234 = vpop.permute.xlu0 %1233
    %vm1235 = vcmask 31744
    %s1236 = scalar_lea.vmem [#allocation0], 569
    %1237 = vst.msk [vmem:[%s1236] sm:$0x1] %vm1235, %v1234
    %s1238 = scalar_lea.vmem [#allocation0], 696
    %1239 = vst.msk [vmem:[%s1238] sm:$0x2] %vm1235, %v1234
    %s1240 = scalar_lea.vmem [#allocation0], 823
    %1241 = vst.msk [vmem:[%s1240] sm:$0x4] %vm1235, %v1234
    %s1242 = scalar_lea.vmem [#allocation0], 950
    %1243 = vst.msk [vmem:[%s1242] sm:$0x8] %vm1235, %v1234
    %s1244 = scalar_lea.vmem [#allocation0], 629
    %1245 = vst.msk [vmem:[%s1244] sm:$0x10] %vm1235, %v1234
    %s1246 = scalar_lea.vmem [#allocation0], 756
    %1247 = vst.msk [vmem:[%s1246] sm:$0x20] %vm1235, %v1234
    %s1248 = scalar_lea.vmem [#allocation0], 883
    %1249 = vst.msk [vmem:[%s1248] sm:$0x40] %vm1235, %v1234
    %s1250 = scalar_lea.vmem [#allocation0], 1010
    %1251 = vst.msk [vmem:[%s1250] sm:$0x80] %vm1235, %v1234
    %v1252 = vld.sshfl [vmem:[#allocation1] sm:$0xff pattern:$0xba983210]
    %1253 = vrot.lane.b32.xlu0 %v1252, 8
    %v1254 = vpop.permute.xlu0 %1253
    %vm1255 = vcmask 31744
    %s1256 = scalar_lea.vmem [#allocation0], 58
    %1257 = vst.msk [vmem:[%s1256] sm:$0x1] %vm1255, %v1254
    %s1258 = scalar_lea.vmem [#allocation0], 185
    %1259 = vst.msk [vmem:[%s1258] sm:$0x2] %vm1255, %v1254
    %s1260 = scalar_lea.vmem [#allocation0], 312
    %1261 = vst.msk [vmem:[%s1260] sm:$0x4] %vm1255, %v1254
    %s1262 = scalar_lea.vmem [#allocation0], 439
    %1263 = vst.msk [vmem:[%s1262] sm:$0x8] %vm1255, %v1254
    %s1264 = scalar_lea.vmem [#allocation0], 118
    %1265 = vst.msk [vmem:[%s1264] sm:$0x10] %vm1255, %v1254
    %s1266 = scalar_lea.vmem [#allocation0], 245
    %1267 = vst.msk [vmem:[%s1266] sm:$0x20] %vm1255, %v1254
    %s1268 = scalar_lea.vmem [#allocation0], 372
    %1269 = vst.msk [vmem:[%s1268] sm:$0x40] %vm1255, %v1254
    %s1270 = scalar_lea.vmem [#allocation0], 499
    %1271 = vst.msk [vmem:[%s1270] sm:$0x80] %vm1255, %v1254
    %s1272 = scalar_lea.vmem [#allocation1], 16
    %v1273 = vld.sshfl [vmem:[%s1272] sm:$0xff pattern:$0xba983210]
    %1274 = vrot.lane.b32.xlu0 %v1273, 8
    %v1275 = vpop.permute.xlu0 %1274
    %vm1276 = vcmask 31744
    %s1277 = scalar_lea.vmem [#allocation0], 570
    %1278 = vst.msk [vmem:[%s1277] sm:$0x1] %vm1276, %v1275
    %s1279 = scalar_lea.vmem [#allocation0], 697
    %1280 = vst.msk [vmem:[%s1279] sm:$0x2] %vm1276, %v1275
    %s1281 = scalar_lea.vmem [#allocation0], 824
    %1282 = vst.msk [vmem:[%s1281] sm:$0x4] %vm1276, %v1275
    %s1283 = scalar_lea.vmem [#allocation0], 951
    %1284 = vst.msk [vmem:[%s1283] sm:$0x8] %vm1276, %v1275
    %s1285 = scalar_lea.vmem [#allocation0], 630
    %1286 = vst.msk [vmem:[%s1285] sm:$0x10] %vm1276, %v1275
    %s1287 = scalar_lea.vmem [#allocation0], 757
    %1288 = vst.msk [vmem:[%s1287] sm:$0x20] %vm1276, %v1275
    %s1289 = scalar_lea.vmem [#allocation0], 884
    %1290 = vst.msk [vmem:[%s1289] sm:$0x40] %vm1276, %v1275
    %s1291 = scalar_lea.vmem [#allocation0], 1011
    %1292 = vst.msk [vmem:[%s1291] sm:$0x80] %vm1276, %v1275
    %v1293 = vld.sshfl [vmem:[#allocation1] sm:$0xff pattern:$0xba983210]
    %1294 = vrot.lane.b32.xlu0 %v1293, 4
    %v1295 = vpop.permute.xlu0 %1294
    %vm1296 = vcmask 31744
    %s1297 = scalar_lea.vmem [#allocation0], 59
    %1298 = vst.msk [vmem:[%s1297] sm:$0x1] %vm1296, %v1295
    %s1299 = scalar_lea.vmem [#allocation0], 186
    %1300 = vst.msk [vmem:[%s1299] sm:$0x2] %vm1296, %v1295
    %s1301 = scalar_lea.vmem [#allocation0], 313
    %1302 = vst.msk [vmem:[%s1301] sm:$0x4] %vm1296, %v1295
    %s1303 = scalar_lea.vmem [#allocation0], 440
    %1304 = vst.msk [vmem:[%s1303] sm:$0x8] %vm1296, %v1295
    %s1305 = scalar_lea.vmem [#allocation0], 119
    %1306 = vst.msk [vmem:[%s1305] sm:$0x10] %vm1296, %v1295
    %s1307 = scalar_lea.vmem [#allocation0], 246
    %1308 = vst.msk [vmem:[%s1307] sm:$0x20] %vm1296, %v1295
    %s1309 = scalar_lea.vmem [#allocation0], 373
    %1310 = vst.msk [vmem:[%s1309] sm:$0x40] %vm1296, %v1295
    %s1311 = scalar_lea.vmem [#allocation0], 500
    %1312 = vst.msk [vmem:[%s1311] sm:$0x80] %vm1296, %v1295
    %s1313 = scalar_lea.vmem [#allocation1], 16
    %v1314 = vld.sshfl [vmem:[%s1313] sm:$0xff pattern:$0xba983210]
    %1315 = vrot.lane.b32.xlu0 %v1314, 4
    %v1316 = vpop.permute.xlu0 %1315
    %vm1317 = vcmask 31744
    %s1318 = scalar_lea.vmem [#allocation0], 571
    %1319 = vst.msk [vmem:[%s1318] sm:$0x1] %vm1317, %v1316
    %s1320 = scalar_lea.vmem [#allocation0], 698
    %1321 = vst.msk [vmem:[%s1320] sm:$0x2] %vm1317, %v1316
    %s1322 = scalar_lea.vmem [#allocation0], 825
    %1323 = vst.msk [vmem:[%s1322] sm:$0x4] %vm1317, %v1316
    %s1324 = scalar_lea.vmem [#allocation0], 952
    %1325 = vst.msk [vmem:[%s1324] sm:$0x8] %vm1317, %v1316
    %s1326 = scalar_lea.vmem [#allocation0], 631
    %1327 = vst.msk [vmem:[%s1326] sm:$0x10] %vm1317, %v1316
    %s1328 = scalar_lea.vmem [#allocation0], 758
    %1329 = vst.msk [vmem:[%s1328] sm:$0x20] %vm1317, %v1316
    %s1330 = scalar_lea.vmem [#allocation0], 885
    %1331 = vst.msk [vmem:[%s1330] sm:$0x40] %vm1317, %v1316
    %s1332 = scalar_lea.vmem [#allocation0], 1012
    %1333 = vst.msk [vmem:[%s1332] sm:$0x80] %vm1317, %v1316
    %s1335 = sshll.u32 1, 4
    %s1336 = ssub.s32 %s1335, 1
    %v1338 = vld [vmem:[#allocation0] sm:%s1336]
    %s1339 = sshll.u32 1, 4
    %s1340 = ssub.s32 %s1339, 1
    %1341 = vst [vmem:[%s1] sm:%s1340] %v1338
    %s1342 = scalar_lea.vmem [#allocation0], 8
    %v1343 = vld [vmem:[%s1342] sm:%s1336]
    %s1344 = sshll.u32 1, 4
    %s1345 = ssub.s32 %s1344, 1
    %s1346 = scalar_lea.vmem %s1, 4
    %1347 = vst [vmem:[%s1346] sm:%s1345] %v1343
    %s1348 = scalar_lea.vmem [#allocation0], 16
    %v1349 = vld [vmem:[%s1348] sm:%s1336]
    %s1350 = sshll.u32 1, 4
    %s1351 = ssub.s32 %s1350, 1
    %s1352 = smul.addr 4, 2
    %s1353 = scalar_lea.vmem %s1, %s1352
    %1354 = vst [vmem:[%s1353] sm:%s1351] %v1349
    %s1355 = scalar_lea.vmem [#allocation0], 24
    %v1356 = vld [vmem:[%s1355] sm:%s1336]
    %s1357 = sshll.u32 1, 4
    %s1358 = ssub.s32 %s1357, 1
    %s1359 = smul.addr 4, 3
    %s1360 = scalar_lea.vmem %s1, %s1359
    %1361 = vst [vmem:[%s1360] sm:%s1358] %v1356
    %s1362 = scalar_lea.vmem [#allocation0], 32
    %v1363 = vld [vmem:[%s1362] sm:%s1336]
    %s1364 = sshll.u32 1, 4
    %s1365 = ssub.s32 %s1364, 1
    %s1366 = smul.addr 4, 4
    %s1367 = scalar_lea.vmem %s1, %s1366
    %1368 = vst [vmem:[%s1367] sm:%s1365] %v1363
    %s1369 = scalar_lea.vmem [#allocation0], 40
    %v1370 = vld [vmem:[%s1369] sm:%s1336]
    %s1371 = sshll.u32 1, 4
    %s1372 = ssub.s32 %s1371, 1
    %s1373 = smul.addr 4, 5
    %s1374 = scalar_lea.vmem %s1, %s1373
    %1375 = vst [vmem:[%s1374] sm:%s1372] %v1370
    %s1376 = scalar_lea.vmem [#allocation0], 48
    %v1377 = vld [vmem:[%s1376] sm:%s1336]
    %s1378 = sshll.u32 1, 4
    %s1379 = ssub.s32 %s1378, 1
    %s1380 = smul.addr 4, 6
    %s1381 = scalar_lea.vmem %s1, %s1380
    %1382 = vst [vmem:[%s1381] sm:%s1379] %v1377
    %s1383 = scalar_lea.vmem [#allocation0], 56
    %v1384 = vld [vmem:[%s1383] sm:%s1336]
    %s1385 = sshll.u32 1, 4
    %s1386 = ssub.s32 %s1385, 1
    %s1387 = smul.addr 4, 7
    %s1388 = scalar_lea.vmem %s1, %s1387
    %1389 = vst [vmem:[%s1388] sm:%s1386] %v1384
    %s1390 = scalar_lea.vmem [#allocation0], 64
    %v1391 = vld [vmem:[%s1390] sm:%s1336]
    %s1392 = sshll.u32 1, 4
    %s1393 = ssub.s32 %s1392, 1
    %s1394 = smul.addr 4, 8
    %s1395 = scalar_lea.vmem %s1, %s1394
    %1396 = vst [vmem:[%s1395] sm:%s1393] %v1391
    %s1397 = scalar_lea.vmem [#allocation0], 72
    %v1398 = vld [vmem:[%s1397] sm:%s1336]
    %s1399 = sshll.u32 1, 4
    %s1400 = ssub.s32 %s1399, 1
    %s1401 = smul.addr 4, 9
    %s1402 = scalar_lea.vmem %s1, %s1401
    %1403 = vst [vmem:[%s1402] sm:%s1400] %v1398
    %s1404 = scalar_lea.vmem [#allocation0], 80
    %v1405 = vld [vmem:[%s1404] sm:%s1336]
    %s1406 = sshll.u32 1, 4
    %s1407 = ssub.s32 %s1406, 1
    %s1408 = smul.addr 4, 10
    %s1409 = scalar_lea.vmem %s1, %s1408
    %1410 = vst [vmem:[%s1409] sm:%s1407] %v1405
    %s1411 = scalar_lea.vmem [#allocation0], 88
    %v1412 = vld [vmem:[%s1411] sm:%s1336]
    %s1413 = sshll.u32 1, 4
    %s1414 = ssub.s32 %s1413, 1
    %s1415 = smul.addr 4, 11
    %s1416 = scalar_lea.vmem %s1, %s1415
    %1417 = vst [vmem:[%s1416] sm:%s1414] %v1412
    %s1418 = scalar_lea.vmem [#allocation0], 96
    %v1419 = vld [vmem:[%s1418] sm:%s1336]
    %s1420 = sshll.u32 1, 4
    %s1421 = ssub.s32 %s1420, 1
    %s1422 = smul.addr 4, 12
    %s1423 = scalar_lea.vmem %s1, %s1422
    %1424 = vst [vmem:[%s1423] sm:%s1421] %v1419
    %s1425 = scalar_lea.vmem [#allocation0], 104
    %v1426 = vld [vmem:[%s1425] sm:%s1336]
    %s1427 = sshll.u32 1, 4
    %s1428 = ssub.s32 %s1427, 1
    %s1429 = smul.addr 4, 13
    %s1430 = scalar_lea.vmem %s1, %s1429
    %1431 = vst [vmem:[%s1430] sm:%s1428] %v1426
    %s1432 = scalar_lea.vmem [#allocation0], 112
    %v1433 = vld [vmem:[%s1432] sm:%s1336]
    %s1434 = sshll.u32 1, 4
    %s1435 = ssub.s32 %s1434, 1
    %s1436 = smul.addr 4, 14
    %s1437 = scalar_lea.vmem %s1, %s1436
    %1438 = vst [vmem:[%s1437] sm:%s1435] %v1433
    %s1439 = scalar_lea.vmem [#allocation0], 120
    %v1440 = vld [vmem:[%s1439] sm:%s1336]
    %s1441 = sshll.u32 1, 4
    %s1442 = ssub.s32 %s1441, 1
    %s1443 = smul.addr 4, 15
    %s1444 = scalar_lea.vmem %s1, %s1443
    %1445 = vst [vmem:[%s1444] sm:%s1442] %v1440
    %s1446 = scalar_lea.vmem [#allocation0], 128
    %v1447 = vld [vmem:[%s1446] sm:%s1336]
    %s1448 = sshll.u32 1, 4
    %s1449 = ssub.s32 %s1448, 1
    %s1450 = smul.addr 4, 16
    %s1451 = scalar_lea.vmem %s1, %s1450
    %1452 = vst [vmem:[%s1451] sm:%s1449] %v1447
    %s1453 = scalar_lea.vmem [#allocation0], 136
    %v1454 = vld [vmem:[%s1453] sm:%s1336]
    %s1455 = sshll.u32 1, 4
    %s1456 = ssub.s32 %s1455, 1
    %s1457 = smul.addr 4, 17
    %s1458 = scalar_lea.vmem %s1, %s1457
    %1459 = vst [vmem:[%s1458] sm:%s1456] %v1454
    %s1460 = scalar_lea.vmem [#allocation0], 144
    %v1461 = vld [vmem:[%s1460] sm:%s1336]
    %s1462 = sshll.u32 1, 4
    %s1463 = ssub.s32 %s1462, 1
    %s1464 = smul.addr 4, 18
    %s1465 = scalar_lea.vmem %s1, %s1464
    %1466 = vst [vmem:[%s1465] sm:%s1463] %v1461
    %s1467 = scalar_lea.vmem [#allocation0], 152
    %v1468 = vld [vmem:[%s1467] sm:%s1336]
    %s1469 = sshll.u32 1, 4
    %s1470 = ssub.s32 %s1469, 1
    %s1471 = smul.addr 4, 19
    %s1472 = scalar_lea.vmem %s1, %s1471
    %1473 = vst [vmem:[%s1472] sm:%s1470] %v1468
    %s1474 = scalar_lea.vmem [#allocation0], 160
    %v1475 = vld [vmem:[%s1474] sm:%s1336]
    %s1476 = sshll.u32 1, 4
    %s1477 = ssub.s32 %s1476, 1
    %s1478 = smul.addr 4, 20
    %s1479 = scalar_lea.vmem %s1, %s1478
    %1480 = vst [vmem:[%s1479] sm:%s1477] %v1475
    %s1481 = scalar_lea.vmem [#allocation0], 168
    %v1482 = vld [vmem:[%s1481] sm:%s1336]
    %s1483 = sshll.u32 1, 4
    %s1484 = ssub.s32 %s1483, 1
    %s1485 = smul.addr 4, 21
    %s1486 = scalar_lea.vmem %s1, %s1485
    %1487 = vst [vmem:[%s1486] sm:%s1484] %v1482
    %s1488 = scalar_lea.vmem [#allocation0], 176
    %v1489 = vld [vmem:[%s1488] sm:%s1336]
    %s1490 = sshll.u32 1, 4
    %s1491 = ssub.s32 %s1490, 1
    %s1492 = smul.addr 4, 22
    %s1493 = scalar_lea.vmem %s1, %s1492
    %1494 = vst [vmem:[%s1493] sm:%s1491] %v1489
    %s1495 = scalar_lea.vmem [#allocation0], 184
    %v1496 = vld [vmem:[%s1495] sm:%s1336]
    %s1497 = sshll.u32 1, 4
    %s1498 = ssub.s32 %s1497, 1
    %s1499 = smul.addr 4, 23
    %s1500 = scalar_lea.vmem %s1, %s1499
    %1501 = vst [vmem:[%s1500] sm:%s1498] %v1496
    %s1502 = scalar_lea.vmem [#allocation0], 192
    %v1503 = vld [vmem:[%s1502] sm:%s1336]
    %s1504 = sshll.u32 1, 4
    %s1505 = ssub.s32 %s1504, 1
    %s1506 = smul.addr 4, 24
    %s1507 = scalar_lea.vmem %s1, %s1506
    %1508 = vst [vmem:[%s1507] sm:%s1505] %v1503
    %s1509 = scalar_lea.vmem [#allocation0], 200
    %v1510 = vld [vmem:[%s1509] sm:%s1336]
    %s1511 = sshll.u32 1, 4
    %s1512 = ssub.s32 %s1511, 1
    %s1513 = smul.addr 4, 25
    %s1514 = scalar_lea.vmem %s1, %s1513
    %1515 = vst [vmem:[%s1514] sm:%s1512] %v1510
    %s1516 = scalar_lea.vmem [#allocation0], 208
    %v1517 = vld [vmem:[%s1516] sm:%s1336]
    %s1518 = sshll.u32 1, 4
    %s1519 = ssub.s32 %s1518, 1
    %s1520 = smul.addr 4, 26
    %s1521 = scalar_lea.vmem %s1, %s1520
    %1522 = vst [vmem:[%s1521] sm:%s1519] %v1517
    %s1523 = scalar_lea.vmem [#allocation0], 216
    %v1524 = vld [vmem:[%s1523] sm:%s1336]
    %s1525 = sshll.u32 1, 4
    %s1526 = ssub.s32 %s1525, 1
    %s1527 = smul.addr 4, 27
    %s1528 = scalar_lea.vmem %s1, %s1527
    %1529 = vst [vmem:[%s1528] sm:%s1526] %v1524
    %s1530 = scalar_lea.vmem [#allocation0], 224
    %v1531 = vld [vmem:[%s1530] sm:%s1336]
    %s1532 = sshll.u32 1, 4
    %s1533 = ssub.s32 %s1532, 1
    %s1534 = smul.addr 4, 28
    %s1535 = scalar_lea.vmem %s1, %s1534
    %1536 = vst [vmem:[%s1535] sm:%s1533] %v1531
    %s1537 = scalar_lea.vmem [#allocation0], 232
    %v1538 = vld [vmem:[%s1537] sm:%s1336]
    %s1539 = sshll.u32 1, 4
    %s1540 = ssub.s32 %s1539, 1
    %s1541 = smul.addr 4, 29
    %s1542 = scalar_lea.vmem %s1, %s1541
    %1543 = vst [vmem:[%s1542] sm:%s1540] %v1538
    %s1544 = scalar_lea.vmem [#allocation0], 240
    %v1545 = vld [vmem:[%s1544] sm:%s1336]
    %s1546 = sshll.u32 1, 4
    %s1547 = ssub.s32 %s1546, 1
    %s1548 = smul.addr 4, 30
    %s1549 = scalar_lea.vmem %s1, %s1548
    %1550 = vst [vmem:[%s1549] sm:%s1547] %v1545
    %s1551 = scalar_lea.vmem [#allocation0], 248
    %v1552 = vld [vmem:[%s1551] sm:%s1336]
    %s1553 = sshll.u32 1, 4
    %s1554 = ssub.s32 %s1553, 1
    %s1555 = smul.addr 4, 31
    %s1556 = scalar_lea.vmem %s1, %s1555
    %1557 = vst [vmem:[%s1556] sm:%s1554] %v1552
    %s1558 = scalar_lea.vmem [#allocation0], 256
    %v1559 = vld [vmem:[%s1558] sm:%s1336]
    %s1560 = sshll.u32 1, 4
    %s1561 = ssub.s32 %s1560, 1
    %s1562 = smul.addr 4, 32
    %s1563 = scalar_lea.vmem %s1, %s1562
    %1564 = vst [vmem:[%s1563] sm:%s1561] %v1559
    %s1565 = scalar_lea.vmem [#allocation0], 264
    %v1566 = vld [vmem:[%s1565] sm:%s1336]
    %s1567 = sshll.u32 1, 4
    %s1568 = ssub.s32 %s1567, 1
    %s1569 = smul.addr 4, 33
    %s1570 = scalar_lea.vmem %s1, %s1569
    %1571 = vst [vmem:[%s1570] sm:%s1568] %v1566
    %s1572 = scalar_lea.vmem [#allocation0], 272
    %v1573 = vld [vmem:[%s1572] sm:%s1336]
    %s1574 = sshll.u32 1, 4
    %s1575 = ssub.s32 %s1574, 1
    %s1576 = smul.addr 4, 34
    %s1577 = scalar_lea.vmem %s1, %s1576
    %1578 = vst [vmem:[%s1577] sm:%s1575] %v1573
    %s1579 = scalar_lea.vmem [#allocation0], 280
    %v1580 = vld [vmem:[%s1579] sm:%s1336]
    %s1581 = sshll.u32 1, 4
    %s1582 = ssub.s32 %s1581, 1
    %s1583 = smul.addr 4, 35
    %s1584 = scalar_lea.vmem %s1, %s1583
    %1585 = vst [vmem:[%s1584] sm:%s1582] %v1580
    %s1586 = scalar_lea.vmem [#allocation0], 288
    %v1587 = vld [vmem:[%s1586] sm:%s1336]
    %s1588 = sshll.u32 1, 4
    %s1589 = ssub.s32 %s1588, 1
    %s1590 = smul.addr 4, 36
    %s1591 = scalar_lea.vmem %s1, %s1590
    %1592 = vst [vmem:[%s1591] sm:%s1589] %v1587
    %s1593 = scalar_lea.vmem [#allocation0], 296
    %v1594 = vld [vmem:[%s1593] sm:%s1336]
    %s1595 = sshll.u32 1, 4
    %s1596 = ssub.s32 %s1595, 1
    %s1597 = smul.addr 4, 37
    %s1598 = scalar_lea.vmem %s1, %s1597
    %1599 = vst [vmem:[%s1598] sm:%s1596] %v1594
    %s1600 = scalar_lea.vmem [#allocation0], 304
    %v1601 = vld [vmem:[%s1600] sm:%s1336]
    %s1602 = sshll.u32 1, 4
    %s1603 = ssub.s32 %s1602, 1
    %s1604 = smul.addr 4, 38
    %s1605 = scalar_lea.vmem %s1, %s1604
    %1606 = vst [vmem:[%s1605] sm:%s1603] %v1601
    %s1607 = scalar_lea.vmem [#allocation0], 312
    %v1608 = vld [vmem:[%s1607] sm:%s1336]
    %s1609 = sshll.u32 1, 4
    %s1610 = ssub.s32 %s1609, 1
    %s1611 = smul.addr 4, 39
    %s1612 = scalar_lea.vmem %s1, %s1611
    %1613 = vst [vmem:[%s1612] sm:%s1610] %v1608
    %s1614 = scalar_lea.vmem [#allocation0], 320
    %v1615 = vld [vmem:[%s1614] sm:%s1336]
    %s1616 = sshll.u32 1, 4
    %s1617 = ssub.s32 %s1616, 1
    %s1618 = smul.addr 4, 40
    %s1619 = scalar_lea.vmem %s1, %s1618
    %1620 = vst [vmem:[%s1619] sm:%s1617] %v1615
    %s1621 = scalar_lea.vmem [#allocation0], 328
    %v1622 = vld [vmem:[%s1621] sm:%s1336]
    %s1623 = sshll.u32 1, 4
    %s1624 = ssub.s32 %s1623, 1
    %s1625 = smul.addr 4, 41
    %s1626 = scalar_lea.vmem %s1, %s1625
    %1627 = vst [vmem:[%s1626] sm:%s1624] %v1622
    %s1628 = scalar_lea.vmem [#allocation0], 336
    %v1629 = vld [vmem:[%s1628] sm:%s1336]
    %s1630 = sshll.u32 1, 4
    %s1631 = ssub.s32 %s1630, 1
    %s1632 = smul.addr 4, 42
    %s1633 = scalar_lea.vmem %s1, %s1632
    %1634 = vst [vmem:[%s1633] sm:%s1631] %v1629
    %s1635 = scalar_lea.vmem [#allocation0], 344
    %v1636 = vld [vmem:[%s1635] sm:%s1336]
    %s1637 = sshll.u32 1, 4
    %s1638 = ssub.s32 %s1637, 1
    %s1639 = smul.addr 4, 43
    %s1640 = scalar_lea.vmem %s1, %s1639
    %1641 = vst [vmem:[%s1640] sm:%s1638] %v1636
    %s1642 = scalar_lea.vmem [#allocation0], 352
    %v1643 = vld [vmem:[%s1642] sm:%s1336]
    %s1644 = sshll.u32 1, 4
    %s1645 = ssub.s32 %s1644, 1
    %s1646 = smul.addr 4, 44
    %s1647 = scalar_lea.vmem %s1, %s1646
    %1648 = vst [vmem:[%s1647] sm:%s1645] %v1643
    %s1649 = scalar_lea.vmem [#allocation0], 360
    %v1650 = vld [vmem:[%s1649] sm:%s1336]
    %s1651 = sshll.u32 1, 4
    %s1652 = ssub.s32 %s1651, 1
    %s1653 = smul.addr 4, 45
    %s1654 = scalar_lea.vmem %s1, %s1653
    %1655 = vst [vmem:[%s1654] sm:%s1652] %v1650
    %s1656 = scalar_lea.vmem [#allocation0], 368
    %v1657 = vld [vmem:[%s1656] sm:%s1336]
    %s1658 = sshll.u32 1, 4
    %s1659 = ssub.s32 %s1658, 1
    %s1660 = smul.addr 4, 46
    %s1661 = scalar_lea.vmem %s1, %s1660
    %1662 = vst [vmem:[%s1661] sm:%s1659] %v1657
    %s1663 = scalar_lea.vmem [#allocation0], 376
    %v1664 = vld [vmem:[%s1663] sm:%s1336]
    %s1665 = sshll.u32 1, 4
    %s1666 = ssub.s32 %s1665, 1
    %s1667 = smul.addr 4, 47
    %s1668 = scalar_lea.vmem %s1, %s1667
    %1669 = vst [vmem:[%s1668] sm:%s1666] %v1664
    %s1670 = scalar_lea.vmem [#allocation0], 384
    %v1671 = vld [vmem:[%s1670] sm:%s1336]
    %s1672 = sshll.u32 1, 4
    %s1673 = ssub.s32 %s1672, 1
    %s1674 = smul.addr 4, 48
    %s1675 = scalar_lea.vmem %s1, %s1674
    %1676 = vst [vmem:[%s1675] sm:%s1673] %v1671
    %s1677 = scalar_lea.vmem [#allocation0], 392
    %v1678 = vld [vmem:[%s1677] sm:%s1336]
    %s1679 = sshll.u32 1, 4
    %s1680 = ssub.s32 %s1679, 1
    %s1681 = smul.addr 4, 49
    %s1682 = scalar_lea.vmem %s1, %s1681
    %1683 = vst [vmem:[%s1682] sm:%s1680] %v1678
    %s1684 = scalar_lea.vmem [#allocation0], 400
    %v1685 = vld [vmem:[%s1684] sm:%s1336]
    %s1686 = sshll.u32 1, 4
    %s1687 = ssub.s32 %s1686, 1
    %s1688 = smul.addr 4, 50
    %s1689 = scalar_lea.vmem %s1, %s1688
    %1690 = vst [vmem:[%s1689] sm:%s1687] %v1685
    %s1691 = scalar_lea.vmem [#allocation0], 408
    %v1692 = vld [vmem:[%s1691] sm:%s1336]
    %s1693 = sshll.u32 1, 4
    %s1694 = ssub.s32 %s1693, 1
    %s1695 = smul.addr 4, 51
    %s1696 = scalar_lea.vmem %s1, %s1695
    %1697 = vst [vmem:[%s1696] sm:%s1694] %v1692
    %s1698 = scalar_lea.vmem [#allocation0], 416
    %v1699 = vld [vmem:[%s1698] sm:%s1336]
    %s1700 = sshll.u32 1, 4
    %s1701 = ssub.s32 %s1700, 1
    %s1702 = smul.addr 4, 52
    %s1703 = scalar_lea.vmem %s1, %s1702
    %1704 = vst [vmem:[%s1703] sm:%s1701] %v1699
    %s1705 = scalar_lea.vmem [#allocation0], 424
    %v1706 = vld [vmem:[%s1705] sm:%s1336]
    %s1707 = sshll.u32 1, 4
    %s1708 = ssub.s32 %s1707, 1
    %s1709 = smul.addr 4, 53
    %s1710 = scalar_lea.vmem %s1, %s1709
    %1711 = vst [vmem:[%s1710] sm:%s1708] %v1706
    %s1712 = scalar_lea.vmem [#allocation0], 432
    %v1713 = vld [vmem:[%s1712] sm:%s1336]
    %s1714 = sshll.u32 1, 4
    %s1715 = ssub.s32 %s1714, 1
    %s1716 = smul.addr 4, 54
    %s1717 = scalar_lea.vmem %s1, %s1716
    %1718 = vst [vmem:[%s1717] sm:%s1715] %v1713
    %s1719 = scalar_lea.vmem [#allocation0], 440
    %v1720 = vld [vmem:[%s1719] sm:%s1336]
    %s1721 = sshll.u32 1, 4
    %s1722 = ssub.s32 %s1721, 1
    %s1723 = smul.addr 4, 55
    %s1724 = scalar_lea.vmem %s1, %s1723
    %1725 = vst [vmem:[%s1724] sm:%s1722] %v1720
    %s1726 = scalar_lea.vmem [#allocation0], 448
    %v1727 = vld [vmem:[%s1726] sm:%s1336]
    %s1728 = sshll.u32 1, 4
    %s1729 = ssub.s32 %s1728, 1
    %s1730 = smul.addr 4, 56
    %s1731 = scalar_lea.vmem %s1, %s1730
    %1732 = vst [vmem:[%s1731] sm:%s1729] %v1727
    %s1733 = scalar_lea.vmem [#allocation0], 456
    %v1734 = vld [vmem:[%s1733] sm:%s1336]
    %s1735 = sshll.u32 1, 4
    %s1736 = ssub.s32 %s1735, 1
    %s1737 = smul.addr 4, 57
    %s1738 = scalar_lea.vmem %s1, %s1737
    %1739 = vst [vmem:[%s1738] sm:%s1736] %v1734
    %s1740 = scalar_lea.vmem [#allocation0], 464
    %v1741 = vld [vmem:[%s1740] sm:%s1336]
    %s1742 = sshll.u32 1, 4
    %s1743 = ssub.s32 %s1742, 1
    %s1744 = smul.addr 4, 58
    %s1745 = scalar_lea.vmem %s1, %s1744
    %1746 = vst [vmem:[%s1745] sm:%s1743] %v1741
    %s1747 = scalar_lea.vmem [#allocation0], 472
    %v1748 = vld [vmem:[%s1747] sm:%s1336]
    %s1749 = sshll.u32 1, 4
    %s1750 = ssub.s32 %s1749, 1
    %s1751 = smul.addr 4, 59
    %s1752 = scalar_lea.vmem %s1, %s1751
    %1753 = vst [vmem:[%s1752] sm:%s1750] %v1748
    %s1754 = scalar_lea.vmem [#allocation0], 480
    %v1755 = vld [vmem:[%s1754] sm:%s1336]
    %s1756 = sshll.u32 1, 4
    %s1757 = ssub.s32 %s1756, 1
    %s1758 = smul.addr 4, 60
    %s1759 = scalar_lea.vmem %s1, %s1758
    %1760 = vst [vmem:[%s1759] sm:%s1757] %v1755
    %s1761 = scalar_lea.vmem [#allocation0], 488
    %v1762 = vld [vmem:[%s1761] sm:%s1336]
    %s1763 = sshll.u32 1, 4
    %s1764 = ssub.s32 %s1763, 1
    %s1765 = smul.addr 4, 61
    %s1766 = scalar_lea.vmem %s1, %s1765
    %1767 = vst [vmem:[%s1766] sm:%s1764] %v1762
    %s1768 = scalar_lea.vmem [#allocation0], 496
    %v1769 = vld [vmem:[%s1768] sm:%s1336]
    %s1770 = sshll.u32 1, 4
    %s1771 = ssub.s32 %s1770, 1
    %s1772 = smul.addr 4, 62
    %s1773 = scalar_lea.vmem %s1, %s1772
    %1774 = vst [vmem:[%s1773] sm:%s1771] %v1769
    %s1775 = scalar_lea.vmem [#allocation0], 504
    %v1776 = vld [vmem:[%s1775] sm:%s1336]
    %s1777 = sshll.u32 1, 4
    %s1778 = ssub.s32 %s1777, 1
    %s1779 = smul.addr 4, 63
    %s1780 = scalar_lea.vmem %s1, %s1779
    %1781 = vst [vmem:[%s1780] sm:%s1778] %v1776
    %s1782 = scalar_lea.vmem [#allocation0], 512
    %v1783 = vld [vmem:[%s1782] sm:%s1336]
    %s1784 = sshll.u32 1, 4
    %s1785 = ssub.s32 %s1784, 1
    %s1786 = smul.addr 4, 64
    %s1787 = scalar_lea.vmem %s1, %s1786
    %1788 = vst [vmem:[%s1787] sm:%s1785] %v1783
    %s1789 = scalar_lea.vmem [#allocation0], 520
    %v1790 = vld [vmem:[%s1789] sm:%s1336]
    %s1791 = sshll.u32 1, 4
    %s1792 = ssub.s32 %s1791, 1
    %s1793 = smul.addr 4, 65
    %s1794 = scalar_lea.vmem %s1, %s1793
    %1795 = vst [vmem:[%s1794] sm:%s1792] %v1790
    %s1796 = scalar_lea.vmem [#allocation0], 528
    %v1797 = vld [vmem:[%s1796] sm:%s1336]
    %s1798 = sshll.u32 1, 4
    %s1799 = ssub.s32 %s1798, 1
    %s1800 = smul.addr 4, 66
    %s1801 = scalar_lea.vmem %s1, %s1800
    %1802 = vst [vmem:[%s1801] sm:%s1799] %v1797
    %s1803 = scalar_lea.vmem [#allocation0], 536
    %v1804 = vld [vmem:[%s1803] sm:%s1336]
    %s1805 = sshll.u32 1, 4
    %s1806 = ssub.s32 %s1805, 1
    %s1807 = smul.addr 4, 67
    %s1808 = scalar_lea.vmem %s1, %s1807
    %1809 = vst [vmem:[%s1808] sm:%s1806] %v1804
    %s1810 = scalar_lea.vmem [#allocation0], 544
    %v1811 = vld [vmem:[%s1810] sm:%s1336]
    %s1812 = sshll.u32 1, 4
    %s1813 = ssub.s32 %s1812, 1
    %s1814 = smul.addr 4, 68
    %s1815 = scalar_lea.vmem %s1, %s1814
    %1816 = vst [vmem:[%s1815] sm:%s1813] %v1811
    %s1817 = scalar_lea.vmem [#allocation0], 552
    %v1818 = vld [vmem:[%s1817] sm:%s1336]
    %s1819 = sshll.u32 1, 4
    %s1820 = ssub.s32 %s1819, 1
    %s1821 = smul.addr 4, 69
    %s1822 = scalar_lea.vmem %s1, %s1821
    %1823 = vst [vmem:[%s1822] sm:%s1820] %v1818
    %s1824 = scalar_lea.vmem [#allocation0], 560
    %v1825 = vld [vmem:[%s1824] sm:%s1336]
    %s1826 = sshll.u32 1, 4
    %s1827 = ssub.s32 %s1826, 1
    %s1828 = smul.addr 4, 70
    %s1829 = scalar_lea.vmem %s1, %s1828
    %1830 = vst [vmem:[%s1829] sm:%s1827] %v1825
    %s1831 = scalar_lea.vmem [#allocation0], 568
    %v1832 = vld [vmem:[%s1831] sm:%s1336]
    %s1833 = sshll.u32 1, 4
    %s1834 = ssub.s32 %s1833, 1
    %s1835 = smul.addr 4, 71
    %s1836 = scalar_lea.vmem %s1, %s1835
    %1837 = vst [vmem:[%s1836] sm:%s1834] %v1832
    %s1838 = scalar_lea.vmem [#allocation0], 576
    %v1839 = vld [vmem:[%s1838] sm:%s1336]
    %s1840 = sshll.u32 1, 4
    %s1841 = ssub.s32 %s1840, 1
    %s1842 = smul.addr 4, 72
    %s1843 = scalar_lea.vmem %s1, %s1842
    %1844 = vst [vmem:[%s1843] sm:%s1841] %v1839
    %s1845 = scalar_lea.vmem [#allocation0], 584
    %v1846 = vld [vmem:[%s1845] sm:%s1336]
    %s1847 = sshll.u32 1, 4
    %s1848 = ssub.s32 %s1847, 1
    %s1849 = smul.addr 4, 73
    %s1850 = scalar_lea.vmem %s1, %s1849
    %1851 = vst [vmem:[%s1850] sm:%s1848] %v1846
    %s1852 = scalar_lea.vmem [#allocation0], 592
    %v1853 = vld [vmem:[%s1852] sm:%s1336]
    %s1854 = sshll.u32 1, 4
    %s1855 = ssub.s32 %s1854, 1
    %s1856 = smul.addr 4, 74
    %s1857 = scalar_lea.vmem %s1, %s1856
    %1858 = vst [vmem:[%s1857] sm:%s1855] %v1853
    %s1859 = scalar_lea.vmem [#allocation0], 600
    %v1860 = vld [vmem:[%s1859] sm:%s1336]
    %s1861 = sshll.u32 1, 4
    %s1862 = ssub.s32 %s1861, 1
    %s1863 = smul.addr 4, 75
    %s1864 = scalar_lea.vmem %s1, %s1863
    %1865 = vst [vmem:[%s1864] sm:%s1862] %v1860
    %s1866 = scalar_lea.vmem [#allocation0], 608
    %v1867 = vld [vmem:[%s1866] sm:%s1336]
    %s1868 = sshll.u32 1, 4
    %s1869 = ssub.s32 %s1868, 1
    %s1870 = smul.addr 4, 76
    %s1871 = scalar_lea.vmem %s1, %s1870
    %1872 = vst [vmem:[%s1871] sm:%s1869] %v1867
    %s1873 = scalar_lea.vmem [#allocation0], 616
    %v1874 = vld [vmem:[%s1873] sm:%s1336]
    %s1875 = sshll.u32 1, 4
    %s1876 = ssub.s32 %s1875, 1
    %s1877 = smul.addr 4, 77
    %s1878 = scalar_lea.vmem %s1, %s1877
    %1879 = vst [vmem:[%s1878] sm:%s1876] %v1874
    %s1880 = scalar_lea.vmem [#allocation0], 624
    %v1881 = vld [vmem:[%s1880] sm:%s1336]
    %s1882 = sshll.u32 1, 4
    %s1883 = ssub.s32 %s1882, 1
    %s1884 = smul.addr 4, 78
    %s1885 = scalar_lea.vmem %s1, %s1884
    %1886 = vst [vmem:[%s1885] sm:%s1883] %v1881
    %s1887 = scalar_lea.vmem [#allocation0], 632
    %v1888 = vld [vmem:[%s1887] sm:%s1336]
    %s1889 = sshll.u32 1, 4
    %s1890 = ssub.s32 %s1889, 1
    %s1891 = smul.addr 4, 79
    %s1892 = scalar_lea.vmem %s1, %s1891
    %1893 = vst [vmem:[%s1892] sm:%s1890] %v1888
    %s1894 = scalar_lea.vmem [#allocation0], 640
    %v1895 = vld [vmem:[%s1894] sm:%s1336]
    %s1896 = sshll.u32 1, 4
    %s1897 = ssub.s32 %s1896, 1
    %s1898 = smul.addr 4, 80
    %s1899 = scalar_lea.vmem %s1, %s1898
    %1900 = vst [vmem:[%s1899] sm:%s1897] %v1895
    %s1901 = scalar_lea.vmem [#allocation0], 648
    %v1902 = vld [vmem:[%s1901] sm:%s1336]
    %s1903 = sshll.u32 1, 4
    %s1904 = ssub.s32 %s1903, 1
    %s1905 = smul.addr 4, 81
    %s1906 = scalar_lea.vmem %s1, %s1905
    %1907 = vst [vmem:[%s1906] sm:%s1904] %v1902
    %s1908 = scalar_lea.vmem [#allocation0], 656
    %v1909 = vld [vmem:[%s1908] sm:%s1336]
    %s1910 = sshll.u32 1, 4
    %s1911 = ssub.s32 %s1910, 1
    %s1912 = smul.addr 4, 82
    %s1913 = scalar_lea.vmem %s1, %s1912
    %1914 = vst [vmem:[%s1913] sm:%s1911] %v1909
    %s1915 = scalar_lea.vmem [#allocation0], 664
    %v1916 = vld [vmem:[%s1915] sm:%s1336]
    %s1917 = sshll.u32 1, 4
    %s1918 = ssub.s32 %s1917, 1
    %s1919 = smul.addr 4, 83
    %s1920 = scalar_lea.vmem %s1, %s1919
    %1921 = vst [vmem:[%s1920] sm:%s1918] %v1916
    %s1922 = scalar_lea.vmem [#allocation0], 672
    %v1923 = vld [vmem:[%s1922] sm:%s1336]
    %s1924 = sshll.u32 1, 4
    %s1925 = ssub.s32 %s1924, 1
    %s1926 = smul.addr 4, 84
    %s1927 = scalar_lea.vmem %s1, %s1926
    %1928 = vst [vmem:[%s1927] sm:%s1925] %v1923
    %s1929 = scalar_lea.vmem [#allocation0], 680
    %v1930 = vld [vmem:[%s1929] sm:%s1336]
    %s1931 = sshll.u32 1, 4
    %s1932 = ssub.s32 %s1931, 1
    %s1933 = smul.addr 4, 85
    %s1934 = scalar_lea.vmem %s1, %s1933
    %1935 = vst [vmem:[%s1934] sm:%s1932] %v1930
    %s1936 = scalar_lea.vmem [#allocation0], 688
    %v1937 = vld [vmem:[%s1936] sm:%s1336]
    %s1938 = sshll.u32 1, 4
    %s1939 = ssub.s32 %s1938, 1
    %s1940 = smul.addr 4, 86
    %s1941 = scalar_lea.vmem %s1, %s1940
    %1942 = vst [vmem:[%s1941] sm:%s1939] %v1937
    %s1943 = scalar_lea.vmem [#allocation0], 696
    %v1944 = vld [vmem:[%s1943] sm:%s1336]
    %s1945 = sshll.u32 1, 4
    %s1946 = ssub.s32 %s1945, 1
    %s1947 = smul.addr 4, 87
    %s1948 = scalar_lea.vmem %s1, %s1947
    %1949 = vst [vmem:[%s1948] sm:%s1946] %v1944
    %s1950 = scalar_lea.vmem [#allocation0], 704
    %v1951 = vld [vmem:[%s1950] sm:%s1336]
    %s1952 = sshll.u32 1, 4
    %s1953 = ssub.s32 %s1952, 1
    %s1954 = smul.addr 4, 88
    %s1955 = scalar_lea.vmem %s1, %s1954
    %1956 = vst [vmem:[%s1955] sm:%s1953] %v1951
    %s1957 = scalar_lea.vmem [#allocation0], 712
    %v1958 = vld [vmem:[%s1957] sm:%s1336]
    %s1959 = sshll.u32 1, 4
    %s1960 = ssub.s32 %s1959, 1
    %s1961 = smul.addr 4, 89
    %s1962 = scalar_lea.vmem %s1, %s1961
    %1963 = vst [vmem:[%s1962] sm:%s1960] %v1958
    %s1964 = scalar_lea.vmem [#allocation0], 720
    %v1965 = vld [vmem:[%s1964] sm:%s1336]
    %s1966 = sshll.u32 1, 4
    %s1967 = ssub.s32 %s1966, 1
    %s1968 = smul.addr 4, 90
    %s1969 = scalar_lea.vmem %s1, %s1968
    %1970 = vst [vmem:[%s1969] sm:%s1967] %v1965
    %s1971 = scalar_lea.vmem [#allocation0], 728
    %v1972 = vld [vmem:[%s1971] sm:%s1336]
    %s1973 = sshll.u32 1, 4
    %s1974 = ssub.s32 %s1973, 1
    %s1975 = smul.addr 4, 91
    %s1976 = scalar_lea.vmem %s1, %s1975
    %1977 = vst [vmem:[%s1976] sm:%s1974] %v1972
    %s1978 = scalar_lea.vmem [#allocation0], 736
    %v1979 = vld [vmem:[%s1978] sm:%s1336]
    %s1980 = sshll.u32 1, 4
    %s1981 = ssub.s32 %s1980, 1
    %s1982 = smul.addr 4, 92
    %s1983 = scalar_lea.vmem %s1, %s1982
    %1984 = vst [vmem:[%s1983] sm:%s1981] %v1979
    %s1985 = scalar_lea.vmem [#allocation0], 744
    %v1986 = vld [vmem:[%s1985] sm:%s1336]
    %s1987 = sshll.u32 1, 4
    %s1988 = ssub.s32 %s1987, 1
    %s1989 = smul.addr 4, 93
    %s1990 = scalar_lea.vmem %s1, %s1989
    %1991 = vst [vmem:[%s1990] sm:%s1988] %v1986
    %s1992 = scalar_lea.vmem [#allocation0], 752
    %v1993 = vld [vmem:[%s1992] sm:%s1336]
    %s1994 = sshll.u32 1, 4
    %s1995 = ssub.s32 %s1994, 1
    %s1996 = smul.addr 4, 94
    %s1997 = scalar_lea.vmem %s1, %s1996
    %1998 = vst [vmem:[%s1997] sm:%s1995] %v1993
    %s1999 = scalar_lea.vmem [#allocation0], 760
    %v2000 = vld [vmem:[%s1999] sm:%s1336]
    %s2001 = sshll.u32 1, 4
    %s2002 = ssub.s32 %s2001, 1
    %s2003 = smul.addr 4, 95
    %s2004 = scalar_lea.vmem %s1, %s2003
    %2005 = vst [vmem:[%s2004] sm:%s2002] %v2000
    %s2006 = scalar_lea.vmem [#allocation0], 768
    %v2007 = vld [vmem:[%s2006] sm:%s1336]
    %s2008 = sshll.u32 1, 4
    %s2009 = ssub.s32 %s2008, 1
    %s2010 = smul.addr 4, 96
    %s2011 = scalar_lea.vmem %s1, %s2010
    %2012 = vst [vmem:[%s2011] sm:%s2009] %v2007
    %s2013 = scalar_lea.vmem [#allocation0], 776
    %v2014 = vld [vmem:[%s2013] sm:%s1336]
    %s2015 = sshll.u32 1, 4
    %s2016 = ssub.s32 %s2015, 1
    %s2017 = smul.addr 4, 97
    %s2018 = scalar_lea.vmem %s1, %s2017
    %2019 = vst [vmem:[%s2018] sm:%s2016] %v2014
    %s2020 = scalar_lea.vmem [#allocation0], 784
    %v2021 = vld [vmem:[%s2020] sm:%s1336]
    %s2022 = sshll.u32 1, 4
    %s2023 = ssub.s32 %s2022, 1
    %s2024 = smul.addr 4, 98
    %s2025 = scalar_lea.vmem %s1, %s2024
    %2026 = vst [vmem:[%s2025] sm:%s2023] %v2021
    %s2027 = scalar_lea.vmem [#allocation0], 792
    %v2028 = vld [vmem:[%s2027] sm:%s1336]
    %s2029 = sshll.u32 1, 4
    %s2030 = ssub.s32 %s2029, 1
    %s2031 = smul.addr 4, 99
    %s2032 = scalar_lea.vmem %s1, %s2031
    %2033 = vst [vmem:[%s2032] sm:%s2030] %v2028
    %s2034 = scalar_lea.vmem [#allocation0], 800
    %v2035 = vld [vmem:[%s2034] sm:%s1336]
    %s2036 = sshll.u32 1, 4
    %s2037 = ssub.s32 %s2036, 1
    %s2038 = smul.addr 4, 100
    %s2039 = scalar_lea.vmem %s1, %s2038
    %2040 = vst [vmem:[%s2039] sm:%s2037] %v2035
    %s2041 = scalar_lea.vmem [#allocation0], 808
    %v2042 = vld [vmem:[%s2041] sm:%s1336]
    %s2043 = sshll.u32 1, 4
    %s2044 = ssub.s32 %s2043, 1
    %s2045 = smul.addr 4, 101
    %s2046 = scalar_lea.vmem %s1, %s2045
    %2047 = vst [vmem:[%s2046] sm:%s2044] %v2042
    %s2048 = scalar_lea.vmem [#allocation0], 816
    %v2049 = vld [vmem:[%s2048] sm:%s1336]
    %s2050 = sshll.u32 1, 4
    %s2051 = ssub.s32 %s2050, 1
    %s2052 = smul.addr 4, 102
    %s2053 = scalar_lea.vmem %s1, %s2052
    %2054 = vst [vmem:[%s2053] sm:%s2051] %v2049
    %s2055 = scalar_lea.vmem [#allocation0], 824
    %v2056 = vld [vmem:[%s2055] sm:%s1336]
    %s2057 = sshll.u32 1, 4
    %s2058 = ssub.s32 %s2057, 1
    %s2059 = smul.addr 4, 103
    %s2060 = scalar_lea.vmem %s1, %s2059
    %2061 = vst [vmem:[%s2060] sm:%s2058] %v2056
    %s2062 = scalar_lea.vmem [#allocation0], 832
    %v2063 = vld [vmem:[%s2062] sm:%s1336]
    %s2064 = sshll.u32 1, 4
    %s2065 = ssub.s32 %s2064, 1
    %s2066 = smul.addr 4, 104
    %s2067 = scalar_lea.vmem %s1, %s2066
    %2068 = vst [vmem:[%s2067] sm:%s2065] %v2063
    %s2069 = scalar_lea.vmem [#allocation0], 840
    %v2070 = vld [vmem:[%s2069] sm:%s1336]
    %s2071 = sshll.u32 1, 4
    %s2072 = ssub.s32 %s2071, 1
    %s2073 = smul.addr 4, 105
    %s2074 = scalar_lea.vmem %s1, %s2073
    %2075 = vst [vmem:[%s2074] sm:%s2072] %v2070
    %s2076 = scalar_lea.vmem [#allocation0], 848
    %v2077 = vld [vmem:[%s2076] sm:%s1336]
    %s2078 = sshll.u32 1, 4
    %s2079 = ssub.s32 %s2078, 1
    %s2080 = smul.addr 4, 106
    %s2081 = scalar_lea.vmem %s1, %s2080
    %2082 = vst [vmem:[%s2081] sm:%s2079] %v2077
    %s2083 = scalar_lea.vmem [#allocation0], 856
    %v2084 = vld [vmem:[%s2083] sm:%s1336]
    %s2085 = sshll.u32 1, 4
    %s2086 = ssub.s32 %s2085, 1
    %s2087 = smul.addr 4, 107
    %s2088 = scalar_lea.vmem %s1, %s2087
    %2089 = vst [vmem:[%s2088] sm:%s2086] %v2084
    %s2090 = scalar_lea.vmem [#allocation0], 864
    %v2091 = vld [vmem:[%s2090] sm:%s1336]
    %s2092 = sshll.u32 1, 4
    %s2093 = ssub.s32 %s2092, 1
    %s2094 = smul.addr 4, 108
    %s2095 = scalar_lea.vmem %s1, %s2094
    %2096 = vst [vmem:[%s2095] sm:%s2093] %v2091
    %s2097 = scalar_lea.vmem [#allocation0], 872
    %v2098 = vld [vmem:[%s2097] sm:%s1336]
    %s2099 = sshll.u32 1, 4
    %s2100 = ssub.s32 %s2099, 1
    %s2101 = smul.addr 4, 109
    %s2102 = scalar_lea.vmem %s1, %s2101
    %2103 = vst [vmem:[%s2102] sm:%s2100] %v2098
    %s2104 = scalar_lea.vmem [#allocation0], 880
    %v2105 = vld [vmem:[%s2104] sm:%s1336]
    %s2106 = sshll.u32 1, 4
    %s2107 = ssub.s32 %s2106, 1
    %s2108 = smul.addr 4, 110
    %s2109 = scalar_lea.vmem %s1, %s2108
    %2110 = vst [vmem:[%s2109] sm:%s2107] %v2105
    %s2111 = scalar_lea.vmem [#allocation0], 888
    %v2112 = vld [vmem:[%s2111] sm:%s1336]
    %s2113 = sshll.u32 1, 4
    %s2114 = ssub.s32 %s2113, 1
    %s2115 = smul.addr 4, 111
    %s2116 = scalar_lea.vmem %s1, %s2115
    %2117 = vst [vmem:[%s2116] sm:%s2114] %v2112
    %s2118 = scalar_lea.vmem [#allocation0], 896
    %v2119 = vld [vmem:[%s2118] sm:%s1336]
    %s2120 = sshll.u32 1, 4
    %s2121 = ssub.s32 %s2120, 1
    %s2122 = smul.addr 4, 112
    %s2123 = scalar_lea.vmem %s1, %s2122
    %2124 = vst [vmem:[%s2123] sm:%s2121] %v2119
    %s2125 = scalar_lea.vmem [#allocation0], 904
    %v2126 = vld [vmem:[%s2125] sm:%s1336]
    %s2127 = sshll.u32 1, 4
    %s2128 = ssub.s32 %s2127, 1
    %s2129 = smul.addr 4, 113
    %s2130 = scalar_lea.vmem %s1, %s2129
    %2131 = vst [vmem:[%s2130] sm:%s2128] %v2126
    %s2132 = scalar_lea.vmem [#allocation0], 912
    %v2133 = vld [vmem:[%s2132] sm:%s1336]
    %s2134 = sshll.u32 1, 4
    %s2135 = ssub.s32 %s2134, 1
    %s2136 = smul.addr 4, 114
    %s2137 = scalar_lea.vmem %s1, %s2136
    %2138 = vst [vmem:[%s2137] sm:%s2135] %v2133
    %s2139 = scalar_lea.vmem [#allocation0], 920
    %v2140 = vld [vmem:[%s2139] sm:%s1336]
    %s2141 = sshll.u32 1, 4
    %s2142 = ssub.s32 %s2141, 1
    %s2143 = smul.addr 4, 115
    %s2144 = scalar_lea.vmem %s1, %s2143
    %2145 = vst [vmem:[%s2144] sm:%s2142] %v2140
    %s2146 = scalar_lea.vmem [#allocation0], 928
    %v2147 = vld [vmem:[%s2146] sm:%s1336]
    %s2148 = sshll.u32 1, 4
    %s2149 = ssub.s32 %s2148, 1
    %s2150 = smul.addr 4, 116
    %s2151 = scalar_lea.vmem %s1, %s2150
    %2152 = vst [vmem:[%s2151] sm:%s2149] %v2147
    %s2153 = scalar_lea.vmem [#allocation0], 936
    %v2154 = vld [vmem:[%s2153] sm:%s1336]
    %s2155 = sshll.u32 1, 4
    %s2156 = ssub.s32 %s2155, 1
    %s2157 = smul.addr 4, 117
    %s2158 = scalar_lea.vmem %s1, %s2157
    %2159 = vst [vmem:[%s2158] sm:%s2156] %v2154
    %s2160 = scalar_lea.vmem [#allocation0], 944
    %v2161 = vld [vmem:[%s2160] sm:%s1336]
    %s2162 = sshll.u32 1, 4
    %s2163 = ssub.s32 %s2162, 1
    %s2164 = smul.addr 4, 118
    %s2165 = scalar_lea.vmem %s1, %s2164
    %2166 = vst [vmem:[%s2165] sm:%s2163] %v2161
    %s2167 = scalar_lea.vmem [#allocation0], 952
    %v2168 = vld [vmem:[%s2167] sm:%s1336]
    %s2169 = sshll.u32 1, 4
    %s2170 = ssub.s32 %s2169, 1
    %s2171 = smul.addr 4, 119
    %s2172 = scalar_lea.vmem %s1, %s2171
    %2173 = vst [vmem:[%s2172] sm:%s2170] %v2168
    %s2174 = scalar_lea.vmem [#allocation0], 960
    %v2175 = vld [vmem:[%s2174] sm:%s1336]
    %s2176 = sshll.u32 1, 4
    %s2177 = ssub.s32 %s2176, 1
    %s2178 = smul.addr 4, 120
    %s2179 = scalar_lea.vmem %s1, %s2178
    %2180 = vst [vmem:[%s2179] sm:%s2177] %v2175
    %s2181 = scalar_lea.vmem [#allocation0], 968
    %v2182 = vld [vmem:[%s2181] sm:%s1336]
    %s2183 = sshll.u32 1, 4
    %s2184 = ssub.s32 %s2183, 1
    %s2185 = smul.addr 4, 121
    %s2186 = scalar_lea.vmem %s1, %s2185
    %2187 = vst [vmem:[%s2186] sm:%s2184] %v2182
    %s2188 = scalar_lea.vmem [#allocation0], 976
    %v2189 = vld [vmem:[%s2188] sm:%s1336]
    %s2190 = sshll.u32 1, 4
    %s2191 = ssub.s32 %s2190, 1
    %s2192 = smul.addr 4, 122
    %s2193 = scalar_lea.vmem %s1, %s2192
    %2194 = vst [vmem:[%s2193] sm:%s2191] %v2189
    %s2195 = scalar_lea.vmem [#allocation0], 984
    %v2196 = vld [vmem:[%s2195] sm:%s1336]
    %s2197 = sshll.u32 1, 4
    %s2198 = ssub.s32 %s2197, 1
    %s2199 = smul.addr 4, 123
    %s2200 = scalar_lea.vmem %s1, %s2199
    %2201 = vst [vmem:[%s2200] sm:%s2198] %v2196
    %s2202 = scalar_lea.vmem [#allocation0], 992
    %v2203 = vld [vmem:[%s2202] sm:%s1336]
    %s2204 = sshll.u32 1, 4
    %s2205 = ssub.s32 %s2204, 1
    %s2206 = smul.addr 4, 124
    %s2207 = scalar_lea.vmem %s1, %s2206
    %2208 = vst [vmem:[%s2207] sm:%s2205] %v2203
    %s2209 = scalar_lea.vmem [#allocation0], 1000
    %v2210 = vld [vmem:[%s2209] sm:%s1336]
    %s2211 = sshll.u32 1, 4
    %s2212 = ssub.s32 %s2211, 1
    %s2213 = smul.addr 4, 125
    %s2214 = scalar_lea.vmem %s1, %s2213
    %2215 = vst [vmem:[%s2214] sm:%s2212] %v2210
    %s2216 = scalar_lea.vmem [#allocation0], 1008
    %v2217 = vld [vmem:[%s2216] sm:%s1336]
    %s2218 = sshll.u32 1, 4
    %s2219 = ssub.s32 %s2218, 1
    %s2220 = smul.addr 4, 126
    %s2221 = scalar_lea.vmem %s1, %s2220
    %2222 = vst [vmem:[%s2221] sm:%s2219] %v2217
    %s2223 = scalar_lea.vmem [#allocation0], 1016
    %v2224 = vld [vmem:[%s2223] sm:%s1336]
    %s2225 = sshll.u32 1, 4
    %s2226 = ssub.s32 %s2225, 1
    %s2227 = smul.addr 4, 127
    %s2228 = scalar_lea.vmem %s1, %s2227
    %2229 = vst [vmem:[%s2228] sm:%s2226] %v2224

// kernel: _lambda_.1
$region0: #{_lambda_.1}
  #allocation0 [shape = 'u32[]', space=smem, size = 0x4, offset = 0x4, fixed_abs, tag = 'smem constant byte address 0x4 - core index']
  #allocation1 [shape = 'u32[144,128]{1,0:T(1,128)}', space=vmem, size = 0x12000, scoped, tag = 'internal scratch']
  %s0 = inlined_call_operand.vmem [shape: bf16[2,4,2,256], index: 0, kind: input, shape index: {}]
  %s1 = inlined_call_operand.vmem [shape: bf16[2,4,4,256], index: 1, kind: input, shape index: {}]
  %s2 = inlined_call_operand.vmem [shape: f32[2,2,4,256], index: 2, kind: output, shape index: {}]
  %s3 = sld [smem:[#allocation0]]
  $region18: #{_lambda_.1} parent=0
    _
  %s5 = ssub.s32 1, %s3
  %s6 = scalar_select 0, %s5, %s3
  // Predicated region
  $region2: #{_lambda_.1} parent=0 // pred_check
    _
  $region3: #{_lambda_.1} parent=0 // pred_check_branch
    %8 = sbr.rel (0) target = $region5
  $region4: #{_lambda_.1} parent=0 // pred_region
    _
  $region5: #{_lambda_.1} parent=0 // pred_fallthru
    _
  // Predicated region
  $region6: #{_lambda_.1} parent=0 // pred_check
    _
  $region7: #{_lambda_.1} parent=0 // pred_check_branch
    %10 = sbr.rel (0) target = $region9
  $region8: #{_lambda_.1} parent=0 // pred_region
    _
  $region9: #{_lambda_.1} parent=0 // pred_fallthru
    _
  %11 = vst [vmem:[%s2] sm:$0xff] 0.0
  %12 = vst [vmem:[%s2 + $0x8] sm:$0xff] 0.0
  %13 = vst [vmem:[%s2 + $0x10] sm:$0xff] 0.0
  %14 = vst [vmem:[%s2 + $0x18] sm:$0xff] 0.0
  %v15 = vld [vmem:[%s0] sm:$0x3]
  %v16 = vunpack.c.l.bf16 %v15
  %v19 = vunpack.c.l.s4 1966171168
  %v20 = vunpack.c.0.s8 %v19
  %v21 = vlaneseq
  %v22 = vshrl.u32 %v21, 7
  %v23 = vsub.s32 %v20, %v22
  %v24 = vrot.slane %v16, %v23
  %v25 = vcombine.high %v24, %v24
  %s26 = scalar_lea.vmem %s0, 8
  %v27 = vld [vmem:[%s26] sm:$0x3]
  %v28 = vunpack.c.l.bf16 %v27
  %v31 = vunpack.c.l.s4 1966171168
  %v32 = vunpack.c.0.s8 %v31
  %v33 = vlaneseq
  %v34 = vshrl.u32 %v33, 7
  %v35 = vsub.s32 %v32, %v34
  %v36 = vrot.slane %v28, %v35
  %v37 = vcombine.high %v36, %v36
  %v38 = vld [vmem:[%s1] sm:$0xf]
  %v39 = vunpack.c.l.bf16 %v38
  %s40 = scalar_lea.vmem %s1, 16
  %v41 = vld [vmem:[%s40] sm:$0xf]
  %v42 = vunpack.c.l.bf16 %v41
  %v43 = vld [vmem:[%s2] sm:$0xff]
  %v44 = vld [vmem:[%s2 + $0x8] sm:$0xff]
  %v45 = vlaneseq
  %v46 = vshrl.u32 %v45, 7
  %v47 = vsub.s32 0, %v46
  %v48 = vrot.slane %v24, %v47
  %v49 = vlaneseq
  %v50 = vshrl.u32 %v49, 7
  %v51 = vsub.s32 1, %v50
  %v52 = vrot.slane %v24, %v51
  %v53 = vlaneseq
  %v54 = vshrl.u32 %v53, 7
  %v55 = vsub.s32 0, %v54
  %v56 = vrot.slane %v25, %v55
  %v57 = vlaneseq
  %v58 = vshrl.u32 %v57, 7
  %v59 = vsub.s32 1, %v58
  %v60 = vrot.slane %v25, %v59
  %v66 = vcombine.high %v39, %v39
  %v68 = vmul.f32 %v48, %v39
  %v69 = vmul.f32 %v52, %v66
  %v70 = vmul.f32 %v56, %v39
  %v71 = vmul.f32 %v60, %v66
  %v72 = vlaneseq
  %v73 = vshrl.u32 %v72, 7
  %v74 = vsub.s32 0, %v73
  %v75 = vrot.slane %v36, %v74
  %v76 = vlaneseq
  %v77 = vshrl.u32 %v76, 7
  %v78 = vsub.s32 1, %v77
  %v79 = vrot.slane %v36, %v78
  %v80 = vlaneseq
  %v81 = vshrl.u32 %v80, 7
  %v82 = vsub.s32 0, %v81
  %v83 = vrot.slane %v37, %v82
  %v84 = vlaneseq
  %v85 = vshrl.u32 %v84, 7
  %v86 = vsub.s32 1, %v85
  %v87 = vrot.slane %v37, %v86
  %v93 = vcombine.high %v42, %v42
  %v95 = vmul.f32 %v75, %v42
  %v96 = vmul.f32 %v79, %v93
  %v97 = vmul.f32 %v83, %v42
  %v98 = vmul.f32 %v87, %v93
  %v99 = vsub.f32 %v68, %v95
  %v100 = vsub.f32 %v69, %v96
  %v101 = vsub.f32 %v70, %v97
  %v102 = vsub.f32 %v71, %v98
  %v107 = vcombine.low %v99, %v100
  %v108 = vcombine.low %v101, %v102
  %v111 = vadd.f32 %v43, %v107
  %v112 = vadd.f32 %v44, %v108
  %113 = vst [vmem:[%s2] sm:$0xff] %v111
  %114 = vst [vmem:[%s2 + $0x8] sm:$0xff] %v112
  %s115 = scalar_lea.vmem %s2, 16
  %v116 = vld [vmem:[%s115] sm:$0xff]
  %v117 = vld [vmem:[%s115 + $0x8] sm:$0xff]
  %v118 = vmul.f32 %v48, %v42
  %v119 = vmul.f32 %v52, %v93
  %v120 = vmul.f32 %v56, %v42
  %v121 = vmul.f32 %v60, %v93
  %v122 = vmul.f32 %v75, %v39
  %v123 = vmul.f32 %v79, %v66
  %v124 = vmul.f32 %v83, %v39
  %v125 = vmul.f32 %v87, %v66
  %v126 = vadd.f32 %v118, %v122
  %v127 = vadd.f32 %v119, %v123
  %v128 = vadd.f32 %v120, %v124
  %v129 = vadd.f32 %v121, %v125
  %v134 = vcombine.low %v126, %v127
  %v135 = vcombine.low %v128, %v129
  %v138 = vadd.f32 %v116, %v134
  %v139 = vadd.f32 %v117, %v135
  %140 = vst [vmem:[%s115] sm:$0xff] %v138
  %141 = vst [vmem:[%s115 + $0x8] sm:$0xff] %v139
  %s142 = scalar_lea.vmem %s0, 2
  %v143 = vld [vmem:[%s142] sm:$0x3]
  %v144 = vunpack.c.l.bf16 %v143
  %v147 = vunpack.c.l.s4 1966171168
  %v148 = vunpack.c.0.s8 %v147
  %v149 = vlaneseq
  %v150 = vshrl.u32 %v149, 7
  %v151 = vsub.s32 %v148, %v150
  %v152 = vrot.slane %v144, %v151
  %v153 = vcombine.high %v152, %v152
  %s154 = scalar_lea.vmem %s0, 10
  %v155 = vld [vmem:[%s154] sm:$0x3]
  %v156 = vunpack.c.l.bf16 %v155
  %v159 = vunpack.c.l.s4 1966171168
  %v160 = vunpack.c.0.s8 %v159
  %v161 = vlaneseq
  %v162 = vshrl.u32 %v161, 7
  %v163 = vsub.s32 %v160, %v162
  %v164 = vrot.slane %v156, %v163
  %v165 = vcombine.high %v164, %v164
  %s166 = scalar_lea.vmem %s1, 4
  %v167 = vld [vmem:[%s166] sm:$0xf]
  %v168 = vunpack.c.l.bf16 %v167
  %s169 = scalar_lea.vmem %s1, 20
  %v170 = vld [vmem:[%s169] sm:$0xf]
  %v171 = vunpack.c.l.bf16 %v170
  %v172 = vld [vmem:[%s2] sm:$0xff]
  %v173 = vld [vmem:[%s2 + $0x8] sm:$0xff]
  %v174 = vlaneseq
  %v175 = vshrl.u32 %v174, 7
  %v176 = vsub.s32 0, %v175
  %v177 = vrot.slane %v152, %v176
  %v178 = vlaneseq
  %v179 = vshrl.u32 %v178, 7
  %v180 = vsub.s32 1, %v179
  %v181 = vrot.slane %v152, %v180
  %v182 = vlaneseq
  %v183 = vshrl.u32 %v182, 7
  %v184 = vsub.s32 0, %v183
  %v185 = vrot.slane %v153, %v184
  %v186 = vlaneseq
  %v187 = vshrl.u32 %v186, 7
  %v188 = vsub.s32 1, %v187
  %v189 = vrot.slane %v153, %v188
  %v195 = vcombine.high %v168, %v168
  %v197 = vmul.f32 %v177, %v168
  %v198 = vmul.f32 %v181, %v195
  %v199 = vmul.f32 %v185, %v168
  %v200 = vmul.f32 %v189, %v195
  %v201 = vlaneseq
  %v202 = vshrl.u32 %v201, 7
  %v203 = vsub.s32 0, %v202
  %v204 = vrot.slane %v164, %v203
  %v205 = vlaneseq
  %v206 = vshrl.u32 %v205, 7
  %v207 = vsub.s32 1, %v206
  %v208 = vrot.slane %v164, %v207
  %v209 = vlaneseq
  %v210 = vshrl.u32 %v209, 7
  %v211 = vsub.s32 0, %v210
  %v212 = vrot.slane %v165, %v211
  %v213 = vlaneseq
  %v214 = vshrl.u32 %v213, 7
  %v215 = vsub.s32 1, %v214
  %v216 = vrot.slane %v165, %v215
  %v222 = vcombine.high %v171, %v171
  %v224 = vmul.f32 %v204, %v171
  %v225 = vmul.f32 %v208, %v222
  %v226 = vmul.f32 %v212, %v171
  %v227 = vmul.f32 %v216, %v222
  %v228 = vsub.f32 %v197, %v224
  %v229 = vsub.f32 %v198, %v225
  %v230 = vsub.f32 %v199, %v226
  %v231 = vsub.f32 %v200, %v227
  %v236 = vcombine.low %v228, %v229
  %v237 = vcombine.low %v230, %v231
  %v240 = vadd.f32 %v172, %v236
  %v241 = vadd.f32 %v173, %v237
  %242 = vst [vmem:[%s2] sm:$0xff] %v240
  %243 = vst [vmem:[%s2 + $0x8] sm:$0xff] %v241
  %v244 = vld [vmem:[%s115] sm:$0xff]
  %v245 = vld [vmem:[%s115 + $0x8] sm:$0xff]
  %v246 = vmul.f32 %v177, %v171
  %v247 = vmul.f32 %v181, %v222
  %v248 = vmul.f32 %v185, %v171
  %v249 = vmul.f32 %v189, %v222
  %v250 = vmul.f32 %v204, %v168
  %v251 = vmul.f32 %v208, %v195
  %v252 = vmul.f32 %v212, %v168
  %v253 = vmul.f32 %v216, %v195
  %v254 = vadd.f32 %v246, %v250
  %v255 = vadd.f32 %v247, %v251
  %v256 = vadd.f32 %v248, %v252
  %v257 = vadd.f32 %v249, %v253
  %v262 = vcombine.low %v254, %v255
  %v263 = vcombine.low %v256, %v257
  %v266 = vadd.f32 %v244, %v262
  %v267 = vadd.f32 %v245, %v263
  %268 = vst [vmem:[%s115] sm:$0xff] %v266
  %269 = vst [vmem:[%s115 + $0x8] sm:$0xff] %v267
  %s270 = scalar_lea.vmem %s0, 4
  %v271 = vld [vmem:[%s270] sm:$0x3]
  %v272 = vunpack.c.l.bf16 %v271
  %v275 = vunpack.c.l.s4 1966171168
  %v276 = vunpack.c.0.s8 %v275
  %v277 = vlaneseq
  %v278 = vshrl.u32 %v277, 7
  %v279 = vsub.s32 %v276, %v278
  %v280 = vrot.slane %v272, %v279
  %v281 = vcombine.high %v280, %v280
  %s282 = scalar_lea.vmem %s0, 12
  %v283 = vld [vmem:[%s282] sm:$0x3]
  %v284 = vunpack.c.l.bf16 %v283
  %v287 = vunpack.c.l.s4 1966171168
  %v288 = vunpack.c.0.s8 %v287
  %v289 = vlaneseq
  %v290 = vshrl.u32 %v289, 7
  %v291 = vsub.s32 %v288, %v290
  %v292 = vrot.slane %v284, %v291
  %v293 = vcombine.high %v292, %v292
  %s294 = scalar_lea.vmem %s1, 8
  %v295 = vld [vmem:[%s294] sm:$0xf]
  %v296 = vunpack.c.l.bf16 %v295
  %s297 = scalar_lea.vmem %s1, 24
  %v298 = vld [vmem:[%s297] sm:$0xf]
  %v299 = vunpack.c.l.bf16 %v298
  %v300 = vld [vmem:[%s2] sm:$0xff]
  %v301 = vld [vmem:[%s2 + $0x8] sm:$0xff]
  %v302 = vlaneseq
  %v303 = vshrl.u32 %v302, 7
  %v304 = vsub.s32 0, %v303
  %v305 = vrot.slane %v280, %v304
  %v306 = vlaneseq
  %v307 = vshrl.u32 %v306, 7
  %v308 = vsub.s32 1, %v307
  %v309 = vrot.slane %v280, %v308
  %v310 = vlaneseq
  %v311 = vshrl.u32 %v310, 7
  %v312 = vsub.s32 0, %v311
  %v313 = vrot.slane %v281, %v312
  %v314 = vlaneseq
  %v315 = vshrl.u32 %v314, 7
  %v316 = vsub.s32 1, %v315
  %v317 = vrot.slane %v281, %v316
  %v323 = vcombine.high %v296, %v296
  %v325 = vmul.f32 %v305, %v296
  %v326 = vmul.f32 %v309, %v323
  %v327 = vmul.f32 %v313, %v296
  %v328 = vmul.f32 %v317, %v323
  %v329 = vlaneseq
  %v330 = vshrl.u32 %v329, 7
  %v331 = vsub.s32 0, %v330
  %v332 = vrot.slane %v292, %v331
  %v333 = vlaneseq
  %v334 = vshrl.u32 %v333, 7
  %v335 = vsub.s32 1, %v334
  %v336 = vrot.slane %v292, %v335
  %v337 = vlaneseq
  %v338 = vshrl.u32 %v337, 7
  %v339 = vsub.s32 0, %v338
  %v340 = vrot.slane %v293, %v339
  %v341 = vlaneseq
  %v342 = vshrl.u32 %v341, 7
  %v343 = vsub.s32 1, %v342
  %v344 = vrot.slane %v293, %v343
  %v350 = vcombine.high %v299, %v299
  %v352 = vmul.f32 %v332, %v299
  %v353 = vmul.f32 %v336, %v350
  %v354 = vmul.f32 %v340, %v299
  %v355 = vmul.f32 %v344, %v350
  %v356 = vsub.f32 %v325, %v352
  %v357 = vsub.f32 %v326, %v353
  %v358 = vsub.f32 %v327, %v354
  %v359 = vsub.f32 %v328, %v355
  %v364 = vcombine.low %v356, %v357
  %v365 = vcombine.low %v358, %v359
  %v368 = vadd.f32 %v300, %v364
  %v369 = vadd.f32 %v301, %v365
  %370 = vst [vmem:[%s2] sm:$0xff] %v368
  %371 = vst [vmem:[%s2 + $0x8] sm:$0xff] %v369
  %v372 = vld [vmem:[%s115] sm:$0xff]
  %v373 = vld [vmem:[%s115 + $0x8] sm:$0xff]
  %v374 = vmul.f32 %v305, %v299
  %v375 = vmul.f32 %v309, %v350
  %v376 = vmul.f32 %v313, %v299
  %v377 = vmul.f32 %v317, %v350
  %v378 = vmul.f32 %v332, %v296
  %v379 = vmul.f32 %v336, %v323
  %v380 = vmul.f32 %v340, %v296
  %v381 = vmul.f32 %v344, %v323
  %v382 = vadd.f32 %v374, %v378
  %v383 = vadd.f32 %v375, %v379
  %v384 = vadd.f32 %v376, %v380
  %v385 = vadd.f32 %v377, %v381
  %v390 = vcombine.low %v382, %v383
  %v391 = vcombine.low %v384, %v385
  %v394 = vadd.f32 %v372, %v390
  %v395 = vadd.f32 %v373, %v391
  %396 = vst [vmem:[%s115] sm:$0xff] %v394
  %397 = vst [vmem:[%s115 + $0x8] sm:$0xff] %v395
  %s398 = scalar_lea.vmem %s0, 6
  %v399 = vld [vmem:[%s398] sm:$0x3]
  %v400 = vunpack.c.l.bf16 %v399
  %v403 = vunpack.c.l.s4 1966171168
  %v404 = vunpack.c.0.s8 %v403
  %v405 = vlaneseq
  %v406 = vshrl.u32 %v405, 7
  %v407 = vsub.s32 %v404, %v406
  %v408 = vrot.slane %v400, %v407
  %v409 = vcombine.high %v408, %v408
  %s410 = scalar_lea.vmem %s0, 14
  %v411 = vld [vmem:[%s410] sm:$0x3]
  %v412 = vunpack.c.l.bf16 %v411
  %v415 = vunpack.c.l.s4 1966171168
  %v416 = vunpack.c.0.s8 %v415
  %v417 = vlaneseq
  %v418 = vshrl.u32 %v417, 7
  %v419 = vsub.s32 %v416, %v418
  %v420 = vrot.slane %v412, %v419
  %v421 = vcombine.high %v420, %v420
  %s422 = scalar_lea.vmem %s1, 12
  %v423 = vld [vmem:[%s422] sm:$0xf]
  %v424 = vunpack.c.l.bf16 %v423
  %s425 = scalar_lea.vmem %s1, 28
  %v426 = vld [vmem:[%s425] sm:$0xf]
  %v427 = vunpack.c.l.bf16 %v426
  %v428 = vld [vmem:[%s2] sm:$0xff]
  %v429 = vld [vmem:[%s2 + $0x8] sm:$0xff]
  %v430 = vlaneseq
  %v431 = vshrl.u32 %v430, 7
  %v432 = vsub.s32 0, %v431
  %v433 = vrot.slane %v408, %v432
  %v434 = vlaneseq
  %v435 = vshrl.u32 %v434, 7
  %v436 = vsub.s32 1, %v435
  %v437 = vrot.slane %v408, %v436
  %v438 = vlaneseq
  %v439 = vshrl.u32 %v438, 7
  %v440 = vsub.s32 0, %v439
  %v441 = vrot.slane %v409, %v440
  %v442 = vlaneseq
  %v443 = vshrl.u32 %v442, 7
  %v444 = vsub.s32 1, %v443
  %v445 = vrot.slane %v409, %v444
  %v451 = vcombine.high %v424, %v424
  %v453 = vmul.f32 %v433, %v424
  %v454 = vmul.f32 %v437, %v451
  %v455 = vmul.f32 %v441, %v424
  %v456 = vmul.f32 %v445, %v451
  %v457 = vlaneseq
  %v458 = vshrl.u32 %v457, 7
  %v459 = vsub.s32 0, %v458
  %v460 = vrot.slane %v420, %v459
  %v461 = vlaneseq
  %v462 = vshrl.u32 %v461, 7
  %v463 = vsub.s32 1, %v462
  %v464 = vrot.slane %v420, %v463
  %v465 = vlaneseq
  %v466 = vshrl.u32 %v465, 7
  %v467 = vsub.s32 0, %v466
  %v468 = vrot.slane %v421, %v467
  %v469 = vlaneseq
  %v470 = vshrl.u32 %v469, 7
  %v471 = vsub.s32 1, %v470
  %v472 = vrot.slane %v421, %v471
  %v478 = vcombine.high %v427, %v427
  %v480 = vmul.f32 %v460, %v427
  %v481 = vmul.f32 %v464, %v478
  %v482 = vmul.f32 %v468, %v427
  %v483 = vmul.f32 %v472, %v478
  %v484 = vsub.f32 %v453, %v480
  %v485 = vsub.f32 %v454, %v481
  %v486 = vsub.f32 %v455, %v482
  %v487 = vsub.f32 %v456, %v483
  %v492 = vcombine.low %v484, %v485
  %v493 = vcombine.low %v486, %v487
  %v496 = vadd.f32 %v428, %v492
  %v497 = vadd.f32 %v429, %v493
  %498 = vst [vmem:[%s2] sm:$0xff] %v496
  %499 = vst [vmem:[%s2 + $0x8] sm:$0xff] %v497
  %v500 = vld [vmem:[%s115] sm:$0xff]
  %v501 = vld [vmem:[%s115 + $0x8] sm:$0xff]
  %v502 = vmul.f32 %v433, %v427
  %v503 = vmul.f32 %v437, %v478
  %v504 = vmul.f32 %v441, %v427
  %v505 = vmul.f32 %v445, %v478
  %v506 = vmul.f32 %v460, %v424
  %v507 = vmul.f32 %v464, %v451
  %v508 = vmul.f32 %v468, %v424
  %v509 = vmul.f32 %v472, %v451
  %v510 = vadd.f32 %v502, %v506
  %v511 = vadd.f32 %v503, %v507
  %v512 = vadd.f32 %v504, %v508
  %v513 = vadd.f32 %v505, %v509
  %v518 = vcombine.low %v510, %v511
  %v519 = vcombine.low %v512, %v513
  %v522 = vadd.f32 %v500, %v518
  %v523 = vadd.f32 %v501, %v519
  %524 = vst [vmem:[%s115] sm:$0xff] %v522
  %525 = vst [vmem:[%s115 + $0x8] sm:$0xff] %v523
  // Predicated region
  $region10: #{_lambda_.1} parent=0 // pred_check
    _
  $region11: #{_lambda_.1} parent=0 // pred_check_branch
    %527 = sbr.rel (0) target = $region13
  $region12: #{_lambda_.1} parent=0 // pred_region
    _
  $region13: #{_lambda_.1} parent=0 // pred_fallthru
    _
  // Predicated region
  $region14: #{_lambda_.1} parent=0 // pred_check
    _
  $region15: #{_lambda_.1} parent=0 // pred_check_branch
    %529 = sbr.rel (0) target = $region17
  $region16: #{_lambda_.1} parent=0 // pred_region
    _
  $region17: #{_lambda_.1} parent=0 // pred_fallthru
    _

// kernel: reverse.1
$region0: #{reverse.1}
  #allocation0 [shape = 's32[1]{0}', space=sflag, size = 0x4, scoped, tag = 'scoped memory for reverse.1']
  %s0 = inlined_call_operand.vmem [shape: f32[2,4,16,16,7], index: 0, kind: input, shape index: {}]
  %s1 = inlined_call_operand.vmem [shape: f32[2,4,16,16,7], index: 1, kind: output, shape index: {}]
  %s2 = scalar_lea.vmem %s0, 96
  %v3 = vld [vmem:[%s2] sm:$0xff]
  %4 = vst [vmem:[%s1] sm:$0xff] %v3
  %s5 = scalar_lea.vmem %s0, 544
  %v6 = vld [vmem:[%s5] sm:$0xff]
  %s7 = scalar_lea.vmem %s1, 448
  %8 = vst [vmem:[%s7] sm:$0xff] %v6
  %s9 = scalar_lea.vmem %s0, 208
  %v10 = vld [vmem:[%s9] sm:$0xff]
  %s11 = scalar_lea.vmem %s1, 112
  %12 = vst [vmem:[%s11] sm:$0xff] %v10
  %s13 = scalar_lea.vmem %s0, 656
  %v14 = vld [vmem:[%s13] sm:$0xff]
  %s15 = scalar_lea.vmem %s1, 560
  %16 = vst [vmem:[%s15] sm:$0xff] %v14
  %s17 = scalar_lea.vmem %s0, 320
  %v18 = vld [vmem:[%s17] sm:$0xff]
  %s19 = scalar_lea.vmem %s1, 224
  %20 = vst [vmem:[%s19] sm:$0xff] %v18
  %s21 = scalar_lea.vmem %s0, 768
  %v22 = vld [vmem:[%s21] sm:$0xff]
  %s23 = scalar_lea.vmem %s1, 672
  %24 = vst [vmem:[%s23] sm:$0xff] %v22
  %s25 = scalar_lea.vmem %s0, 432
  %v26 = vld [vmem:[%s25] sm:$0xff]
  %s27 = scalar_lea.vmem %s1, 336
  %28 = vst [vmem:[%s27] sm:$0xff] %v26
  %s29 = scalar_lea.vmem %s0, 880
  %v30 = vld [vmem:[%s29] sm:$0xff]
  %s31 = scalar_lea.vmem %s1, 784
  %32 = vst [vmem:[%s31] sm:$0xff] %v30
  %s33 = scalar_lea.vmem %s0, 80
  %v34 = vld [vmem:[%s33] sm:$0xff]
  %s35 = scalar_lea.vmem %s1, 16
  %36 = vst [vmem:[%s35] sm:$0xff] %v34
  %s37 = scalar_lea.vmem %s0, 528
  %v38 = vld [vmem:[%s37] sm:$0xff]
  %s39 = scalar_lea.vmem %s1, 464
  %40 = vst [vmem:[%s39] sm:$0xff] %v38
  %s41 = scalar_lea.vmem %s0, 192
  %v42 = vld [vmem:[%s41] sm:$0xff]
  %s43 = scalar_lea.vmem %s1, 128
  %44 = vst [vmem:[%s43] sm:$0xff] %v42
  %s45 = scalar_lea.vmem %s0, 640
  %v46 = vld [vmem:[%s45] sm:$0xff]
  %s47 = scalar_lea.vmem %s1, 576
  %48 = vst [vmem:[%s47] sm:$0xff] %v46
  %s49 = scalar_lea.vmem %s0, 304
  %v50 = vld [vmem:[%s49] sm:$0xff]
  %s51 = scalar_lea.vmem %s1, 240
  %52 = vst [vmem:[%s51] sm:$0xff] %v50
  %s53 = scalar_lea.vmem %s0, 752
  %v54 = vld [vmem:[%s53] sm:$0xff]
  %s55 = scalar_lea.vmem %s1, 688
  %56 = vst [vmem:[%s55] sm:$0xff] %v54
  %s57 = scalar_lea.vmem %s0, 416
  %v58 = vld [vmem:[%s57] sm:$0xff]
  %s59 = scalar_lea.vmem %s1, 352
  %60 = vst [vmem:[%s59] sm:$0xff] %v58
  %s61 = scalar_lea.vmem %s0, 864
  %v62 = vld [vmem:[%s61] sm:$0xff]
  %s63 = scalar_lea.vmem %s1, 800
  %64 = vst [vmem:[%s63] sm:$0xff] %v62
  %s65 = scalar_lea.vmem %s0, 64
  %v66 = vld [vmem:[%s65] sm:$0xff]
  %s67 = scalar_lea.vmem %s1, 32
  %68 = vst [vmem:[%s67] sm:$0xff] %v66
  %s69 = scalar_lea.vmem %s0, 512
  %v70 = vld [vmem:[%s69] sm:$0xff]
  %s71 = scalar_lea.vmem %s1, 480
  %72 = vst [vmem:[%s71] sm:$0xff] %v70
  %s73 = scalar_lea.vmem %s0, 176
  %v74 = vld [vmem:[%s73] sm:$0xff]
  %s75 = scalar_lea.vmem %s1, 144
  %76 = vst [vmem:[%s75] sm:$0xff] %v74
  %s77 = scalar_lea.vmem %s0, 624
  %v78 = vld [vmem:[%s77] sm:$0xff]
  %s79 = scalar_lea.vmem %s1, 592
  %80 = vst [vmem:[%s79] sm:$0xff] %v78
  %s81 = scalar_lea.vmem %s0, 288
  %v82 = vld [vmem:[%s81] sm:$0xff]
  %s83 = scalar_lea.vmem %s1, 256
  %84 = vst [vmem:[%s83] sm:$0xff] %v82
  %s85 = scalar_lea.vmem %s0, 736
  %v86 = vld [vmem:[%s85] sm:$0xff]
  %s87 = scalar_lea.vmem %s1, 704
  %88 = vst [vmem:[%s87] sm:$0xff] %v86
  %s89 = scalar_lea.vmem %s0, 400
  %v90 = vld [vmem:[%s89] sm:$0xff]
  %s91 = scalar_lea.vmem %s1, 368
  %92 = vst [vmem:[%s91] sm:$0xff] %v90
  %s93 = scalar_lea.vmem %s0, 848
  %v94 = vld [vmem:[%s93] sm:$0xff]
  %s95 = scalar_lea.vmem %s1, 816
  %96 = vst [vmem:[%s95] sm:$0xff] %v94
  %s97 = scalar_lea.vmem %s0, 48
  %v98 = vld [vmem:[%s97] sm:$0xff]
  %s99 = scalar_lea.vmem %s1, 48
  %100 = vst [vmem:[%s99] sm:$0xff] %v98
  %s101 = scalar_lea.vmem %s0, 496
  %v102 = vld [vmem:[%s101] sm:$0xff]
  %s103 = scalar_lea.vmem %s1, 496
  %104 = vst [vmem:[%s103] sm:$0xff] %v102
  %s105 = scalar_lea.vmem %s0, 160
  %v106 = vld [vmem:[%s105] sm:$0xff]
  %s107 = scalar_lea.vmem %s1, 160
  %108 = vst [vmem:[%s107] sm:$0xff] %v106
  %s109 = scalar_lea.vmem %s0, 608
  %v110 = vld [vmem:[%s109] sm:$0xff]
  %s111 = scalar_lea.vmem %s1, 608
  %112 = vst [vmem:[%s111] sm:$0xff] %v110
  %s113 = scalar_lea.vmem %s0, 272
  %v114 = vld [vmem:[%s113] sm:$0xff]
  %s115 = scalar_lea.vmem %s1, 272
  %116 = vst [vmem:[%s115] sm:$0xff] %v114
  %s117 = scalar_lea.vmem %s0, 720
  %v118 = vld [vmem:[%s117] sm:$0xff]
  %s119 = scalar_lea.vmem %s1, 720
  %120 = vst [vmem:[%s119] sm:$0xff] %v118
  %s121 = scalar_lea.vmem %s0, 384
  %v122 = vld [vmem:[%s121] sm:$0xff]
  %s123 = scalar_lea.vmem %s1, 384
  %124 = vst [vmem:[%s123] sm:$0xff] %v122
  %s125 = scalar_lea.vmem %s0, 832
  %v126 = vld [vmem:[%s125] sm:$0xff]
  %s127 = scalar_lea.vmem %s1, 832
  %128 = vst [vmem:[%s127] sm:$0xff] %v126
  %s129 = scalar_lea.vmem %s0, 32
  %v130 = vld [vmem:[%s129] sm:$0xff]
  %s131 = scalar_lea.vmem %s1, 64
  %132 = vst [vmem:[%s131] sm:$0xff] %v130
  %s133 = scalar_lea.vmem %s0, 480
  %v134 = vld [vmem:[%s133] sm:$0xff]
  %s135 = scalar_lea.vmem %s1, 512
  %136 = vst [vmem:[%s135] sm:$0xff] %v134
  %s137 = scalar_lea.vmem %s0, 144
  %v138 = vld [vmem:[%s137] sm:$0xff]
  %s139 = scalar_lea.vmem %s1, 176
  %140 = vst [vmem:[%s139] sm:$0xff] %v138
  %s141 = scalar_lea.vmem %s0, 592
  %v142 = vld [vmem:[%s141] sm:$0xff]
  %s143 = scalar_lea.vmem %s1, 624
  %144 = vst [vmem:[%s143] sm:$0xff] %v142
  %s145 = scalar_lea.vmem %s0, 256
  %v146 = vld [vmem:[%s145] sm:$0xff]
  %s147 = scalar_lea.vmem %s1, 288
  %148 = vst [vmem:[%s147] sm:$0xff] %v146
  %s149 = scalar_lea.vmem %s0, 704
  %v150 = vld [vmem:[%s149] sm:$0xff]
  %s151 = scalar_lea.vmem %s1, 736
  %152 = vst [vmem:[%s151] sm:$0xff] %v150
  %s153 = scalar_lea.vmem %s0, 368
  %v154 = vld [vmem:[%s153] sm:$0xff]
  %s155 = scalar_lea.vmem %s1, 400
  %156 = vst [vmem:[%s155] sm:$0xff] %v154
  %s157 = scalar_lea.vmem %s0, 816
  %v158 = vld [vmem:[%s157] sm:$0xff]
  %s159 = scalar_lea.vmem %s1, 848
  %160 = vst [vmem:[%s159] sm:$0xff] %v158
  %s161 = scalar_lea.vmem %s0, 16
  %v162 = vld [vmem:[%s161] sm:$0xff]
  %s163 = scalar_lea.vmem %s1, 80
  %164 = vst [vmem:[%s163] sm:$0xff] %v162
  %s165 = scalar_lea.vmem %s0, 464
  %v166 = vld [vmem:[%s165] sm:$0xff]
  %s167 = scalar_lea.vmem %s1, 528
  %168 = vst [vmem:[%s167] sm:$0xff] %v166
  %s169 = scalar_lea.vmem %s0, 128
  %v170 = vld [vmem:[%s169] sm:$0xff]
  %s171 = scalar_lea.vmem %s1, 192
  %172 = vst [vmem:[%s171] sm:$0xff] %v170
  %s173 = scalar_lea.vmem %s0, 576
  %v174 = vld [vmem:[%s173] sm:$0xff]
  %s175 = scalar_lea.vmem %s1, 640
  %176 = vst [vmem:[%s175] sm:$0xff] %v174
  %s177 = scalar_lea.vmem %s0, 240
  %v178 = vld [vmem:[%s177] sm:$0xff]
  %s179 = scalar_lea.vmem %s1, 304
  %180 = vst [vmem:[%s179] sm:$0xff] %v178
  %s181 = scalar_lea.vmem %s0, 688
  %v182 = vld [vmem:[%s181] sm:$0xff]
  %s183 = scalar_lea.vmem %s1, 752
  %184 = vst [vmem:[%s183] sm:$0xff] %v182
  %s185 = scalar_lea.vmem %s0, 352
  %v186 = vld [vmem:[%s185] sm:$0xff]
  %s187 = scalar_lea.vmem %s1, 416
  %188 = vst [vmem:[%s187] sm:$0xff] %v186
  %s189 = scalar_lea.vmem %s0, 800
  %v190 = vld [vmem:[%s189] sm:$0xff]
  %s191 = scalar_lea.vmem %s1, 864
  %192 = vst [vmem:[%s191] sm:$0xff] %v190
  %v193 = vld [vmem:[%s0] sm:$0xff]
  %s194 = scalar_lea.vmem %s1, 96
  %195 = vst [vmem:[%s194] sm:$0xff] %v193
  %s196 = scalar_lea.vmem %s0, 448
  %v197 = vld [vmem:[%s196] sm:$0xff]
  %s198 = scalar_lea.vmem %s1, 544
  %199 = vst [vmem:[%s198] sm:$0xff] %v197
  %s200 = scalar_lea.vmem %s0, 112
  %v201 = vld [vmem:[%s200] sm:$0xff]
  %s202 = scalar_lea.vmem %s1, 208
  %203 = vst [vmem:[%s202] sm:$0xff] %v201
  %s204 = scalar_lea.vmem %s0, 560
  %v205 = vld [vmem:[%s204] sm:$0xff]
  %s206 = scalar_lea.vmem %s1, 656
  %207 = vst [vmem:[%s206] sm:$0xff] %v205
  %s208 = scalar_lea.vmem %s0, 224
  %v209 = vld [vmem:[%s208] sm:$0xff]
  %s210 = scalar_lea.vmem %s1, 320
  %211 = vst [vmem:[%s210] sm:$0xff] %v209
  %s212 = scalar_lea.vmem %s0, 672
  %v213 = vld [vmem:[%s212] sm:$0xff]
  %s214 = scalar_lea.vmem %s1, 768
  %215 = vst [vmem:[%s214] sm:$0xff] %v213
  %s216 = scalar_lea.vmem %s0, 336
  %v217 = vld [vmem:[%s216] sm:$0xff]
  %s218 = scalar_lea.vmem %s1, 432
  %219 = vst [vmem:[%s218] sm:$0xff] %v217
  %s220 = scalar_lea.vmem %s0, 784
  %v221 = vld [vmem:[%s220] sm:$0xff]
  %s222 = scalar_lea.vmem %s1, 880
  %223 = vst [vmem:[%s222] sm:$0xff] %v221
  %s224 = scalar_lea.vmem %s0, 104
  %v225 = vld [vmem:[%s224] sm:$0xff]
  %s226 = scalar_lea.vmem %s1, 8
  %227 = vst [vmem:[%s226] sm:$0xff] %v225
  %s228 = scalar_lea.vmem %s0, 552
  %v229 = vld [vmem:[%s228] sm:$0xff]
  %s230 = scalar_lea.vmem %s1, 456
  %231 = vst [vmem:[%s230] sm:$0xff] %v229
  %s232 = scalar_lea.vmem %s0, 216
  %v233 = vld [vmem:[%s232] sm:$0xff]
  %s234 = scalar_lea.vmem %s1, 120
  %235 = vst [vmem:[%s234] sm:$0xff] %v233
  %s236 = scalar_lea.vmem %s0, 664
  %v237 = vld [vmem:[%s236] sm:$0xff]
  %s238 = scalar_lea.vmem %s1, 568
  %239 = vst [vmem:[%s238] sm:$0xff] %v237
  %s240 = scalar_lea.vmem %s0, 328
  %v241 = vld [vmem:[%s240] sm:$0xff]
  %s242 = scalar_lea.vmem %s1, 232
  %243 = vst [vmem:[%s242] sm:$0xff] %v241
  %s244 = scalar_lea.vmem %s0, 776
  %v245 = vld [vmem:[%s244] sm:$0xff]
  %s246 = scalar_lea.vmem %s1, 680
  %247 = vst [vmem:[%s246] sm:$0xff] %v245
  %s248 = scalar_lea.vmem %s0, 440
  %v249 = vld [vmem:[%s248] sm:$0xff]
  %s250 = scalar_lea.vmem %s1, 344
  %251 = vst [vmem:[%s250] sm:$0xff] %v249
  %s252 = scalar_lea.vmem %s0, 888
  %v253 = vld [vmem:[%s252] sm:$0xff]
  %s254 = scalar_lea.vmem %s1, 792
  %255 = vst [vmem:[%s254] sm:$0xff] %v253
  %s256 = scalar_lea.vmem %s0, 88
  %v257 = vld [vmem:[%s256] sm:$0xff]
  %s258 = scalar_lea.vmem %s1, 24
  %259 = vst [vmem:[%s258] sm:$0xff] %v257
  %s260 = scalar_lea.vmem %s0, 536
  %v261 = vld [vmem:[%s260] sm:$0xff]
  %s262 = scalar_lea.vmem %s1, 472
  %263 = vst [vmem:[%s262] sm:$0xff] %v261
  %s264 = scalar_lea.vmem %s0, 200
  %v265 = vld [vmem:[%s264] sm:$0xff]
  %s266 = scalar_lea.vmem %s1, 136
  %267 = vst [vmem:[%s266] sm:$0xff] %v265
  %s268 = scalar_lea.vmem %s0, 648
  %v269 = vld [vmem:[%s268] sm:$0xff]
  %s270 = scalar_lea.vmem %s1, 584
  %271 = vst [vmem:[%s270] sm:$0xff] %v269
  %s272 = scalar_lea.vmem %s0, 312
  %v273 = vld [vmem:[%s272] sm:$0xff]
  %s274 = scalar_lea.vmem %s1, 248
  %275 = vst [vmem:[%s274] sm:$0xff] %v273
  %s276 = scalar_lea.vmem %s0, 760
  %v277 = vld [vmem:[%s276] sm:$0xff]
  %s278 = scalar_lea.vmem %s1, 696
  %279 = vst [vmem:[%s278] sm:$0xff] %v277
  %s280 = scalar_lea.vmem %s0, 424
  %v281 = vld [vmem:[%s280] sm:$0xff]
  %s282 = scalar_lea.vmem %s1, 360
  %283 = vst [vmem:[%s282] sm:$0xff] %v281
  %s284 = scalar_lea.vmem %s0, 872
  %v285 = vld [vmem:[%s284] sm:$0xff]
  %s286 = scalar_lea.vmem %s1, 808
  %287 = vst [vmem:[%s286] sm:$0xff] %v285
  %s288 = scalar_lea.vmem %s0, 72
  %v289 = vld [vmem:[%s288] sm:$0xff]
  %s290 = scalar_lea.vmem %s1, 40
  %291 = vst [vmem:[%s290] sm:$0xff] %v289
  %s292 = scalar_lea.vmem %s0, 520
  %v293 = vld [vmem:[%s292] sm:$0xff]
  %s294 = scalar_lea.vmem %s1, 488
  %295 = vst [vmem:[%s294] sm:$0xff] %v293
  %s296 = scalar_lea.vmem %s0, 184
  %v297 = vld [vmem:[%s296] sm:$0xff]
  %s298 = scalar_lea.vmem %s1, 152
  %299 = vst [vmem:[%s298] sm:$0xff] %v297
  %s300 = scalar_lea.vmem %s0, 632
  %v301 = vld [vmem:[%s300] sm:$0xff]
  %s302 = scalar_lea.vmem %s1, 600
  %303 = vst [vmem:[%s302] sm:$0xff] %v301
  %s304 = scalar_lea.vmem %s0, 296
  %v305 = vld [vmem:[%s304] sm:$0xff]
  %s306 = scalar_lea.vmem %s1, 264
  %307 = vst [vmem:[%s306] sm:$0xff] %v305
  %s308 = scalar_lea.vmem %s0, 744
  %v309 = vld [vmem:[%s308] sm:$0xff]
  %s310 = scalar_lea.vmem %s1, 712
  %311 = vst [vmem:[%s310] sm:$0xff] %v309
  %s312 = scalar_lea.vmem %s0, 408
  %v313 = vld [vmem:[%s312] sm:$0xff]
  %s314 = scalar_lea.vmem %s1, 376
  %315 = vst [vmem:[%s314] sm:$0xff] %v313
  %s316 = scalar_lea.vmem %s0, 856
  %v317 = vld [vmem:[%s316] sm:$0xff]
  %s318 = scalar_lea.vmem %s1, 824
  %319 = vst [vmem:[%s318] sm:$0xff] %v317
  %s320 = scalar_lea.vmem %s0, 56
  %v321 = vld [vmem:[%s320] sm:$0xff]
  %s322 = scalar_lea.vmem %s1, 56
  %323 = vst [vmem:[%s322] sm:$0xff] %v321
  %s324 = scalar_lea.vmem %s0, 504
  %v325 = vld [vmem:[%s324] sm:$0xff]
  %s326 = scalar_lea.vmem %s1, 504
  %327 = vst [vmem:[%s326] sm:$0xff] %v325
  %s328 = scalar_lea.vmem %s0, 168
  %v329 = vld [vmem:[%s328] sm:$0xff]
  %s330 = scalar_lea.vmem %s1, 168
  %331 = vst [vmem:[%s330] sm:$0xff] %v329
  %s332 = scalar_lea.vmem %s0, 616
  %v333 = vld [vmem:[%s332] sm:$0xff]
  %s334 = scalar_lea.vmem %s1, 616
  %335 = vst [vmem:[%s334] sm:$0xff] %v333
  %s336 = scalar_lea.vmem %s0, 280
  %v337 = vld [vmem:[%s336] sm:$0xff]
  %s338 = scalar_lea.vmem %s1, 280
  %339 = vst [vmem:[%s338] sm:$0xff] %v337
  %s340 = scalar_lea.vmem %s0, 728
  %v341 = vld [vmem:[%s340] sm:$0xff]
  %s342 = scalar_lea.vmem %s1, 728
  %343 = vst [vmem:[%s342] sm:$0xff] %v341
  %s344 = scalar_lea.vmem %s0, 392
  %v345 = vld [vmem:[%s344] sm:$0xff]
  %s346 = scalar_lea.vmem %s1, 392
  %347 = vst [vmem:[%s346] sm:$0xff] %v345
  %s348 = scalar_lea.vmem %s0, 840
  %v349 = vld [vmem:[%s348] sm:$0xff]
  %s350 = scalar_lea.vmem %s1, 840
  %351 = vst [vmem:[%s350] sm:$0xff] %v349
  %s352 = scalar_lea.vmem %s0, 40
  %v353 = vld [vmem:[%s352] sm:$0xff]
  %s354 = scalar_lea.vmem %s1, 72
  %355 = vst [vmem:[%s354] sm:$0xff] %v353
  %s356 = scalar_lea.vmem %s0, 488
  %v357 = vld [vmem:[%s356] sm:$0xff]
  %s358 = scalar_lea.vmem %s1, 520
  %359 = vst [vmem:[%s358] sm:$0xff] %v357
  %s360 = scalar_lea.vmem %s0, 152
  %v361 = vld [vmem:[%s360] sm:$0xff]
  %s362 = scalar_lea.vmem %s1, 184
  %363 = vst [vmem:[%s362] sm:$0xff] %v361
  %s364 = scalar_lea.vmem %s0, 600
  %v365 = vld [vmem:[%s364] sm:$0xff]
  %s366 = scalar_lea.vmem %s1, 632
  %367 = vst [vmem:[%s366] sm:$0xff] %v365
  %s368 = scalar_lea.vmem %s0, 264
  %v369 = vld [vmem:[%s368] sm:$0xff]
  %s370 = scalar_lea.vmem %s1, 296
  %371 = vst [vmem:[%s370] sm:$0xff] %v369
  %s372 = scalar_lea.vmem %s0, 712
  %v373 = vld [vmem:[%s372] sm:$0xff]
  %s374 = scalar_lea.vmem %s1, 744
  %375 = vst [vmem:[%s374] sm:$0xff] %v373
  %s376 = scalar_lea.vmem %s0, 376
  %v377 = vld [vmem:[%s376] sm:$0xff]
  %s378 = scalar_lea.vmem %s1, 408
  %379 = vst [vmem:[%s378] sm:$0xff] %v377
  %s380 = scalar_lea.vmem %s0, 824
  %v381 = vld [vmem:[%s380] sm:$0xff]
  %s382 = scalar_lea.vmem %s1, 856
  %383 = vst [vmem:[%s382] sm:$0xff] %v381
  %s384 = scalar_lea.vmem %s0, 24
  %v385 = vld [vmem:[%s384] sm:$0xff]
  %s386 = scalar_lea.vmem %s1, 88
  %387 = vst [vmem:[%s386] sm:$0xff] %v385
  %s388 = scalar_lea.vmem %s0, 472
  %v389 = vld [vmem:[%s388] sm:$0xff]
  %s390 = scalar_lea.vmem %s1, 536
  %391 = vst [vmem:[%s390] sm:$0xff] %v389
  %s392 = scalar_lea.vmem %s0, 136
  %v393 = vld [vmem:[%s392] sm:$0xff]
  %s394 = scalar_lea.vmem %s1, 200
  %395 = vst [vmem:[%s394] sm:$0xff] %v393
  %s396 = scalar_lea.vmem %s0, 584
  %v397 = vld [vmem:[%s396] sm:$0xff]
  %s398 = scalar_lea.vmem %s1, 648
  %399 = vst [vmem:[%s398] sm:$0xff] %v397
  %s400 = scalar_lea.vmem %s0, 248
  %v401 = vld [vmem:[%s400] sm:$0xff]
  %s402 = scalar_lea.vmem %s1, 312
  %403 = vst [vmem:[%s402] sm:$0xff] %v401
  %s404 = scalar_lea.vmem %s0, 696
  %v405 = vld [vmem:[%s404] sm:$0xff]
  %s406 = scalar_lea.vmem %s1, 760
  %407 = vst [vmem:[%s406] sm:$0xff] %v405
  %s408 = scalar_lea.vmem %s0, 360
  %v409 = vld [vmem:[%s408] sm:$0xff]
  %s410 = scalar_lea.vmem %s1, 424
  %411 = vst [vmem:[%s410] sm:$0xff] %v409
  %s412 = scalar_lea.vmem %s0, 808
  %v413 = vld [vmem:[%s412] sm:$0xff]
  %s414 = scalar_lea.vmem %s1, 872
  %415 = vst [vmem:[%s414] sm:$0xff] %v413
  %s416 = scalar_lea.vmem %s0, 8
  %v417 = vld [vmem:[%s416] sm:$0xff]
  %s418 = scalar_lea.vmem %s1, 104
  %419 = vst [vmem:[%s418] sm:$0xff] %v417
  %s420 = scalar_lea.vmem %s0, 456
  %v421 = vld [vmem:[%s420] sm:$0xff]
  %s422 = scalar_lea.vmem %s1, 552
  %423 = vst [vmem:[%s422] sm:$0xff] %v421
  %s424 = scalar_lea.vmem %s0, 120
  %v425 = vld [vmem:[%s424] sm:$0xff]
  %s426 = scalar_lea.vmem %s1, 216
  %427 = vst [vmem:[%s426] sm:$0xff] %v425
  %s428 = scalar_lea.vmem %s0, 568
  %v429 = vld [vmem:[%s428] sm:$0xff]
  %s430 = scalar_lea.vmem %s1, 664
  %431 = vst [vmem:[%s430] sm:$0xff] %v429
  %s432 = scalar_lea.vmem %s0, 232
  %v433 = vld [vmem:[%s432] sm:$0xff]
  %s434 = scalar_lea.vmem %s1, 328
  %435 = vst [vmem:[%s434] sm:$0xff] %v433
  %s436 = scalar_lea.vmem %s0, 680
  %v437 = vld [vmem:[%s436] sm:$0xff]
  %s438 = scalar_lea.vmem %s1, 776
  %439 = vst [vmem:[%s438] sm:$0xff] %v437
  %s440 = scalar_lea.vmem %s0, 344
  %v441 = vld [vmem:[%s440] sm:$0xff]
  %s442 = scalar_lea.vmem %s1, 440
  %443 = vst [vmem:[%s442] sm:$0xff] %v441
  %s444 = scalar_lea.vmem %s0, 792
  %v445 = vld [vmem:[%s444] sm:$0xff]
  %s446 = scalar_lea.vmem %s1, 888
  %447 = vst [vmem:[%s446] sm:$0xff] %v445

</llo_original>
